<compile_context>
chip_gen: v7x
topology: tpu7x:2x2x1
jax: 0.10.0
libtpu: 0.0.40
codegen_flags: <defaults>
</compile_context>

<pallas_src>
import functools
import math

import jax
import jax.numpy as jnp
import numpy as np
from jax.experimental import pallas as pl
from jax.experimental.pallas import tpu as pltpu


# ----------------------------- Pallas kernel --------------------------------
def hymba_kernel(
    x_ref, pe_ref, coh_ref,
    wc_ref, bc_ref, wt_ref, bt_ref,
    wp_ref, bp_ref, wq_ref, bq_ref,
    cons_ref, think_ref, pred_ref, plan_ref,
    *, num_layers, thinking_steps, seq_len, seq_pad, tile_m,
):
    f32 = jnp.float32
    bf16 = jnp.bfloat16

    # Thinking decay mask computed in-kernel: exp(-pos / S), pos = row % S_pad.
    # (Tiles never straddle a sequence boundary by construction.)
    row0 = pl.program_id(0) * tile_m
    pos = (jax.lax.broadcasted_iota(jnp.int32, (tile_m, 1), 0) + row0) % seq_pad
    decay = jnp.exp(-pos.astype(f32) * (1.0 / float(seq_len)))      # (tile_m, 1)

    # --- memory consolidation: relu(Linear) chain over (x + pe) -------------
    state = x_ref[...] + pe_ref[...]                                 # f32
    for l in range(num_layers):
        h = jnp.dot(state.astype(bf16), wc_ref[l],
                    preferred_element_type=f32) + bc_ref[l]
        state = jnp.maximum(h, 0.0)

    # --- coherence ("present token") gating: state * (1 + tanh(coh)) --------
    state = state * (1.0 + jnp.tanh(coh_ref[...]))
    cons_ref[...] = state

    # --- thinking steps: repeated decayed tanh(Linear) chain ----------------
    cur = state
    for _ in range(thinking_steps):
        for l in range(num_layers):
            h = jnp.dot((cur * decay).astype(bf16), wt_ref[l],
                        preferred_element_type=f32) + bt_ref[l]
            cur = jnp.tanh(h)
    think_ref[...] = cur

    # --- prediction / planning heads ----------------------------------------
    cur_bf = cur.astype(bf16)
    pred_ref[...] = jnp.dot(cur_bf, wp_ref[...],
                            preferred_element_type=f32) + bp_ref[...]
    plan_ref[...] = jnp.dot(cur_bf, wq_ref[...],
                            preferred_element_type=f32) + bq_ref[...]


# ------------------------------ helpers --------------------------------------
def _round_up(x, m):
    return (x + m - 1) // m * m


def _choose_tile(seq_pad, batch, want):
    """TILE_M: multiple of 8 that divides M_pad = batch*seq_pad and either
    divides seq_pad or is a multiple of seq_pad (so tiles never straddle a
    sequence boundary)."""
    want = max(8, _round_up(want, 8))
    if seq_pad >= want:
        t = min(want, seq_pad)
        t -= t % 8
        while seq_pad % t:
            t -= 8
        return t
    # one tile spans r whole (padded) sequences, with r dividing batch
    r = max(1, min(batch, want // seq_pad))
    while batch % r:
        r -= 1
    return seq_pad * r


def sinusoidal_pe(max_len, dim):
    position = jnp.arange(max_len, dtype=jnp.float32)[:, None]
    div_term = jnp.exp(jnp.arange(0, dim, 2, dtype=jnp.float32)
                       * (-(math.log(10000.0) / dim)))
    args = position * div_term                       # (max_len, dim//2)
    pe = jnp.zeros((max_len, dim), jnp.float32)
    pe = pe.at[:, 0::2].set(jnp.sin(args))
    pe = pe.at[:, 1::2].set(jnp.cos(args))
    return pe


def make_params(key, input_dim, hidden_dim, num_layers):
    """Deterministic nn.Linear-style init (uniform +/- 1/sqrt(fan_in))."""
    keys = jax.random.split(key, 8)

    def lin(k, fan_in, shape):
        bound = 1.0 / math.sqrt(fan_in)
        return jax.random.uniform(k, shape, jnp.float32, -bound, bound)

    return dict(
        wc=lin(keys[0], input_dim, (num_layers, input_dim, hidden_dim)),
        bc=lin(keys[1], input_dim, (num_layers, 1, hidden_dim)),
        wt=lin(keys[2], hidden_dim, (num_layers, hidden_dim, hidden_dim)),
        bt=lin(keys[3], hidden_dim, (num_layers, 1, hidden_dim)),
        wp=lin(keys[4], hidden_dim, (hidden_dim, input_dim)),
        bp=lin(keys[5], hidden_dim, (1, input_dim)),
        wq=lin(keys[6], hidden_dim, (hidden_dim, input_dim)),
        bq=lin(keys[7], hidden_dim, (1, input_dim)),
    )


# ------------------------------ JAX wrapper ----------------------------------
def hymba_forward(memory_tokens, coherence_tokens, params, *,
                  compute_budget=1.0, num_layers=4, tile_rows=256):
    B, S, D = memory_tokens.shape
    H = params["wc"].shape[-1]
    assert D == H, "module only type-checks with input_dim == hidden_dim"
    thinking_steps = int(max(0.0, min(1.0, compute_budget)) * 4)

    f32, bf16 = jnp.float32, jnp.bfloat16

    S_pad = _round_up(S, 8)
    TILE_M = _choose_tile(S_pad, B, tile_rows)
    M_pad = B * S_pad
    n_tiles = M_pad // TILE_M

    # activations: pad sequence to a multiple of 8, flatten to rows
    pad = [(0, 0), (0, S_pad - S), (0, 0)]
    x = jnp.pad(memory_tokens.astype(f32), pad).reshape(M_pad, D)
    coh = jnp.pad(coherence_tokens.astype(f32), pad).reshape(M_pad, H)

    # positional encoding table: (max(S_pad, TILE_M), D).  Only tiled (cheaply)
    # when one row-tile spans several sequences -- never broadcast B times.
    pe = sinusoidal_pe(S_pad, D)
    L_pe = max(S_pad, TILE_M)
    if L_pe > S_pad:
        pe = jnp.tile(pe, (L_pe // S_pad, 1))
    pe_blocks = L_pe // TILE_M

    # weights in bf16 (MXU-native single pass); biases stay f32
    wc = params["wc"].astype(bf16)
    wt = params["wt"].astype(bf16)
    wp = params["wp"].astype(bf16)
    wq = params["wq"].astype(bf16)
    bc, bt, bp, bq = params["bc"], params["bt"], params["bp"], params["bq"]

    row = lambda last: pl.BlockSpec((TILE_M, last), lambda i: (i, 0))
    if pe_blocks == 1:
        pe_spec = pl.BlockSpec((TILE_M, D), lambda i: (0, 0))
    else:
        pe_spec = pl.BlockSpec((TILE_M, D), lambda i: (i % pe_blocks, 0))
    resident3 = lambda a: pl.BlockSpec(a.shape, lambda i: (0, 0, 0))
    resident2 = lambda a: pl.BlockSpec(a.shape, lambda i: (0, 0))

    kernel = functools.partial(
        hymba_kernel, num_layers=num_layers, thinking_steps=thinking_steps,
        seq_len=S, seq_pad=S_pad, tile_m=TILE_M)

    matmuls = num_layers * (1 + thinking_steps) + 2
    cost = pl.CostEstimate(
        flops=2 * M_pad * H * H * matmuls,
        transcendentals=M_pad * H * (thinking_steps * num_layers + 1) + M_pad,
        bytes_accessed=(int(x.size) + int(pe.size) + int(coh.size)) * 4
        + 4 * M_pad * H * 4
        + (int(wc.size) + int(wt.size) + int(wp.size) + int(wq.size)) * 2
        + (int(bc.size) + int(bt.size) + int(bp.size) + int(bq.size)) * 4,
    )

    out_shapes = (
        jax.ShapeDtypeStruct((M_pad, H), f32),   # consolidated
        jax.ShapeDtypeStruct((M_pad, H), f32),   # thinking
        jax.ShapeDtypeStruct((M_pad, D), f32),   # prediction
        jax.ShapeDtypeStruct((M_pad, D), f32),   # planning
    )
    cons, think, pred, plan = pl.pallas_call(
        kernel,
        out_shape=out_shapes,
        grid=(n_tiles,),
        in_specs=[row(D), pe_spec, row(H),
                  resident3(wc), resident3(bc), resident3(wt), resident3(bt),
                  resident2(wp), resident2(bp), resident2(wq), resident2(bq)],
        out_specs=(row(H), row(H), row(D), row(D)),
        compiler_params=pltpu.CompilerParams(
            dimension_semantics=("parallel",)),
        cost_estimate=cost,
    )(x, pe, coh, wc, bc, wt, bt, wp, bp, wq, bq)

    def unflat(a, last):
        return a.reshape(B, S_pad, last)[:, :S]

    return {
        "consolidated_tokens": unflat(cons, H),
        "thinking_tokens": unflat(think, H),
        "prediction_tokens": unflat(pred, D),
        "planning_tokens": unflat(plan, D),
    }


# --------------------------- pure-JAX reference ------------------------------
def hymba_reference(memory_tokens, coherence_tokens, params, *,
                    compute_budget=1.0, num_layers=4):
    B, S, D = memory_tokens.shape
    prec = jax.lax.Precision.HIGHEST
    pe = sinusoidal_pe(S, D)
    state = memory_tokens + pe[None]
    for l in range(num_layers):
        state = jax.nn.relu(
            jnp.dot(state, params["wc"][l], precision=prec) + params["bc"][l, 0])
    state = state * (1.0 + jnp.tanh(coherence_tokens))
    cons = state

    decay = jnp.exp(-jnp.arange(S, dtype=jnp.float32) / S)[None, :, None]
    cur = cons
    for _ in range(int(max(0.0, min(1.0, compute_budget)) * 4)):
        for l in range(num_layers):
            cur = jnp.tanh(
                jnp.dot(cur * decay, params["wt"][l], precision=prec)
                + params["bt"][l, 0])
    pred = jnp.dot(cur, params["wp"], precision=prec) + params["bp"][0]
    plan = jnp.dot(cur, params["wq"], precision=prec) + params["bq"][0]
    return {"consolidated_tokens": cons, "thinking_tokens": cur,
            "prediction_tokens": pred, "planning_tokens": plan}


# --------------------------------- main ---------------------------------------
if __name__ == "__main__":
    B, S = 2, 64
    D = H = 128          # module requires input_dim == hidden_dim (see NOTE)
    L = 4

    key = jax.random.PRNGKey(0)
    k_par, k_mem, k_coh = jax.random.split(key, 3)

    params = make_params(k_par, D, H, L)
    memory_tokens = jax.random.normal(k_mem, (B, S, D), jnp.float32)
    coherence_tokens = jax.random.normal(k_coh, (B, S, H), jnp.float32)

    configs = [
        dict(compute_budget=1.0, tile_rows=256),  # tile spans both sequences
        dict(compute_budget=0.5, tile_rows=32),   # 4 grid steps, modular PE index
    ]
    names = ("consolidated_tokens", "thinking_tokens",
             "prediction_tokens", "planning_tokens")

    for cfg in configs:
        out = hymba_forward(memory_tokens, coherence_tokens, params,
                            num_layers=L, **cfg)
        out = jax.tree_util.tree_map(jax.block_until_ready, out)
        ref = hymba_reference(memory_tokens, coherence_tokens, params,
                              compute_budget=cfg["compute_budget"],
                              num_layers=L)
        for name in names:
            a, b = np.asarray(out[name]), np.asarray(ref[name])
            assert a.shape == b.shape, (name, a.shape, b.shape)
            assert np.all(np.isfinite(a)), name
            # bf16 matmul operands vs f32 HIGHEST reference -> modest tolerance
            np.testing.assert_allclose(a, b, rtol=5e-2, atol=5e-2, err_msg=name)

    print("KERNEL_OK")
</pallas_src>

<mosaic_0001>
module attributes {stable_mosaic.version = 11 : i64} {
  func.func @hymba_kernel(%arg0: i32, %arg1: memref<128x128xf32, #tpu.memory_space<vmem>>, %arg2: memref<128x128xf32, #tpu.memory_space<vmem>>, %arg3: memref<128x128xf32, #tpu.memory_space<vmem>>, %arg4: memref<4x128x128xbf16, #tpu.memory_space<vmem>>, %arg5: memref<4x1x128xf32, #tpu.memory_space<vmem>>, %arg6: memref<4x128x128xbf16, #tpu.memory_space<vmem>>, %arg7: memref<4x1x128xf32, #tpu.memory_space<vmem>>, %arg8: memref<128x128xbf16, #tpu.memory_space<vmem>>, %arg9: memref<1x128xf32, #tpu.memory_space<vmem>>, %arg10: memref<128x128xbf16, #tpu.memory_space<vmem>>, %arg11: memref<1x128xf32, #tpu.memory_space<vmem>>, %arg12: memref<128x128xf32, #tpu.memory_space<vmem>>, %arg13: memref<128x128xf32, #tpu.memory_space<vmem>>, %arg14: memref<128x128xf32, #tpu.memory_space<vmem>>, %arg15: memref<128x128xf32, #tpu.memory_space<vmem>>) attributes {dimension_semantics = [#tpu.dimension_semantics<parallel>], iteration_bounds = array<i64: 1>, scalar_prefetch = 0 : i64, scratch_operands = 0 : i64, tpu.core_type = #tpu.core_type<tc>, window_params = [{transform_indices = @transform_0, window_bounds = array<i64: 128, 128>}, {pipeline_mode = #tpu.pipeline_mode<synchronous>, transform_indices = @transform_1, window_bounds = array<i64: 128, 128>}, {transform_indices = @transform_2, window_bounds = array<i64: 128, 128>}, {pipeline_mode = #tpu.pipeline_mode<synchronous>, transform_indices = @transform_3, window_bounds = array<i64: 4, 128, 128>}, {pipeline_mode = #tpu.pipeline_mode<synchronous>, transform_indices = @transform_4, window_bounds = array<i64: 4, 1, 128>}, {pipeline_mode = #tpu.pipeline_mode<synchronous>, transform_indices = @transform_5, window_bounds = array<i64: 4, 128, 128>}, {pipeline_mode = #tpu.pipeline_mode<synchronous>, transform_indices = @transform_6, window_bounds = array<i64: 4, 1, 128>}, {pipeline_mode = #tpu.pipeline_mode<synchronous>, transform_indices = @transform_7, window_bounds = array<i64: 128, 128>}, {pipeline_mode = #tpu.pipeline_mode<synchronous>, transform_indices = @transform_8, window_bounds = array<i64: 1, 128>}, {pipeline_mode = #tpu.pipeline_mode<synchronous>, transform_indices = @transform_9, window_bounds = array<i64: 128, 128>}, {pipeline_mode = #tpu.pipeline_mode<synchronous>, transform_indices = @transform_10, window_bounds = array<i64: 1, 128>}, {transform_indices = @transform_11, window_bounds = array<i64: 128, 128>}, {transform_indices = @transform_12, window_bounds = array<i64: 128, 128>}, {transform_indices = @transform_13, window_bounds = array<i64: 128, 128>}, {transform_indices = @transform_14, window_bounds = array<i64: 128, 128>}]} {
    %c128_i32 = arith.constant 128 : i32
    %0 = arith.muli %arg0, %c128_i32 : i32
    %1 = tpu.iota {dimensions = array<i32: 0>} : vector<128x1xi32>
    %2 = vector.broadcast %0 : i32 to vector<128x1xi32>
    %3 = arith.addi %1, %2 : vector<128x1xi32>
    %c64_i32 = arith.constant 64 : i32
    %c0_i32 = arith.constant 0 : i32
    %4 = arith.cmpi eq, %c64_i32, %c0_i32 : i32
    %c1_i32 = arith.constant 1 : i32
    %5 = arith.select %4, %c1_i32, %c64_i32 : i32
    %6 = vector.broadcast %5 : i32 to vector<128x1xi32>
    %7 = arith.remsi %3, %6 : vector<128x1xi32>
    %c0_i32_0 = arith.constant 0 : i32
    %8 = vector.broadcast %c0_i32_0 : i32 to vector<128x1xi32>
    %9 = arith.cmpi ne, %7, %8 : vector<128x1xi32>
    %c0_i32_1 = arith.constant 0 : i32
    %10 = vector.broadcast %c0_i32_1 : i32 to vector<128x1xi32>
    %11 = arith.cmpi slt, %7, %10 : vector<128x1xi32>
    %c0_i32_2 = arith.constant 0 : i32
    %12 = arith.cmpi slt, %5, %c0_i32_2 : i32
    %13 = vector.broadcast %12 : i1 to vector<128x1xi1>
    %14 = vector.broadcast %13 : vector<128x1xi1> to vector<128x1xi1>
    %15 = arith.xori %11, %14 : vector<128x1xi1>
    %16 = arith.andi %15, %9 : vector<128x1xi1>
    %17 = vector.broadcast %5 : i32 to vector<128x1xi32>
    %18 = arith.addi %7, %17 : vector<128x1xi32>
    %19 = arith.select %16, %18, %7 : vector<128x1xi1>, vector<128x1xi32>
    %20 = arith.sitofp %19 : vector<128x1xi32> to vector<128x1xf32>
    %cst = arith.constant 0.000000e+00 : f32
    %21 = vector.broadcast %cst : f32 to vector<128x1xf32>
    %22 = arith.subf %21, %20 : vector<128x1xf32>
    %cst_3 = arith.constant 1.562500e-02 : f32
    %23 = vector.broadcast %cst_3 : f32 to vector<128x1xf32>
    %24 = arith.mulf %22, %23 : vector<128x1xf32>
    %25 = math.exp %24 : vector<128x1xf32>
    %c0 = arith.constant 0 : index
    %c0_4 = arith.constant 0 : index
    %26 = vector.load %arg1[%c0, %c0_4] : memref<128x128xf32, #tpu.memory_space<vmem>>, vector<128x128xf32>
    %c0_5 = arith.constant 0 : index
    %c0_6 = arith.constant 0 : index
    %27 = vector.load %arg2[%c0_5, %c0_6] : memref<128x128xf32, #tpu.memory_space<vmem>>, vector<128x128xf32>
    %28 = arith.addf %26, %27 : vector<128x128xf32>
    %29 = arith.truncf %28 : vector<128x128xf32> to vector<128x128xbf16>
    %c0_7 = arith.constant 0 : index
    %c0_8 = arith.constant 0 : index
    %c0_9 = arith.constant 0 : index
    %30 = vector.load %arg4[%c0_7, %c0_8, %c0_9] : memref<4x128x128xbf16, #tpu.memory_space<vmem>>, vector<1x128x128xbf16>
    %31 = vector.shape_cast %30 : vector<1x128x128xbf16> to vector<128x128xbf16>
    %cst_10 = arith.constant dense<0.000000e+00> : vector<128x128xf32>
    %32 = tpu.matmul %29, %31, %cst_10 {dimension_numbers = #tpu.dot_dimension_numbers<[1], [0], [0], [1], [0, 0, 1, 1], [], []>} : vector<128x128xbf16>, vector<128x128xbf16>, vector<128x128xf32> -> vector<128x128xf32>
    %c0_11 = arith.constant 0 : index
    %c0_12 = arith.constant 0 : index
    %c0_13 = arith.constant 0 : index
    %33 = vector.load %arg5[%c0_11, %c0_12, %c0_13] : memref<4x1x128xf32, #tpu.memory_space<vmem>>, vector<1x1x128xf32>
    %34 = vector.shape_cast %33 : vector<1x1x128xf32> to vector<1x128xf32>
    %35 = vector.broadcast %34 : vector<1x128xf32> to vector<128x128xf32>
    %36 = arith.addf %32, %35 : vector<128x128xf32>
    %cst_14 = arith.constant 0.000000e+00 : f32
    %37 = vector.broadcast %cst_14 : f32 to vector<128x128xf32>
    %38 = arith.maximumf %36, %37 : vector<128x128xf32>
    %39 = arith.truncf %38 : vector<128x128xf32> to vector<128x128xbf16>
    %c1 = arith.constant 1 : index
    %c0_15 = arith.constant 0 : index
    %c0_16 = arith.constant 0 : index
    %40 = vector.load %arg4[%c1, %c0_15, %c0_16] : memref<4x128x128xbf16, #tpu.memory_space<vmem>>, vector<1x128x128xbf16>
    %41 = vector.shape_cast %40 : vector<1x128x128xbf16> to vector<128x128xbf16>
    %cst_17 = arith.constant dense<0.000000e+00> : vector<128x128xf32>
    %42 = tpu.matmul %39, %41, %cst_17 {dimension_numbers = #tpu.dot_dimension_numbers<[1], [0], [0], [1], [0, 0, 1, 1], [], []>} : vector<128x128xbf16>, vector<128x128xbf16>, vector<128x128xf32> -> vector<128x128xf32>
    %c1_18 = arith.constant 1 : index
    %c0_19 = arith.constant 0 : index
    %c0_20 = arith.constant 0 : index
    %43 = vector.load %arg5[%c1_18, %c0_19, %c0_20] : memref<4x1x128xf32, #tpu.memory_space<vmem>>, vector<1x1x128xf32>
    %44 = vector.shape_cast %43 : vector<1x1x128xf32> to vector<1x128xf32>
    %45 = vector.broadcast %44 : vector<1x128xf32> to vector<128x128xf32>
    %46 = arith.addf %42, %45 : vector<128x128xf32>
    %cst_21 = arith.constant 0.000000e+00 : f32
    %47 = vector.broadcast %cst_21 : f32 to vector<128x128xf32>
    %48 = arith.maximumf %46, %47 : vector<128x128xf32>
    %49 = arith.truncf %48 : vector<128x128xf32> to vector<128x128xbf16>
    %c2 = arith.constant 2 : index
    %c0_22 = arith.constant 0 : index
    %c0_23 = arith.constant 0 : index
    %50 = vector.load %arg4[%c2, %c0_22, %c0_23] : memref<4x128x128xbf16, #tpu.memory_space<vmem>>, vector<1x128x128xbf16>
    %51 = vector.shape_cast %50 : vector<1x128x128xbf16> to vector<128x128xbf16>
    %cst_24 = arith.constant dense<0.000000e+00> : vector<128x128xf32>
    %52 = tpu.matmul %49, %51, %cst_24 {dimension_numbers = #tpu.dot_dimension_numbers<[1], [0], [0], [1], [0, 0, 1, 1], [], []>} : vector<128x128xbf16>, vector<128x128xbf16>, vector<128x128xf32> -> vector<128x128xf32>
    %c2_25 = arith.constant 2 : index
    %c0_26 = arith.constant 0 : index
    %c0_27 = arith.constant 0 : index
    %53 = vector.load %arg5[%c2_25, %c0_26, %c0_27] : memref<4x1x128xf32, #tpu.memory_space<vmem>>, vector<1x1x128xf32>
    %54 = vector.shape_cast %53 : vector<1x1x128xf32> to vector<1x128xf32>
    %55 = vector.broadcast %54 : vector<1x128xf32> to vector<128x128xf32>
    %56 = arith.addf %52, %55 : vector<128x128xf32>
    %cst_28 = arith.constant 0.000000e+00 : f32
    %57 = vector.broadcast %cst_28 : f32 to vector<128x128xf32>
    %58 = arith.maximumf %56, %57 : vector<128x128xf32>
    %59 = arith.truncf %58 : vector<128x128xf32> to vector<128x128xbf16>
    %c3 = arith.constant 3 : index
    %c0_29 = arith.constant 0 : index
    %c0_30 = arith.constant 0 : index
    %60 = vector.load %arg4[%c3, %c0_29, %c0_30] : memref<4x128x128xbf16, #tpu.memory_space<vmem>>, vector<1x128x128xbf16>
    %61 = vector.shape_cast %60 : vector<1x128x128xbf16> to vector<128x128xbf16>
    %cst_31 = arith.constant dense<0.000000e+00> : vector<128x128xf32>
    %62 = tpu.matmul %59, %61, %cst_31 {dimension_numbers = #tpu.dot_dimension_numbers<[1], [0], [0], [1], [0, 0, 1, 1], [], []>} : vector<128x128xbf16>, vector<128x128xbf16>, vector<128x128xf32> -> vector<128x128xf32>
    %c3_32 = arith.constant 3 : index
    %c0_33 = arith.constant 0 : index
    %c0_34 = arith.constant 0 : index
    %63 = vector.load %arg5[%c3_32, %c0_33, %c0_34] : memref<4x1x128xf32, #tpu.memory_space<vmem>>, vector<1x1x128xf32>
    %64 = vector.shape_cast %63 : vector<1x1x128xf32> to vector<1x128xf32>
    %65 = vector.broadcast %64 : vector<1x128xf32> to vector<128x128xf32>
    %66 = arith.addf %62, %65 : vector<128x128xf32>
    %cst_35 = arith.constant 0.000000e+00 : f32
    %67 = vector.broadcast %cst_35 : f32 to vector<128x128xf32>
    %68 = arith.maximumf %66, %67 : vector<128x128xf32>
    %c0_36 = arith.constant 0 : index
    %c0_37 = arith.constant 0 : index
    %69 = vector.load %arg3[%c0_36, %c0_37] : memref<128x128xf32, #tpu.memory_space<vmem>>, vector<128x128xf32>
    %70 = math.tanh %69 : vector<128x128xf32>
    %cst_38 = arith.constant 1.000000e+00 : f32
    %71 = vector.broadcast %cst_38 : f32 to vector<128x128xf32>
    %72 = arith.addf %71, %70 : vector<128x128xf32>
    %73 = arith.mulf %68, %72 : vector<128x128xf32>
    %c0_39 = arith.constant 0 : index
    %c0_40 = arith.constant 0 : index
    %74 = vector.load %arg12[%c0_39, %c0_40] : memref<128x128xf32, #tpu.memory_space<vmem>>, vector<128x128xf32>
    tpu.vector_store %arg12[%c0_39, %c0_40], %73 {strides = array<i32>} : memref<128x128xf32, #tpu.memory_space<vmem>>, vector<128x128xf32>,
    %75 = vector.broadcast %25 : vector<128x1xf32> to vector<128x128xf32>
    %76 = arith.mulf %73, %75 : vector<128x128xf32>
    %77 = arith.truncf %76 : vector<128x128xf32> to vector<128x128xbf16>
    %c0_41 = arith.constant 0 : index
    %c0_42 = arith.constant 0 : index
    %c0_43 = arith.constant 0 : index
    %78 = vector.load %arg6[%c0_41, %c0_42, %c0_43] : memref<4x128x128xbf16, #tpu.memory_space<vmem>>, vector<1x128x128xbf16>
    %79 = vector.shape_cast %78 : vector<1x128x128xbf16> to vector<128x128xbf16>
    %cst_44 = arith.constant dense<0.000000e+00> : vector<128x128xf32>
    %80 = tpu.matmul %77, %79, %cst_44 {dimension_numbers = #tpu.dot_dimension_numbers<[1], [0], [0], [1], [0, 0, 1, 1], [], []>} : vector<128x128xbf16>, vector<128x128xbf16>, vector<128x128xf32> -> vector<128x128xf32>
    %c0_45 = arith.constant 0 : index
    %c0_46 = arith.constant 0 : index
    %c0_47 = arith.constant 0 : index
    %81 = vector.load %arg7[%c0_45, %c0_46, %c0_47] : memref<4x1x128xf32, #tpu.memory_space<vmem>>, vector<1x1x128xf32>
    %82 = vector.shape_cast %81 : vector<1x1x128xf32> to vector<1x128xf32>
    %83 = vector.broadcast %82 : vector<1x128xf32> to vector<128x128xf32>
    %84 = arith.addf %80, %83 : vector<128x128xf32>
    %85 = math.tanh %84 : vector<128x128xf32>
    %86 = vector.broadcast %25 : vector<128x1xf32> to vector<128x128xf32>
    %87 = arith.mulf %85, %86 : vector<128x128xf32>
    %88 = arith.truncf %87 : vector<128x128xf32> to vector<128x128xbf16>
    %c1_48 = arith.constant 1 : index
    %c0_49 = arith.constant 0 : index
    %c0_50 = arith.constant 0 : index
    %89 = vector.load %arg6[%c1_48, %c0_49, %c0_50] : memref<4x128x128xbf16, #tpu.memory_space<vmem>>, vector<1x128x128xbf16>
    %90 = vector.shape_cast %89 : vector<1x128x128xbf16> to vector<128x128xbf16>
    %cst_51 = arith.constant dense<0.000000e+00> : vector<128x128xf32>
    %91 = tpu.matmul %88, %90, %cst_51 {dimension_numbers = #tpu.dot_dimension_numbers<[1], [0], [0], [1], [0, 0, 1, 1], [], []>} : vector<128x128xbf16>, vector<128x128xbf16>, vector<128x128xf32> -> vector<128x128xf32>
    %c1_52 = arith.constant 1 : index
    %c0_53 = arith.constant 0 : index
    %c0_54 = arith.constant 0 : index
    %92 = vector.load %arg7[%c1_52, %c0_53, %c0_54] : memref<4x1x128xf32, #tpu.memory_space<vmem>>, vector<1x1x128xf32>
    %93 = vector.shape_cast %92 : vector<1x1x128xf32> to vector<1x128xf32>
    %94 = vector.broadcast %93 : vector<1x128xf32> to vector<128x128xf32>
    %95 = arith.addf %91, %94 : vector<128x128xf32>
    %96 = math.tanh %95 : vector<128x128xf32>
    %97 = vector.broadcast %25 : vector<128x1xf32> to vector<128x128xf32>
    %98 = arith.mulf %96, %97 : vector<128x128xf32>
    %99 = arith.truncf %98 : vector<128x128xf32> to vector<128x128xbf16>
    %c2_55 = arith.constant 2 : index
    %c0_56 = arith.constant 0 : index
    %c0_57 = arith.constant 0 : index
    %100 = vector.load %arg6[%c2_55, %c0_56, %c0_57] : memref<4x128x128xbf16, #tpu.memory_space<vmem>>, vector<1x128x128xbf16>
    %101 = vector.shape_cast %100 : vector<1x128x128xbf16> to vector<128x128xbf16>
    %cst_58 = arith.constant dense<0.000000e+00> : vector<128x128xf32>
    %102 = tpu.matmul %99, %101, %cst_58 {dimension_numbers = #tpu.dot_dimension_numbers<[1], [0], [0], [1], [0, 0, 1, 1], [], []>} : vector<128x128xbf16>, vector<128x128xbf16>, vector<128x128xf32> -> vector<128x128xf32>
    %c2_59 = arith.constant 2 : index
    %c0_60 = arith.constant 0 : index
    %c0_61 = arith.constant 0 : index
    %103 = vector.load %arg7[%c2_59, %c0_60, %c0_61] : memref<4x1x128xf32, #tpu.memory_space<vmem>>, vector<1x1x128xf32>
    %104 = vector.shape_cast %103 : vector<1x1x128xf32> to vector<1x128xf32>
    %105 = vector.broadcast %104 : vector<1x128xf32> to vector<128x128xf32>
    %106 = arith.addf %102, %105 : vector<128x128xf32>
    %107 = math.tanh %106 : vector<128x128xf32>
    %108 = vector.broadcast %25 : vector<128x1xf32> to vector<128x128xf32>
    %109 = arith.mulf %107, %108 : vector<128x128xf32>
    %110 = arith.truncf %109 : vector<128x128xf32> to vector<128x128xbf16>
    %c3_62 = arith.constant 3 : index
    %c0_63 = arith.constant 0 : index
    %c0_64 = arith.constant 0 : index
    %111 = vector.load %arg6[%c3_62, %c0_63, %c0_64] : memref<4x128x128xbf16, #tpu.memory_space<vmem>>, vector<1x128x128xbf16>
    %112 = vector.shape_cast %111 : vector<1x128x128xbf16> to vector<128x128xbf16>
    %cst_65 = arith.constant dense<0.000000e+00> : vector<128x128xf32>
    %113 = tpu.matmul %110, %112, %cst_65 {dimension_numbers = #tpu.dot_dimension_numbers<[1], [0], [0], [1], [0, 0, 1, 1], [], []>} : vector<128x128xbf16>, vector<128x128xbf16>, vector<128x128xf32> -> vector<128x128xf32>
    %c3_66 = arith.constant 3 : index
    %c0_67 = arith.constant 0 : index
    %c0_68 = arith.constant 0 : index
    %114 = vector.load %arg7[%c3_66, %c0_67, %c0_68] : memref<4x1x128xf32, #tpu.memory_space<vmem>>, vector<1x1x128xf32>
    %115 = vector.shape_cast %114 : vector<1x1x128xf32> to vector<1x128xf32>
    %116 = vector.broadcast %115 : vector<1x128xf32> to vector<128x128xf32>
    %117 = arith.addf %113, %116 : vector<128x128xf32>
    %118 = math.tanh %117 : vector<128x128xf32>
    %119 = vector.broadcast %25 : vector<128x1xf32> to vector<128x128xf32>
    %120 = arith.mulf %118, %119 : vector<128x128xf32>
    %121 = arith.truncf %120 : vector<128x128xf32> to vector<128x128xbf16>
    %c0_69 = arith.constant 0 : index
    %c0_70 = arith.constant 0 : index
    %c0_71 = arith.constant 0 : index
    %122 = vector.load %arg6[%c0_69, %c0_70, %c0_71] : memref<4x128x128xbf16, #tpu.memory_space<vmem>>, vector<1x128x128xbf16>
    %123 = vector.shape_cast %122 : vector<1x128x128xbf16> to vector<128x128xbf16>
    %cst_72 = arith.constant dense<0.000000e+00> : vector<128x128xf32>
    %124 = tpu.matmul %121, %123, %cst_72 {dimension_numbers = #tpu.dot_dimension_numbers<[1], [0], [0], [1], [0, 0, 1, 1], [], []>} : vector<128x128xbf16>, vector<128x128xbf16>, vector<128x128xf32> -> vector<128x128xf32>
    %c0_73 = arith.constant 0 : index
    %c0_74 = arith.constant 0 : index
    %c0_75 = arith.constant 0 : index
    %125 = vector.load %arg7[%c0_73, %c0_74, %c0_75] : memref<4x1x128xf32, #tpu.memory_space<vmem>>, vector<1x1x128xf32>
    %126 = vector.shape_cast %125 : vector<1x1x128xf32> to vector<1x128xf32>
    %127 = vector.broadcast %126 : vector<1x128xf32> to vector<128x128xf32>
    %128 = arith.addf %124, %127 : vector<128x128xf32>
    %129 = math.tanh %128 : vector<128x128xf32>
    %130 = vector.broadcast %25 : vector<128x1xf32> to vector<128x128xf32>
    %131 = arith.mulf %129, %130 : vector<128x128xf32>
    %132 = arith.truncf %131 : vector<128x128xf32> to vector<128x128xbf16>
    %c1_76 = arith.constant 1 : index
    %c0_77 = arith.constant 0 : index
    %c0_78 = arith.constant 0 : index
    %133 = vector.load %arg6[%c1_76, %c0_77, %c0_78] : memref<4x128x128xbf16, #tpu.memory_space<vmem>>, vector<1x128x128xbf16>
    %134 = vector.shape_cast %133 : vector<1x128x128xbf16> to vector<128x128xbf16>
    %cst_79 = arith.constant dense<0.000000e+00> : vector<128x128xf32>
    %135 = tpu.matmul %132, %134, %cst_79 {dimension_numbers = #tpu.dot_dimension_numbers<[1], [0], [0], [1], [0, 0, 1, 1], [], []>} : vector<128x128xbf16>, vector<128x128xbf16>, vector<128x128xf32> -> vector<128x128xf32>
    %c1_80 = arith.constant 1 : index
    %c0_81 = arith.constant 0 : index
    %c0_82 = arith.constant 0 : index
    %136 = vector.load %arg7[%c1_80, %c0_81, %c0_82] : memref<4x1x128xf32, #tpu.memory_space<vmem>>, vector<1x1x128xf32>
    %137 = vector.shape_cast %136 : vector<1x1x128xf32> to vector<1x128xf32>
    %138 = vector.broadcast %137 : vector<1x128xf32> to vector<128x128xf32>
    %139 = arith.addf %135, %138 : vector<128x128xf32>
    %140 = math.tanh %139 : vector<128x128xf32>
    %141 = vector.broadcast %25 : vector<128x1xf32> to vector<128x128xf32>
    %142 = arith.mulf %140, %141 : vector<128x128xf32>
    %143 = arith.truncf %142 : vector<128x128xf32> to vector<128x128xbf16>
    %c2_83 = arith.constant 2 : index
    %c0_84 = arith.constant 0 : index
    %c0_85 = arith.constant 0 : index
    %144 = vector.load %arg6[%c2_83, %c0_84, %c0_85] : memref<4x128x128xbf16, #tpu.memory_space<vmem>>, vector<1x128x128xbf16>
    %145 = vector.shape_cast %144 : vector<1x128x128xbf16> to vector<128x128xbf16>
    %cst_86 = arith.constant dense<0.000000e+00> : vector<128x128xf32>
    %146 = tpu.matmul %143, %145, %cst_86 {dimension_numbers = #tpu.dot_dimension_numbers<[1], [0], [0], [1], [0, 0, 1, 1], [], []>} : vector<128x128xbf16>, vector<128x128xbf16>, vector<128x128xf32> -> vector<128x128xf32>
    %c2_87 = arith.constant 2 : index
    %c0_88 = arith.constant 0 : index
    %c0_89 = arith.constant 0 : index
    %147 = vector.load %arg7[%c2_87, %c0_88, %c0_89] : memref<4x1x128xf32, #tpu.memory_space<vmem>>, vector<1x1x128xf32>
    %148 = vector.shape_cast %147 : vector<1x1x128xf32> to vector<1x128xf32>
    %149 = vector.broadcast %148 : vector<1x128xf32> to vector<128x128xf32>
    %150 = arith.addf %146, %149 : vector<128x128xf32>
    %151 = math.tanh %150 : vector<128x128xf32>
    %152 = vector.broadcast %25 : vector<128x1xf32> to vector<128x128xf32>
    %153 = arith.mulf %151, %152 : vector<128x128xf32>
    %154 = arith.truncf %153 : vector<128x128xf32> to vector<128x128xbf16>
    %c3_90 = arith.constant 3 : index
    %c0_91 = arith.constant 0 : index
    %c0_92 = arith.constant 0 : index
    %155 = vector.load %arg6[%c3_90, %c0_91, %c0_92] : memref<4x128x128xbf16, #tpu.memory_space<vmem>>, vector<1x128x128xbf16>
    %156 = vector.shape_cast %155 : vector<1x128x128xbf16> to vector<128x128xbf16>
    %cst_93 = arith.constant dense<0.000000e+00> : vector<128x128xf32>
    %157 = tpu.matmul %154, %156, %cst_93 {dimension_numbers = #tpu.dot_dimension_numbers<[1], [0], [0], [1], [0, 0, 1, 1], [], []>} : vector<128x128xbf16>, vector<128x128xbf16>, vector<128x128xf32> -> vector<128x128xf32>
    %c3_94 = arith.constant 3 : index
    %c0_95 = arith.constant 0 : index
    %c0_96 = arith.constant 0 : index
    %158 = vector.load %arg7[%c3_94, %c0_95, %c0_96] : memref<4x1x128xf32, #tpu.memory_space<vmem>>, vector<1x1x128xf32>
    %159 = vector.shape_cast %158 : vector<1x1x128xf32> to vector<1x128xf32>
    %160 = vector.broadcast %159 : vector<1x128xf32> to vector<128x128xf32>
    %161 = arith.addf %157, %160 : vector<128x128xf32>
    %162 = math.tanh %161 : vector<128x128xf32>
    %163 = vector.broadcast %25 : vector<128x1xf32> to vector<128x128xf32>
    %164 = arith.mulf %162, %163 : vector<128x128xf32>
    %165 = arith.truncf %164 : vector<128x128xf32> to vector<128x128xbf16>
    %c0_97 = arith.constant 0 : index
    %c0_98 = arith.constant 0 : index
    %c0_99 = arith.constant 0 : index
    %166 = vector.load %arg6[%c0_97, %c0_98, %c0_99] : memref<4x128x128xbf16, #tpu.memory_space<vmem>>, vector<1x128x128xbf16>
    %167 = vector.shape_cast %166 : vector<1x128x128xbf16> to vector<128x128xbf16>
    %cst_100 = arith.constant dense<0.000000e+00> : vector<128x128xf32>
    %168 = tpu.matmul %165, %167, %cst_100 {dimension_numbers = #tpu.dot_dimension_numbers<[1], [0], [0], [1], [0, 0, 1, 1], [], []>} : vector<128x128xbf16>, vector<128x128xbf16>, vector<128x128xf32> -> vector<128x128xf32>
    %c0_101 = arith.constant 0 : index
    %c0_102 = arith.constant 0 : index
    %c0_103 = arith.constant 0 : index
    %169 = vector.load %arg7[%c0_101, %c0_102, %c0_103] : memref<4x1x128xf32, #tpu.memory_space<vmem>>, vector<1x1x128xf32>
    %170 = vector.shape_cast %169 : vector<1x1x128xf32> to vector<1x128xf32>
    %171 = vector.broadcast %170 : vector<1x128xf32> to vector<128x128xf32>
    %172 = arith.addf %168, %171 : vector<128x128xf32>
    %173 = math.tanh %172 : vector<128x128xf32>
    %174 = vector.broadcast %25 : vector<128x1xf32> to vector<128x128xf32>
    %175 = arith.mulf %173, %174 : vector<128x128xf32>
    %176 = arith.truncf %175 : vector<128x128xf32> to vector<128x128xbf16>
    %c1_104 = arith.constant 1 : index
    %c0_105 = arith.constant 0 : index
    %c0_106 = arith.constant 0 : index
    %177 = vector.load %arg6[%c1_104, %c0_105, %c0_106] : memref<4x128x128xbf16, #tpu.memory_space<vmem>>, vector<1x128x128xbf16>
    %178 = vector.shape_cast %177 : vector<1x128x128xbf16> to vector<128x128xbf16>
    %cst_107 = arith.constant dense<0.000000e+00> : vector<128x128xf32>
    %179 = tpu.matmul %176, %178, %cst_107 {dimension_numbers = #tpu.dot_dimension_numbers<[1], [0], [0], [1], [0, 0, 1, 1], [], []>} : vector<128x128xbf16>, vector<128x128xbf16>, vector<128x128xf32> -> vector<128x128xf32>
    %c1_108 = arith.constant 1 : index
    %c0_109 = arith.constant 0 : index
    %c0_110 = arith.constant 0 : index
    %180 = vector.load %arg7[%c1_108, %c0_109, %c0_110] : memref<4x1x128xf32, #tpu.memory_space<vmem>>, vector<1x1x128xf32>
    %181 = vector.shape_cast %180 : vector<1x1x128xf32> to vector<1x128xf32>
    %182 = vector.broadcast %181 : vector<1x128xf32> to vector<128x128xf32>
    %183 = arith.addf %179, %182 : vector<128x128xf32>
    %184 = math.tanh %183 : vector<128x128xf32>
    %185 = vector.broadcast %25 : vector<128x1xf32> to vector<128x128xf32>
    %186 = arith.mulf %184, %185 : vector<128x128xf32>
    %187 = arith.truncf %186 : vector<128x128xf32> to vector<128x128xbf16>
    %c2_111 = arith.constant 2 : index
    %c0_112 = arith.constant 0 : index
    %c0_113 = arith.constant 0 : index
    %188 = vector.load %arg6[%c2_111, %c0_112, %c0_113] : memref<4x128x128xbf16, #tpu.memory_space<vmem>>, vector<1x128x128xbf16>
    %189 = vector.shape_cast %188 : vector<1x128x128xbf16> to vector<128x128xbf16>
    %cst_114 = arith.constant dense<0.000000e+00> : vector<128x128xf32>
    %190 = tpu.matmul %187, %189, %cst_114 {dimension_numbers = #tpu.dot_dimension_numbers<[1], [0], [0], [1], [0, 0, 1, 1], [], []>} : vector<128x128xbf16>, vector<128x128xbf16>, vector<128x128xf32> -> vector<128x128xf32>
    %c2_115 = arith.constant 2 : index
    %c0_116 = arith.constant 0 : index
    %c0_117 = arith.constant 0 : index
    %191 = vector.load %arg7[%c2_115, %c0_116, %c0_117] : memref<4x1x128xf32, #tpu.memory_space<vmem>>, vector<1x1x128xf32>
    %192 = vector.shape_cast %191 : vector<1x1x128xf32> to vector<1x128xf32>
    %193 = vector.broadcast %192 : vector<1x128xf32> to vector<128x128xf32>
    %194 = arith.addf %190, %193 : vector<128x128xf32>
    %195 = math.tanh %194 : vector<128x128xf32>
    %196 = vector.broadcast %25 : vector<128x1xf32> to vector<128x128xf32>
    %197 = arith.mulf %195, %196 : vector<128x128xf32>
    %198 = arith.truncf %197 : vector<128x128xf32> to vector<128x128xbf16>
    %c3_118 = arith.constant 3 : index
    %c0_119 = arith.constant 0 : index
    %c0_120 = arith.constant 0 : index
    %199 = vector.load %arg6[%c3_118, %c0_119, %c0_120] : memref<4x128x128xbf16, #tpu.memory_space<vmem>>, vector<1x128x128xbf16>
    %200 = vector.shape_cast %199 : vector<1x128x128xbf16> to vector<128x128xbf16>
    %cst_121 = arith.constant dense<0.000000e+00> : vector<128x128xf32>
    %201 = tpu.matmul %198, %200, %cst_121 {dimension_numbers = #tpu.dot_dimension_numbers<[1], [0], [0], [1], [0, 0, 1, 1], [], []>} : vector<128x128xbf16>, vector<128x128xbf16>, vector<128x128xf32> -> vector<128x128xf32>
    %c3_122 = arith.constant 3 : index
    %c0_123 = arith.constant 0 : index
    %c0_124 = arith.constant 0 : index
    %202 = vector.load %arg7[%c3_122, %c0_123, %c0_124] : memref<4x1x128xf32, #tpu.memory_space<vmem>>, vector<1x1x128xf32>
    %203 = vector.shape_cast %202 : vector<1x1x128xf32> to vector<1x128xf32>
    %204 = vector.broadcast %203 : vector<1x128xf32> to vector<128x128xf32>
    %205 = arith.addf %201, %204 : vector<128x128xf32>
    %206 = math.tanh %205 : vector<128x128xf32>
    %207 = vector.broadcast %25 : vector<128x1xf32> to vector<128x128xf32>
    %208 = arith.mulf %206, %207 : vector<128x128xf32>
    %209 = arith.truncf %208 : vector<128x128xf32> to vector<128x128xbf16>
    %c0_125 = arith.constant 0 : index
    %c0_126 = arith.constant 0 : index
    %c0_127 = arith.constant 0 : index
    %210 = vector.load %arg6[%c0_125, %c0_126, %c0_127] : memref<4x128x128xbf16, #tpu.memory_space<vmem>>, vector<1x128x128xbf16>
    %211 = vector.shape_cast %210 : vector<1x128x128xbf16> to vector<128x128xbf16>
    %cst_128 = arith.constant dense<0.000000e+00> : vector<128x128xf32>
    %212 = tpu.matmul %209, %211, %cst_128 {dimension_numbers = #tpu.dot_dimension_numbers<[1], [0], [0], [1], [0, 0, 1, 1], [], []>} : vector<128x128xbf16>, vector<128x128xbf16>, vector<128x128xf32> -> vector<128x128xf32>
    %c0_129 = arith.constant 0 : index
    %c0_130 = arith.constant 0 : index
    %c0_131 = arith.constant 0 : index
    %213 = vector.load %arg7[%c0_129, %c0_130, %c0_131] : memref<4x1x128xf32, #tpu.memory_space<vmem>>, vector<1x1x128xf32>
    %214 = vector.shape_cast %213 : vector<1x1x128xf32> to vector<1x128xf32>
    %215 = vector.broadcast %214 : vector<1x128xf32> to vector<128x128xf32>
    %216 = arith.addf %212, %215 : vector<128x128xf32>
    %217 = math.tanh %216 : vector<128x128xf32>
    %218 = vector.broadcast %25 : vector<128x1xf32> to vector<128x128xf32>
    %219 = arith.mulf %217, %218 : vector<128x128xf32>
    %220 = arith.truncf %219 : vector<128x128xf32> to vector<128x128xbf16>
    %c1_132 = arith.constant 1 : index
    %c0_133 = arith.constant 0 : index
    %c0_134 = arith.constant 0 : index
    %221 = vector.load %arg6[%c1_132, %c0_133, %c0_134] : memref<4x128x128xbf16, #tpu.memory_space<vmem>>, vector<1x128x128xbf16>
    %222 = vector.shape_cast %221 : vector<1x128x128xbf16> to vector<128x128xbf16>
    %cst_135 = arith.constant dense<0.000000e+00> : vector<128x128xf32>
    %223 = tpu.matmul %220, %222, %cst_135 {dimension_numbers = #tpu.dot_dimension_numbers<[1], [0], [0], [1], [0, 0, 1, 1], [], []>} : vector<128x128xbf16>, vector<128x128xbf16>, vector<128x128xf32> -> vector<128x128xf32>
    %c1_136 = arith.constant 1 : index
    %c0_137 = arith.constant 0 : index
    %c0_138 = arith.constant 0 : index
    %224 = vector.load %arg7[%c1_136, %c0_137, %c0_138] : memref<4x1x128xf32, #tpu.memory_space<vmem>>, vector<1x1x128xf32>
    %225 = vector.shape_cast %224 : vector<1x1x128xf32> to vector<1x128xf32>
    %226 = vector.broadcast %225 : vector<1x128xf32> to vector<128x128xf32>
    %227 = arith.addf %223, %226 : vector<128x128xf32>
    %228 = math.tanh %227 : vector<128x128xf32>
    %229 = vector.broadcast %25 : vector<128x1xf32> to vector<128x128xf32>
    %230 = arith.mulf %228, %229 : vector<128x128xf32>
    %231 = arith.truncf %230 : vector<128x128xf32> to vector<128x128xbf16>
    %c2_139 = arith.constant 2 : index
    %c0_140 = arith.constant 0 : index
    %c0_141 = arith.constant 0 : index
    %232 = vector.load %arg6[%c2_139, %c0_140, %c0_141] : memref<4x128x128xbf16, #tpu.memory_space<vmem>>, vector<1x128x128xbf16>
    %233 = vector.shape_cast %232 : vector<1x128x128xbf16> to vector<128x128xbf16>
    %cst_142 = arith.constant dense<0.000000e+00> : vector<128x128xf32>
    %234 = tpu.matmul %231, %233, %cst_142 {dimension_numbers = #tpu.dot_dimension_numbers<[1], [0], [0], [1], [0, 0, 1, 1], [], []>} : vector<128x128xbf16>, vector<128x128xbf16>, vector<128x128xf32> -> vector<128x128xf32>
    %c2_143 = arith.constant 2 : index
    %c0_144 = arith.constant 0 : index
    %c0_145 = arith.constant 0 : index
    %235 = vector.load %arg7[%c2_143, %c0_144, %c0_145] : memref<4x1x128xf32, #tpu.memory_space<vmem>>, vector<1x1x128xf32>
    %236 = vector.shape_cast %235 : vector<1x1x128xf32> to vector<1x128xf32>
    %237 = vector.broadcast %236 : vector<1x128xf32> to vector<128x128xf32>
    %238 = arith.addf %234, %237 : vector<128x128xf32>
    %239 = math.tanh %238 : vector<128x128xf32>
    %240 = vector.broadcast %25 : vector<128x1xf32> to vector<128x128xf32>
    %241 = arith.mulf %239, %240 : vector<128x128xf32>
    %242 = arith.truncf %241 : vector<128x128xf32> to vector<128x128xbf16>
    %c3_146 = arith.constant 3 : index
    %c0_147 = arith.constant 0 : index
    %c0_148 = arith.constant 0 : index
    %243 = vector.load %arg6[%c3_146, %c0_147, %c0_148] : memref<4x128x128xbf16, #tpu.memory_space<vmem>>, vector<1x128x128xbf16>
    %244 = vector.shape_cast %243 : vector<1x128x128xbf16> to vector<128x128xbf16>
    %cst_149 = arith.constant dense<0.000000e+00> : vector<128x128xf32>
    %245 = tpu.matmul %242, %244, %cst_149 {dimension_numbers = #tpu.dot_dimension_numbers<[1], [0], [0], [1], [0, 0, 1, 1], [], []>} : vector<128x128xbf16>, vector<128x128xbf16>, vector<128x128xf32> -> vector<128x128xf32>
    %c3_150 = arith.constant 3 : index
    %c0_151 = arith.constant 0 : index
    %c0_152 = arith.constant 0 : index
    %246 = vector.load %arg7[%c3_150, %c0_151, %c0_152] : memref<4x1x128xf32, #tpu.memory_space<vmem>>, vector<1x1x128xf32>
    %247 = vector.shape_cast %246 : vector<1x1x128xf32> to vector<1x128xf32>
    %248 = vector.broadcast %247 : vector<1x128xf32> to vector<128x128xf32>
    %249 = arith.addf %245, %248 : vector<128x128xf32>
    %250 = math.tanh %249 : vector<128x128xf32>
    %c0_153 = arith.constant 0 : index
    %c0_154 = arith.constant 0 : index
    %251 = vector.load %arg13[%c0_153, %c0_154] : memref<128x128xf32, #tpu.memory_space<vmem>>, vector<128x128xf32>
    tpu.vector_store %arg13[%c0_153, %c0_154], %250 {strides = array<i32>} : memref<128x128xf32, #tpu.memory_space<vmem>>, vector<128x128xf32>,
    %252 = arith.truncf %250 : vector<128x128xf32> to vector<128x128xbf16>
    %c0_155 = arith.constant 0 : index
    %c0_156 = arith.constant 0 : index
    %253 = vector.load %arg8[%c0_155, %c0_156] : memref<128x128xbf16, #tpu.memory_space<vmem>>, vector<128x128xbf16>
    %cst_157 = arith.constant dense<0.000000e+00> : vector<128x128xf32>
    %254 = tpu.matmul %252, %253, %cst_157 {dimension_numbers = #tpu.dot_dimension_numbers<[1], [0], [0], [1], [0, 0, 1, 1], [], []>} : vector<128x128xbf16>, vector<128x128xbf16>, vector<128x128xf32> -> vector<128x128xf32>
    %c0_158 = arith.constant 0 : index
    %c0_159 = arith.constant 0 : index
    %255 = vector.load %arg9[%c0_158, %c0_159] : memref<1x128xf32, #tpu.memory_space<vmem>>, vector<1x128xf32>
    %256 = vector.broadcast %255 : vector<1x128xf32> to vector<128x128xf32>
    %257 = arith.addf %254, %256 : vector<128x128xf32>
    %c0_160 = arith.constant 0 : index
    %c0_161 = arith.constant 0 : index
    %258 = vector.load %arg14[%c0_160, %c0_161] : memref<128x128xf32, #tpu.memory_space<vmem>>, vector<128x128xf32>
    tpu.vector_store %arg14[%c0_160, %c0_161], %257 {strides = array<i32>} : memref<128x128xf32, #tpu.memory_space<vmem>>, vector<128x128xf32>,
    %c0_162 = arith.constant 0 : index
    %c0_163 = arith.constant 0 : index
    %259 = vector.load %arg10[%c0_162, %c0_163] : memref<128x128xbf16, #tpu.memory_space<vmem>>, vector<128x128xbf16>
    %cst_164 = arith.constant dense<0.000000e+00> : vector<128x128xf32>
    %260 = tpu.matmul %252, %259, %cst_164 {dimension_numbers = #tpu.dot_dimension_numbers<[1], [0], [0], [1], [0, 0, 1, 1], [], []>} : vector<128x128xbf16>, vector<128x128xbf16>, vector<128x128xf32> -> vector<128x128xf32>
    %c0_165 = arith.constant 0 : index
    %c0_166 = arith.constant 0 : index
    %261 = vector.load %arg11[%c0_165, %c0_166] : memref<1x128xf32, #tpu.memory_space<vmem>>, vector<1x128xf32>
    %262 = vector.broadcast %261 : vector<1x128xf32> to vector<128x128xf32>
    %263 = arith.addf %260, %262 : vector<128x128xf32>
    %c0_167 = arith.constant 0 : index
    %c0_168 = arith.constant 0 : index
    %264 = vector.load %arg15[%c0_167, %c0_168] : memref<128x128xf32, #tpu.memory_space<vmem>>, vector<128x128xf32>
    tpu.vector_store %arg15[%c0_167, %c0_168], %263 {strides = array<i32>} : memref<128x128xf32, #tpu.memory_space<vmem>>, vector<128x128xf32>,
    return
  }
  func.func @transform_0(%arg0: i32) -> (i32, i32) {
    %c0_i32 = arith.constant 0 : i32
    %c0_i32_0 = arith.constant 0 : i32
    return %arg0, %c0_i32 : i32, i32
  }
  func.func @transform_1(%arg0: i32) -> (i32, i32) {
    %c0_i32 = arith.constant 0 : i32
    %c0_i32_0 = arith.constant 0 : i32
    %c0_i32_1 = arith.constant 0 : i32
    return %c0_i32, %c0_i32_0 : i32, i32
  }
  func.func @transform_2(%arg0: i32) -> (i32, i32) {
    %c0_i32 = arith.constant 0 : i32
    %c0_i32_0 = arith.constant 0 : i32
    return %arg0, %c0_i32 : i32, i32
  }
  func.func @transform_3(%arg0: i32) -> (i32, i32, i32) {
    %c0_i32 = arith.constant 0 : i32
    %c0_i32_0 = arith.constant 0 : i32
    %c0_i32_1 = arith.constant 0 : i32
    %c0_i32_2 = arith.constant 0 : i32
    return %c0_i32, %c0_i32_0, %c0_i32_1 : i32, i32, i32
  }
  func.func @transform_4(%arg0: i32) -> (i32, i32, i32) {
    %c0_i32 = arith.constant 0 : i32
    %c0_i32_0 = arith.constant 0 : i32
    %c0_i32_1 = arith.constant 0 : i32
    %c0_i32_2 = arith.constant 0 : i32
    return %c0_i32, %c0_i32_0, %c0_i32_1 : i32, i32, i32
  }
  func.func @transform_5(%arg0: i32) -> (i32, i32, i32) {
    %c0_i32 = arith.constant 0 : i32
    %c0_i32_0 = arith.constant 0 : i32
    %c0_i32_1 = arith.constant 0 : i32
    %c0_i32_2 = arith.constant 0 : i32
    return %c0_i32, %c0_i32_0, %c0_i32_1 : i32, i32, i32
  }
  func.func @transform_6(%arg0: i32) -> (i32, i32, i32) {
    %c0_i32 = arith.constant 0 : i32
    %c0_i32_0 = arith.constant 0 : i32
    %c0_i32_1 = arith.constant 0 : i32
    %c0_i32_2 = arith.constant 0 : i32
    return %c0_i32, %c0_i32_0, %c0_i32_1 : i32, i32, i32
  }
  func.func @transform_7(%arg0: i32) -> (i32, i32) {
    %c0_i32 = arith.constant 0 : i32
    %c0_i32_0 = arith.constant 0 : i32
    %c0_i32_1 = arith.constant 0 : i32
    return %c0_i32, %c0_i32_0 : i32, i32
  }
  func.func @transform_8(%arg0: i32) -> (i32, i32) {
    %c0_i32 = arith.constant 0 : i32
    %c0_i32_0 = arith.constant 0 : i32
    %c0_i32_1 = arith.constant 0 : i32
    return %c0_i32, %c0_i32_0 : i32, i32
  }
  func.func @transform_9(%arg0: i32) -> (i32, i32) {
    %c0_i32 = arith.constant 0 : i32
    %c0_i32_0 = arith.constant 0 : i32
    %c0_i32_1 = arith.constant 0 : i32
    return %c0_i32, %c0_i32_0 : i32, i32
  }
  func.func @transform_10(%arg0: i32) -> (i32, i32) {
    %c0_i32 = arith.constant 0 : i32
    %c0_i32_0 = arith.constant 0 : i32
    %c0_i32_1 = arith.constant 0 : i32
    return %c0_i32, %c0_i32_0 : i32, i32
  }
  func.func @transform_11(%arg0: i32) -> (i32, i32) {
    %c0_i32 = arith.constant 0 : i32
    %c0_i32_0 = arith.constant 0 : i32
    return %arg0, %c0_i32 : i32, i32
  }
  func.func @transform_12(%arg0: i32) -> (i32, i32) {
    %c0_i32 = arith.constant 0 : i32
    %c0_i32_0 = arith.constant 0 : i32
    return %arg0, %c0_i32 : i32, i32
  }
  func.func @transform_13(%arg0: i32) -> (i32, i32) {
    %c0_i32 = arith.constant 0 : i32
    %c0_i32_0 = arith.constant 0 : i32
    return %arg0, %c0_i32 : i32, i32
  }
  func.func @transform_14(%arg0: i32) -> (i32, i32) {
    %c0_i32 = arith.constant 0 : i32
    %c0_i32_0 = arith.constant 0 : i32
    return %arg0, %c0_i32 : i32, i32
  }
}

</mosaic_0001>

<llo_original>
// kernel: tpu_custom_call.1
$region0: #{tpu_custom_call.1}
  #allocation0 [shape = 'u32[]', space=smem, size = 0x4, offset = 0x4, fixed_abs, tag = 'smem constant byte address 0x4 - core index']
  #allocation1 [shape = 'u32[144,128]{1,0:T(1,128)}', space=vmem, size = 0x12000, scoped, tag = 'internal scratch']
  %s0 = inlined_call_operand.hbm [shape: f32[128,128], index: 0, kind: input, shape index: {}]
  %s1 = inlined_call_operand.hbm [shape: f32[128,128], index: 1, kind: input, shape index: {}]
  %s2 = inlined_call_operand.hbm [shape: f32[128,128], index: 2, kind: input, shape index: {}]
  %s3 = inlined_call_operand.hbm [shape: bf16[4,128,128], index: 3, kind: input, shape index: {}]
  %s4 = inlined_call_operand.vmem [shape: f32[4,1,128], index: 4, kind: input, shape index: {}]
  %s5 = inlined_call_operand.hbm [shape: bf16[4,128,128], index: 5, kind: input, shape index: {}]
  %s6 = inlined_call_operand.vmem [shape: f32[4,1,128], index: 6, kind: input, shape index: {}]
  %s7 = inlined_call_operand.hbm [shape: bf16[128,128], index: 7, kind: input, shape index: {}]
  %s8 = inlined_call_operand.vmem [shape: f32[1,128], index: 8, kind: input, shape index: {}]
  %s9 = inlined_call_operand.hbm [shape: bf16[128,128], index: 9, kind: input, shape index: {}]
  %s10 = inlined_call_operand.vmem [shape: f32[1,128], index: 10, kind: input, shape index: {}]
  %s11 = inlined_call_operand.hbm [shape: f32[128,128], index: 11, kind: output, shape index: {0}]
  %s12 = inlined_call_operand.hbm [shape: f32[128,128], index: 12, kind: output, shape index: {1}]
  %s13 = inlined_call_operand.hbm [shape: f32[128,128], index: 13, kind: output, shape index: {2}]
  %s14 = inlined_call_operand.hbm [shape: f32[128,128], index: 14, kind: output, shape index: {3}]
  %15 = xla_tuple %s11, %s12, %s13, %s14
  %s16 = sld [smem:[#allocation0]]
  $region106: #{tpu_custom_call.1} parent=0
    _
  %s18 = ssub.s32 1, %s16
  %s19 = scalar_select 0, %s18, %s16
  $region1: #{tpu_custom_call.1} parent=0
    #allocation2 [shape = 'u8[65536]{0}', space=vmem, size = 0x10000, scoped, tag = 'input window, operand 0, single buffered']
    #allocation3 [shape = 's32[1]{0}', space=sflag, size = 0x4, scoped, tag = 'scoped memory for tpu_custom_call.1']
    #allocation4 [shape = 's32[1]{0}', space=sflag, size = 0x4, scoped, tag = 'scoped memory for tpu_custom_call.1']
    #allocation5 [shape = 'u8[65536]{0}', space=vmem, size = 0x10000, scoped, tag = 'input window, operand 1, single buffered']
    #allocation6 [shape = 's32[1]{0}', space=sflag, size = 0x4, scoped, tag = 'scoped memory for tpu_custom_call.1']
    #allocation7 [shape = 'u8[65536]{0}', space=vmem, size = 0x10000, scoped, tag = 'input window, operand 2, single buffered']
    #allocation8 [shape = 'u8[131072]{0}', space=vmem, size = 0x20000, scoped, tag = 'input window, operand 3, single buffered']
    #allocation9 [shape = 's32[1]{0}', space=sflag, size = 0x4, scoped, tag = 'scoped memory for tpu_custom_call.1']
    #allocation10 [shape = 'u8[131072]{0}', space=vmem, size = 0x20000, scoped, tag = 'input window, operand 5, single buffered']
    #allocation11 [shape = 'u8[32768]{0}', space=vmem, size = 0x8000, scoped, tag = 'input window, operand 7, single buffered']
    #allocation12 [shape = 's32[1]{0}', space=sflag, size = 0x4, scoped, tag = 'scoped memory for tpu_custom_call.1']
    #allocation13 [shape = 'u8[32768]{0}', space=vmem, size = 0x8000, scoped, tag = 'input window, operand 9, single buffered']
    #allocation14 [shape = 'u8[65536]{0}', space=vmem, size = 0x10000, scoped, tag = 'output window, operand 0, single buffered']
    #allocation15 [shape = 'u8[65536]{0}', space=vmem, size = 0x10000, scoped, tag = 'output window, operand 1, single buffered']
    #allocation16 [shape = 's32[1]{0}', space=sflag, size = 0x4, scoped, tag = 'scoped memory for tpu_custom_call.1']
    #allocation17 [shape = 'u8[65536]{0}', space=vmem, size = 0x10000, scoped, tag = 'output window, operand 2, single buffered']
    #allocation18 [shape = 'u8[65536]{0}', space=vmem, size = 0x10000, scoped, tag = 'output window, operand 3, single buffered']
    #allocation19 [shape = 's32[1]{0}', space=sflag, size = 0x4, scoped, tag = 'scoped memory for tpu_custom_call.1']
    %20 = vsyncpa [#allocation3], 0
    %21 = vsyncpa [#allocation6], 0
    %22 = vsyncpa [#allocation9], 0
    %23 = vsyncpa [#allocation12], 0
    %24 = vsyncpa [#allocation4], 0
    %25 = vsyncpa [#allocation16], 0
    %26 = vsyncpa [#allocation19], 0
    // Predicated region
    $region2: #{tpu_custom_call.1} parent=1 // pred_check
      _
    $region3: #{tpu_custom_call.1} parent=1 // pred_check_branch
      %28 = sbr.rel (0) target = $region5
    $region4: #{tpu_custom_call.1} parent=1 // pred_region
      %s30 = ssub.s32 2048, 2048
      %31 = vsyncadd [#allocation3], %s30
      %s32 = sshll.u32 [#allocation2], 4
      %s33 = int_to_ptr.vmem [resolvable:$true] %s32
      %38 = dma.hbm_to_vmem [thread:$0]  %s0, 2048, %s33, [#allocation3], 128, 128, 8
    $region5: #{tpu_custom_call.1} parent=1 // pred_fallthru
      _
    // Predicated region
    $region6: #{tpu_custom_call.1} parent=1 // pred_check
      _
    $region7: #{tpu_custom_call.1} parent=1 // pred_check_branch
      %40 = sbr.rel (0) target = $region9
    $region8: #{tpu_custom_call.1} parent=1 // pred_region
      %s42 = ssub.s32 2048, 2048
      %43 = vsyncadd [#allocation6], %s42
      %s44 = sshll.u32 [#allocation5], 4
      %s45 = int_to_ptr.vmem [resolvable:$true] %s44
      %50 = dma.hbm_to_vmem [thread:$0]  %s1, 2048, %s45, [#allocation6], 128, 128, 8
    $region9: #{tpu_custom_call.1} parent=1 // pred_fallthru
      _
    // Predicated region
    $region10: #{tpu_custom_call.1} parent=1 // pred_check
      _
    $region11: #{tpu_custom_call.1} parent=1 // pred_check_branch
      %52 = sbr.rel (0) target = $region13
    $region12: #{tpu_custom_call.1} parent=1 // pred_region
      %s54 = ssub.s32 2048, 2048
      %55 = vsyncadd [#allocation6], %s54
      %s56 = sshll.u32 [#allocation7], 4
      %s57 = int_to_ptr.vmem [resolvable:$true] %s56
      %62 = dma.hbm_to_vmem [thread:$0]  %s2, 2048, %s57, [#allocation6], 128, 128, 8
    $region13: #{tpu_custom_call.1} parent=1 // pred_fallthru
      _
    // Predicated region
    $region14: #{tpu_custom_call.1} parent=1 // pred_check
      _
    $region15: #{tpu_custom_call.1} parent=1 // pred_check_branch
      %64 = sbr.rel (0) target = $region17
    $region16: #{tpu_custom_call.1} parent=1 // pred_region
      %s66 = ssub.s32 4096, 4096
      %67 = vsyncadd [#allocation9], %s66
      %s68 = sshll.u32 [#allocation8], 4
      %s69 = int_to_ptr.vmem [resolvable:$true] %s68
      %74 = dma.hbm_to_vmem [thread:$0]  %s3, 4096, %s69, [#allocation9], 64, 64, 4
    $region17: #{tpu_custom_call.1} parent=1 // pred_fallthru
      _
    // Predicated region
    $region18: #{tpu_custom_call.1} parent=1 // pred_check
      _
    $region19: #{tpu_custom_call.1} parent=1 // pred_check_branch
      %76 = sbr.rel (0) target = $region21
    $region20: #{tpu_custom_call.1} parent=1 // pred_region
      _
    $region21: #{tpu_custom_call.1} parent=1 // pred_fallthru
      _
    // Predicated region
    $region22: #{tpu_custom_call.1} parent=1 // pred_check
      _
    $region23: #{tpu_custom_call.1} parent=1 // pred_check_branch
      %78 = sbr.rel (0) target = $region25
    $region24: #{tpu_custom_call.1} parent=1 // pred_region
      %s80 = ssub.s32 4096, 4096
      %81 = vsyncadd [#allocation9], %s80
      %s82 = sshll.u32 [#allocation10], 4
      %s83 = int_to_ptr.vmem [resolvable:$true] %s82
      %88 = dma.hbm_to_vmem [thread:$0]  %s5, 4096, %s83, [#allocation9], 64, 64, 4
    $region25: #{tpu_custom_call.1} parent=1 // pred_fallthru
      _
    // Predicated region
    $region26: #{tpu_custom_call.1} parent=1 // pred_check
      _
    $region27: #{tpu_custom_call.1} parent=1 // pred_check_branch
      %90 = sbr.rel (0) target = $region29
    $region28: #{tpu_custom_call.1} parent=1 // pred_region
      _
    $region29: #{tpu_custom_call.1} parent=1 // pred_fallthru
      _
    // Predicated region
    $region30: #{tpu_custom_call.1} parent=1 // pred_check
      _
    $region31: #{tpu_custom_call.1} parent=1 // pred_check_branch
      %92 = sbr.rel (0) target = $region33
    $region32: #{tpu_custom_call.1} parent=1 // pred_region
      %s94 = ssub.s32 1024, 1024
      %95 = vsyncadd [#allocation12], %s94
      %s96 = sshll.u32 [#allocation11], 4
      %s97 = int_to_ptr.vmem [resolvable:$true] %s96
      %102 = dma.hbm_to_vmem [thread:$0]  %s7, 1024, %s97, [#allocation12], 64, 64, 4
    $region33: #{tpu_custom_call.1} parent=1 // pred_fallthru
      _
    // Predicated region
    $region34: #{tpu_custom_call.1} parent=1 // pred_check
      _
    $region35: #{tpu_custom_call.1} parent=1 // pred_check_branch
      %104 = sbr.rel (0) target = $region37
    $region36: #{tpu_custom_call.1} parent=1 // pred_region
      _
    $region37: #{tpu_custom_call.1} parent=1 // pred_fallthru
      _
    // Predicated region
    $region38: #{tpu_custom_call.1} parent=1 // pred_check
      _
    $region39: #{tpu_custom_call.1} parent=1 // pred_check_branch
      %106 = sbr.rel (0) target = $region41
    $region40: #{tpu_custom_call.1} parent=1 // pred_region
      %s108 = ssub.s32 1024, 1024
      %109 = vsyncadd [#allocation12], %s108
      %s110 = sshll.u32 [#allocation13], 4
      %s111 = int_to_ptr.vmem [resolvable:$true] %s110
      %116 = dma.hbm_to_vmem [thread:$0]  %s9, 1024, %s111, [#allocation12], 64, 64, 4
    $region41: #{tpu_custom_call.1} parent=1 // pred_fallthru
      _
    // Predicated region
    $region42: #{tpu_custom_call.1} parent=1 // pred_check
      _
    $region43: #{tpu_custom_call.1} parent=1 // pred_check_branch
      %118 = sbr.rel (0) target = $region45
    $region44: #{tpu_custom_call.1} parent=1 // pred_region
      _
    $region45: #{tpu_custom_call.1} parent=1 // pred_fallthru
      _
    // Predicated region
    $region46: #{tpu_custom_call.1} parent=1 // pred_check
      _
    $region47: #{tpu_custom_call.1} parent=1 // pred_check_branch
      %120 = sbr.rel (0) target = $region49
    $region48: #{tpu_custom_call.1} parent=1 // pred_region
      %121 = dma.done [#allocation3], 2048
    $region49: #{tpu_custom_call.1} parent=1 // pred_fallthru
      _
    // Predicated region
    $region50: #{tpu_custom_call.1} parent=1 // pred_check
      _
    $region51: #{tpu_custom_call.1} parent=1 // pred_check_branch
      %123 = sbr.rel (0) target = $region53
    $region52: #{tpu_custom_call.1} parent=1 // pred_region
      %124 = dma.done [#allocation6], 2048
    $region53: #{tpu_custom_call.1} parent=1 // pred_fallthru
      _
    // Predicated region
    $region54: #{tpu_custom_call.1} parent=1 // pred_check
      _
    $region55: #{tpu_custom_call.1} parent=1 // pred_check_branch
      %126 = sbr.rel (0) target = $region57
    $region56: #{tpu_custom_call.1} parent=1 // pred_region
      %127 = dma.done [#allocation6], 2048
    $region57: #{tpu_custom_call.1} parent=1 // pred_fallthru
      _
    // Predicated region
    $region58: #{tpu_custom_call.1} parent=1 // pred_check
      _
    $region59: #{tpu_custom_call.1} parent=1 // pred_check_branch
      %129 = sbr.rel (0) target = $region61
    $region60: #{tpu_custom_call.1} parent=1 // pred_region
      %130 = dma.done [#allocation9], 4096
    $region61: #{tpu_custom_call.1} parent=1 // pred_fallthru
      _
    // Predicated region
    $region62: #{tpu_custom_call.1} parent=1 // pred_check
      _
    $region63: #{tpu_custom_call.1} parent=1 // pred_check_branch
      %132 = sbr.rel (0) target = $region65
    $region64: #{tpu_custom_call.1} parent=1 // pred_region
      %133 = dma.done [#allocation9], 4096
    $region65: #{tpu_custom_call.1} parent=1 // pred_fallthru
      _
    // Predicated region
    $region66: #{tpu_custom_call.1} parent=1 // pred_check
      _
    $region67: #{tpu_custom_call.1} parent=1 // pred_check_branch
      %135 = sbr.rel (0) target = $region69
    $region68: #{tpu_custom_call.1} parent=1 // pred_region
      %136 = dma.done [#allocation12], 1024
    $region69: #{tpu_custom_call.1} parent=1 // pred_fallthru
      _
    // Predicated region
    $region70: #{tpu_custom_call.1} parent=1 // pred_check
      _
    $region71: #{tpu_custom_call.1} parent=1 // pred_check_branch
      %138 = sbr.rel (0) target = $region73
    $region72: #{tpu_custom_call.1} parent=1 // pred_region
      %139 = dma.done [#allocation12], 1024
    $region73: #{tpu_custom_call.1} parent=1 // pred_fallthru
      _
    %s141 = smul.u32 0, 128
    %v142 = vlaneseq
    %v143 = vshrl.u32 %v142, 7
    %v144 = vadd.s32 %v143, 8
    %v145 = vadd.s32 %v143, 16
    %v146 = vadd.s32 %v143, 24
    %v147 = vadd.s32 %v143, 32
    %v148 = vadd.s32 %v143, 40
    %v149 = vadd.s32 %v143, 48
    %v150 = vadd.s32 %v143, 56
    %v151 = vadd.s32 %v143, 64
    %v152 = vadd.s32 %v143, 72
    %v153 = vadd.s32 %v143, 80
    %v154 = vadd.s32 %v143, 88
    %v155 = vadd.s32 %v143, 96
    %v156 = vadd.s32 %v143, 104
    %v157 = vadd.s32 %v143, 112
    %v158 = vadd.s32 %v143, 120
    %v159 = vstv %s141
    %v160 = vadd.s32 %v143, %v159
    %v161 = vadd.s32 %v144, %v159
    %v162 = vadd.s32 %v145, %v159
    %v163 = vadd.s32 %v146, %v159
    %v164 = vadd.s32 %v147, %v159
    %v165 = vadd.s32 %v148, %v159
    %v166 = vadd.s32 %v149, %v159
    %v167 = vadd.s32 %v150, %v159
    %v168 = vadd.s32 %v151, %v159
    %v169 = vadd.s32 %v152, %v159
    %v170 = vadd.s32 %v153, %v159
    %v171 = vadd.s32 %v154, %v159
    %v172 = vadd.s32 %v155, %v159
    %v173 = vadd.s32 %v156, %v159
    %v174 = vadd.s32 %v157, %v159
    %v175 = vadd.s32 %v158, %v159
    %vm176 = vcmp.lt.s32.totalorder %v160, 0
    %v177 = vsub.s32 0, %v160
    %v178 = vsel %vm176, %v177, %v160
    %v179 = vshrl.u32 %v178, 6
    %v180 = vand.u32 %v178, 63
    %v181 = vsub.s32 0, %v180
    %v182 = vsel %vm176, %v181, %v180
    %vm183 = vcmp.lt.s32.totalorder %v161, 0
    %v184 = vsub.s32 0, %v161
    %v185 = vsel %vm183, %v184, %v161
    %v186 = vshrl.u32 %v185, 6
    %v187 = vand.u32 %v185, 63
    %v188 = vsub.s32 0, %v187
    %v189 = vsel %vm183, %v188, %v187
    %vm190 = vcmp.lt.s32.totalorder %v162, 0
    %v191 = vsub.s32 0, %v162
    %v192 = vsel %vm190, %v191, %v162
    %v193 = vshrl.u32 %v192, 6
    %v194 = vand.u32 %v192, 63
    %v195 = vsub.s32 0, %v194
    %v196 = vsel %vm190, %v195, %v194
    %vm197 = vcmp.lt.s32.totalorder %v163, 0
    %v198 = vsub.s32 0, %v163
    %v199 = vsel %vm197, %v198, %v163
    %v200 = vshrl.u32 %v199, 6
    %v201 = vand.u32 %v199, 63
    %v202 = vsub.s32 0, %v201
    %v203 = vsel %vm197, %v202, %v201
    %vm204 = vcmp.lt.s32.totalorder %v164, 0
    %v205 = vsub.s32 0, %v164
    %v206 = vsel %vm204, %v205, %v164
    %v207 = vshrl.u32 %v206, 6
    %v208 = vand.u32 %v206, 63
    %v209 = vsub.s32 0, %v208
    %v210 = vsel %vm204, %v209, %v208
    %vm211 = vcmp.lt.s32.totalorder %v165, 0
    %v212 = vsub.s32 0, %v165
    %v213 = vsel %vm211, %v212, %v165
    %v214 = vshrl.u32 %v213, 6
    %v215 = vand.u32 %v213, 63
    %v216 = vsub.s32 0, %v215
    %v217 = vsel %vm211, %v216, %v215
    %vm218 = vcmp.lt.s32.totalorder %v166, 0
    %v219 = vsub.s32 0, %v166
    %v220 = vsel %vm218, %v219, %v166
    %v221 = vshrl.u32 %v220, 6
    %v222 = vand.u32 %v220, 63
    %v223 = vsub.s32 0, %v222
    %v224 = vsel %vm218, %v223, %v222
    %vm225 = vcmp.lt.s32.totalorder %v167, 0
    %v226 = vsub.s32 0, %v167
    %v227 = vsel %vm225, %v226, %v167
    %v228 = vshrl.u32 %v227, 6
    %v229 = vand.u32 %v227, 63
    %v230 = vsub.s32 0, %v229
    %v231 = vsel %vm225, %v230, %v229
    %vm232 = vcmp.lt.s32.totalorder %v168, 0
    %v233 = vsub.s32 0, %v168
    %v234 = vsel %vm232, %v233, %v168
    %v235 = vshrl.u32 %v234, 6
    %v236 = vand.u32 %v234, 63
    %v237 = vsub.s32 0, %v236
    %v238 = vsel %vm232, %v237, %v236
    %vm239 = vcmp.lt.s32.totalorder %v169, 0
    %v240 = vsub.s32 0, %v169
    %v241 = vsel %vm239, %v240, %v169
    %v242 = vshrl.u32 %v241, 6
    %v243 = vand.u32 %v241, 63
    %v244 = vsub.s32 0, %v243
    %v245 = vsel %vm239, %v244, %v243
    %vm246 = vcmp.lt.s32.totalorder %v170, 0
    %v247 = vsub.s32 0, %v170
    %v248 = vsel %vm246, %v247, %v170
    %v249 = vshrl.u32 %v248, 6
    %v250 = vand.u32 %v248, 63
    %v251 = vsub.s32 0, %v250
    %v252 = vsel %vm246, %v251, %v250
    %vm253 = vcmp.lt.s32.totalorder %v171, 0
    %v254 = vsub.s32 0, %v171
    %v255 = vsel %vm253, %v254, %v171
    %v256 = vshrl.u32 %v255, 6
    %v257 = vand.u32 %v255, 63
    %v258 = vsub.s32 0, %v257
    %v259 = vsel %vm253, %v258, %v257
    %vm260 = vcmp.lt.s32.totalorder %v172, 0
    %v261 = vsub.s32 0, %v172
    %v262 = vsel %vm260, %v261, %v172
    %v263 = vshrl.u32 %v262, 6
    %v264 = vand.u32 %v262, 63
    %v265 = vsub.s32 0, %v264
    %v266 = vsel %vm260, %v265, %v264
    %vm267 = vcmp.lt.s32.totalorder %v173, 0
    %v268 = vsub.s32 0, %v173
    %v269 = vsel %vm267, %v268, %v173
    %v270 = vshrl.u32 %v269, 6
    %v271 = vand.u32 %v269, 63
    %v272 = vsub.s32 0, %v271
    %v273 = vsel %vm267, %v272, %v271
    %vm274 = vcmp.lt.s32.totalorder %v174, 0
    %v275 = vsub.s32 0, %v174
    %v276 = vsel %vm274, %v275, %v174
    %v277 = vshrl.u32 %v276, 6
    %v278 = vand.u32 %v276, 63
    %v279 = vsub.s32 0, %v278
    %v280 = vsel %vm274, %v279, %v278
    %vm281 = vcmp.lt.s32.totalorder %v175, 0
    %v282 = vsub.s32 0, %v175
    %v283 = vsel %vm281, %v282, %v175
    %v284 = vshrl.u32 %v283, 6
    %v285 = vand.u32 %v283, 63
    %v286 = vsub.s32 0, %v285
    %v287 = vsel %vm281, %v286, %v285
    %vm288 = vcmp.ne.s32.totalorder %v182, 0
    %vm289 = vcmp.ne.s32.totalorder %v189, 0
    %vm290 = vcmp.ne.s32.totalorder %v196, 0
    %vm291 = vcmp.ne.s32.totalorder %v203, 0
    %vm292 = vcmp.ne.s32.totalorder %v210, 0
    %vm293 = vcmp.ne.s32.totalorder %v217, 0
    %vm294 = vcmp.ne.s32.totalorder %v224, 0
    %vm295 = vcmp.ne.s32.totalorder %v231, 0
    %vm296 = vcmp.ne.s32.totalorder %v238, 0
    %vm297 = vcmp.ne.s32.totalorder %v245, 0
    %vm298 = vcmp.ne.s32.totalorder %v252, 0
    %vm299 = vcmp.ne.s32.totalorder %v259, 0
    %vm300 = vcmp.ne.s32.totalorder %v266, 0
    %vm301 = vcmp.ne.s32.totalorder %v273, 0
    %vm302 = vcmp.ne.s32.totalorder %v280, 0
    %vm303 = vcmp.ne.s32.totalorder %v287, 0
    %vm304 = vcmp.lt.s32.totalorder %v182, 0
    %vm305 = vcmp.lt.s32.totalorder %v189, 0
    %vm306 = vcmp.lt.s32.totalorder %v196, 0
    %vm307 = vcmp.lt.s32.totalorder %v203, 0
    %vm308 = vcmp.lt.s32.totalorder %v210, 0
    %vm309 = vcmp.lt.s32.totalorder %v217, 0
    %vm310 = vcmp.lt.s32.totalorder %v224, 0
    %vm311 = vcmp.lt.s32.totalorder %v231, 0
    %vm312 = vcmp.lt.s32.totalorder %v238, 0
    %vm313 = vcmp.lt.s32.totalorder %v245, 0
    %vm314 = vcmp.lt.s32.totalorder %v252, 0
    %vm315 = vcmp.lt.s32.totalorder %v259, 0
    %vm316 = vcmp.lt.s32.totalorder %v266, 0
    %vm317 = vcmp.lt.s32.totalorder %v273, 0
    %vm318 = vcmp.lt.s32.totalorder %v280, 0
    %vm319 = vcmp.lt.s32.totalorder %v287, 0
    %vm320 = vmand %vm304, %vm288
    %vm321 = vmand %vm305, %vm289
    %vm322 = vmand %vm306, %vm290
    %vm323 = vmand %vm307, %vm291
    %vm324 = vmand %vm308, %vm292
    %vm325 = vmand %vm309, %vm293
    %vm326 = vmand %vm310, %vm294
    %vm327 = vmand %vm311, %vm295
    %vm328 = vmand %vm312, %vm296
    %vm329 = vmand %vm313, %vm297
    %vm330 = vmand %vm314, %vm298
    %vm331 = vmand %vm315, %vm299
    %vm332 = vmand %vm316, %vm300
    %vm333 = vmand %vm317, %vm301
    %vm334 = vmand %vm318, %vm302
    %vm335 = vmand %vm319, %vm303
    %v336 = vadd.s32 %v182, 64
    %v337 = vadd.s32 %v189, 64
    %v338 = vadd.s32 %v196, 64
    %v339 = vadd.s32 %v203, 64
    %v340 = vadd.s32 %v210, 64
    %v341 = vadd.s32 %v217, 64
    %v342 = vadd.s32 %v224, 64
    %v343 = vadd.s32 %v231, 64
    %v344 = vadd.s32 %v238, 64
    %v345 = vadd.s32 %v245, 64
    %v346 = vadd.s32 %v252, 64
    %v347 = vadd.s32 %v259, 64
    %v348 = vadd.s32 %v266, 64
    %v349 = vadd.s32 %v273, 64
    %v350 = vadd.s32 %v280, 64
    %v351 = vadd.s32 %v287, 64
    %v352 = vsel %vm320, %v336, %v182
    %v353 = vsel %vm321, %v337, %v189
    %v354 = vsel %vm322, %v338, %v196
    %v355 = vsel %vm323, %v339, %v203
    %v356 = vsel %vm324, %v340, %v210
    %v357 = vsel %vm325, %v341, %v217
    %v358 = vsel %vm326, %v342, %v224
    %v359 = vsel %vm327, %v343, %v231
    %v360 = vsel %vm328, %v344, %v238
    %v361 = vsel %vm329, %v345, %v245
    %v362 = vsel %vm330, %v346, %v252
    %v363 = vsel %vm331, %v347, %v259
    %v364 = vsel %vm332, %v348, %v266
    %v365 = vsel %vm333, %v349, %v273
    %v366 = vsel %vm334, %v350, %v280
    %v367 = vsel %vm335, %v351, %v287
    %v368 = vcvt.s32.f32 %v352
    %v369 = vcvt.s32.f32 %v353
    %v370 = vcvt.s32.f32 %v354
    %v371 = vcvt.s32.f32 %v355
    %v372 = vcvt.s32.f32 %v356
    %v373 = vcvt.s32.f32 %v357
    %v374 = vcvt.s32.f32 %v358
    %v375 = vcvt.s32.f32 %v359
    %v376 = vcvt.s32.f32 %v360
    %v377 = vcvt.s32.f32 %v361
    %v378 = vcvt.s32.f32 %v362
    %v379 = vcvt.s32.f32 %v363
    %v380 = vcvt.s32.f32 %v364
    %v381 = vcvt.s32.f32 %v365
    %v382 = vcvt.s32.f32 %v366
    %v383 = vcvt.s32.f32 %v367
    %v384 = vsub.f32 0.0, %v368
    %v385 = vsub.f32 0.0, %v369
    %v386 = vsub.f32 0.0, %v370
    %v387 = vsub.f32 0.0, %v371
    %v388 = vsub.f32 0.0, %v372
    %v389 = vsub.f32 0.0, %v373
    %v390 = vsub.f32 0.0, %v374
    %v391 = vsub.f32 0.0, %v375
    %v392 = vsub.f32 0.0, %v376
    %v393 = vsub.f32 0.0, %v377
    %v394 = vsub.f32 0.0, %v378
    %v395 = vsub.f32 0.0, %v379
    %v396 = vsub.f32 0.0, %v380
    %v397 = vsub.f32 0.0, %v381
    %v398 = vsub.f32 0.0, %v382
    %v399 = vsub.f32 0.0, %v383
    %v400 = vmul.f32 %v384, 0.015625
    %v401 = vmul.f32 %v385, 0.015625
    %v402 = vmul.f32 %v386, 0.015625
    %v403 = vmul.f32 %v387, 0.015625
    %v404 = vmul.f32 %v388, 0.015625
    %v405 = vmul.f32 %v389, 0.015625
    %v406 = vmul.f32 %v390, 0.015625
    %v407 = vmul.f32 %v391, 0.015625
    %v408 = vmul.f32 %v392, 0.015625
    %v409 = vmul.f32 %v393, 0.015625
    %v410 = vmul.f32 %v394, 0.015625
    %v411 = vmul.f32 %v395, 0.015625
    %v412 = vmul.f32 %v396, 0.015625
    %v413 = vmul.f32 %v397, 0.015625
    %v414 = vmul.f32 %v398, 0.015625
    %v415 = vmul.f32 %v399, 0.015625
    %v416 = vmul.f32 %v400, 1.442695
    %v417 = vpow.pop %v416
    %v418 = vmul.f32 %v401, 1.442695
    %v419 = vpow.pop %v418
    %v420 = vmul.f32 %v402, 1.442695
    %v421 = vpow.pop %v420
    %v422 = vmul.f32 %v403, 1.442695
    %v423 = vpow.pop %v422
    %v424 = vmul.f32 %v404, 1.442695
    %v425 = vpow.pop %v424
    %v426 = vmul.f32 %v405, 1.442695
    %v427 = vpow.pop %v426
    %v428 = vmul.f32 %v406, 1.442695
    %v429 = vpow.pop %v428
    %v430 = vmul.f32 %v407, 1.442695
    %v431 = vpow.pop %v430
    %v432 = vmul.f32 %v408, 1.442695
    %v433 = vpow.pop %v432
    %v434 = vmul.f32 %v409, 1.442695
    %v435 = vpow.pop %v434
    %v436 = vmul.f32 %v410, 1.442695
    %v437 = vpow.pop %v436
    %v438 = vmul.f32 %v411, 1.442695
    %v439 = vpow.pop %v438
    %v440 = vmul.f32 %v412, 1.442695
    %v441 = vpow.pop %v440
    %v442 = vmul.f32 %v413, 1.442695
    %v443 = vpow.pop %v442
    %v444 = vmul.f32 %v414, 1.442695
    %v445 = vpow.pop %v444
    %v446 = vmul.f32 %v415, 1.442695
    %v447 = vpow.pop %v446
    %v448 = vld [vmem:[#allocation2] sm:$0xff]
    %v449 = vld [vmem:[#allocation2 + $0x8] sm:$0xff]
    %v450 = vld [vmem:[#allocation2 + $0x10] sm:$0xff]
    %v451 = vld [vmem:[#allocation2 + $0x18] sm:$0xff]
    %v452 = vld [vmem:[#allocation2 + $0x20] sm:$0xff]
    %v453 = vld [vmem:[#allocation2 + $0x28] sm:$0xff]
    %v454 = vld [vmem:[#allocation2 + $0x30] sm:$0xff]
    %v455 = vld [vmem:[#allocation2 + $0x38] sm:$0xff]
    %v456 = vld [vmem:[#allocation2 + $0x40] sm:$0xff]
    %v457 = vld [vmem:[#allocation2 + $0x48] sm:$0xff]
    %v458 = vld [vmem:[#allocation2 + $0x50] sm:$0xff]
    %v459 = vld [vmem:[#allocation2 + $0x58] sm:$0xff]
    %v460 = vld [vmem:[#allocation2 + $0x60] sm:$0xff]
    %v461 = vld [vmem:[#allocation2 + $0x68] sm:$0xff]
    %v462 = vld [vmem:[#allocation2 + $0x70] sm:$0xff]
    %v463 = vld [vmem:[#allocation2 + $0x78] sm:$0xff]
    %v464 = vld [vmem:[#allocation5] sm:$0xff]
    %v465 = vld [vmem:[#allocation5 + $0x8] sm:$0xff]
    %v466 = vld [vmem:[#allocation5 + $0x10] sm:$0xff]
    %v467 = vld [vmem:[#allocation5 + $0x18] sm:$0xff]
    %v468 = vld [vmem:[#allocation5 + $0x20] sm:$0xff]
    %v469 = vld [vmem:[#allocation5 + $0x28] sm:$0xff]
    %v470 = vld [vmem:[#allocation5 + $0x30] sm:$0xff]
    %v471 = vld [vmem:[#allocation5 + $0x38] sm:$0xff]
    %v472 = vld [vmem:[#allocation5 + $0x40] sm:$0xff]
    %v473 = vld [vmem:[#allocation5 + $0x48] sm:$0xff]
    %v474 = vld [vmem:[#allocation5 + $0x50] sm:$0xff]
    %v475 = vld [vmem:[#allocation5 + $0x58] sm:$0xff]
    %v476 = vld [vmem:[#allocation5 + $0x60] sm:$0xff]
    %v477 = vld [vmem:[#allocation5 + $0x68] sm:$0xff]
    %v478 = vld [vmem:[#allocation5 + $0x70] sm:$0xff]
    %v479 = vld [vmem:[#allocation5 + $0x78] sm:$0xff]
    %v480 = vadd.f32 %v448, %v464
    %v481 = vadd.f32 %v449, %v465
    %v482 = vadd.f32 %v450, %v466
    %v483 = vadd.f32 %v451, %v467
    %v484 = vadd.f32 %v452, %v468
    %v485 = vadd.f32 %v453, %v469
    %v486 = vadd.f32 %v454, %v470
    %v487 = vadd.f32 %v455, %v471
    %v488 = vadd.f32 %v456, %v472
    %v489 = vadd.f32 %v457, %v473
    %v490 = vadd.f32 %v458, %v474
    %v491 = vadd.f32 %v459, %v475
    %v492 = vadd.f32 %v460, %v476
    %v493 = vadd.f32 %v461, %v477
    %v494 = vadd.f32 %v462, %v478
    %v495 = vadd.f32 %v463, %v479
    %v496 = vpack.c.bf16 %v481, %v480
    %v497 = vpack.c.bf16 %v483, %v482
    %v498 = vpack.c.bf16 %v485, %v484
    %v499 = vpack.c.bf16 %v487, %v486
    %v500 = vpack.c.bf16 %v489, %v488
    %v501 = vpack.c.bf16 %v491, %v490
    %v502 = vpack.c.bf16 %v493, %v492
    %v503 = vpack.c.bf16 %v495, %v494
    %v504 = vld [vmem:[#allocation8] sm:$0xf]
    %v505 = vld [vmem:[#allocation8 + $0x4] sm:$0xf]
    %v506 = vld [vmem:[#allocation8 + $0x8] sm:$0xf]
    %v507 = vld [vmem:[#allocation8 + $0xc] sm:$0xf]
    %v508 = vld [vmem:[#allocation8 + $0x10] sm:$0xf]
    %v509 = vld [vmem:[#allocation8 + $0x14] sm:$0xf]
    %v510 = vld [vmem:[#allocation8 + $0x18] sm:$0xf]
    %v511 = vld [vmem:[#allocation8 + $0x1c] sm:$0xf]
    %v512 = vld [vmem:[#allocation8 + $0x20] sm:$0xf]
    %v513 = vld [vmem:[#allocation8 + $0x24] sm:$0xf]
    %v514 = vld [vmem:[#allocation8 + $0x28] sm:$0xf]
    %v515 = vld [vmem:[#allocation8 + $0x2c] sm:$0xf]
    %v516 = vld [vmem:[#allocation8 + $0x30] sm:$0xf]
    %v517 = vld [vmem:[#allocation8 + $0x34] sm:$0xf]
    %v518 = vld [vmem:[#allocation8 + $0x38] sm:$0xf]
    %v519 = vld [vmem:[#allocation8 + $0x3c] sm:$0xf]
    %v520 = vld [vmem:[%s4] sm:$0x1]
    %v522 = vlaneseq
    %v523 = vshrl.u32 %v522, 7
    %v524 = vsub.s32 0, %v523
    %v525 = vrot.slane %v520, %v524
    %v543 = vunpack.c.l.b16 %v504
    %v544 = vunpack.c.l.b16 %v505
    %v545 = vunpack.c.l.b16 %v506
    %v546 = vunpack.c.l.b16 %v507
    %v547 = vunpack.c.l.b16 %v508
    %v548 = vunpack.c.l.b16 %v509
    %v549 = vunpack.c.l.b16 %v510
    %v550 = vunpack.c.l.b16 %v511
    %v551 = vunpack.c.l.b16 %v512
    %v552 = vunpack.c.l.b16 %v513
    %v553 = vunpack.c.l.b16 %v514
    %v554 = vunpack.c.l.b16 %v515
    %v555 = vunpack.c.l.b16 %v516
    %v556 = vunpack.c.l.b16 %v517
    %v557 = vunpack.c.l.b16 %v518
    %v558 = vunpack.c.l.b16 %v519
    %v559 = vpack.c.b16 %v544, %v543
    %v560 = vpack.c.b16 %v546, %v545
    %v561 = vpack.c.b16 %v548, %v547
    %v562 = vpack.c.b16 %v550, %v549
    %v563 = vpack.c.b16 %v552, %v551
    %v564 = vpack.c.b16 %v554, %v553
    %v565 = vpack.c.b16 %v556, %v555
    %v566 = vpack.c.b16 %v558, %v557
    %575 = vmatprep.subr.bf16.mxu0 0
    %576 = vmatpush1.bf16.msra.mxu0 %v559
    %577 = vmatprep.subr.bf16.mxu0 0
    %578 = vmatpush1.bf16.msra.mxu0 %v560
    %579 = vmatprep.subr.bf16.mxu0 0
    %580 = vmatpush1.bf16.msra.mxu0 %v561
    %581 = vmatprep.subr.bf16.mxu0 0
    %582 = vmatpush1.bf16.msra.mxu0 %v562
    %583 = vmatprep.subr.bf16.mxu0 0
    %584 = vmatpush1.bf16.msra.mxu0 %v563
    %585 = vmatprep.subr.bf16.mxu0 0
    %586 = vmatpush1.bf16.msra.mxu0 %v564
    %587 = vmatprep.subr.bf16.mxu0 0
    %588 = vmatpush1.bf16.msra.mxu0 %v565
    %589 = vmatprep.subr.bf16.mxu0 0
    %590 = vmatpush1.bf16.msra.mxu0 %v566
    %591 = vmatprep.subr.bf16.mxu0 0
    %592 = vmatpush1.bf16.msra.mxu0 0
    %593 = vmatprep.subr.bf16.mxu0 0
    %594 = vmatpush1.bf16.msra.mxu0 0
    %595 = vmatprep.subr.bf16.mxu0 0
    %596 = vmatpush1.bf16.msra.mxu0 0
    %597 = vmatprep.subr.bf16.mxu0 0
    %598 = vmatpush1.bf16.msra.mxu0 0
    %599 = vmatprep.subr.bf16.mxu0 0
    %600 = vmatpush1.bf16.msra.mxu0 0
    %601 = vmatprep.subr.bf16.mxu0 0
    %602 = vmatpush1.bf16.msra.mxu0 0
    %603 = vmatprep.subr.bf16.mxu0 0
    %604 = vmatpush1.bf16.msra.mxu0 0
    %605 = vmatprep.subr.bf16.mxu0 0
    %606 = vmatpush1.bf16.msra.mxu0 0
    %607 = vmatprep.mubr.bf16.mxu0 0
    %608 = vmatmul.mubr.bf16.gmra.mrb[0].mxu0 %v496
    %v609 = vpop.f32.mrb[0].mxu0
    %v610 = vadd.f32 %v525, %v609
    %v611 = vpop.f32.mrb[0].mxu0
    %v612 = vpop.f32.mrb[0].mxu0
    %v613 = vadd.f32 %v525, %v612
    %v614 = vpop.f32.mrb[0].mxu0
    %615 = vmatprep.mubr.bf16.mxu0 0
    %616 = vmatmul.mubr.bf16.gmra.mrb[0].mxu0 %v497
    %v617 = vpop.f32.mrb[0].mxu0
    %v618 = vadd.f32 %v525, %v617
    %v619 = vpop.f32.mrb[0].mxu0
    %v620 = vpop.f32.mrb[0].mxu0
    %v621 = vadd.f32 %v525, %v620
    %v622 = vpop.f32.mrb[0].mxu0
    %623 = vmatprep.mubr.bf16.mxu0 0
    %624 = vmatmul.mubr.bf16.gmra.mrb[0].mxu0 %v498
    %v625 = vpop.f32.mrb[0].mxu0
    %v626 = vadd.f32 %v525, %v625
    %v627 = vpop.f32.mrb[0].mxu0
    %v628 = vpop.f32.mrb[0].mxu0
    %v629 = vadd.f32 %v525, %v628
    %v630 = vpop.f32.mrb[0].mxu0
    %631 = vmatprep.mubr.bf16.mxu0 0
    %632 = vmatmul.mubr.bf16.gmra.mrb[0].mxu0 %v499
    %v633 = vpop.f32.mrb[0].mxu0
    %v634 = vadd.f32 %v525, %v633
    %v635 = vpop.f32.mrb[0].mxu0
    %v636 = vpop.f32.mrb[0].mxu0
    %v637 = vadd.f32 %v525, %v636
    %v638 = vpop.f32.mrb[0].mxu0
    %639 = vmatprep.mubr.bf16.mxu0 0
    %640 = vmatmul.mubr.bf16.gmra.mrb[0].mxu0 %v500
    %v641 = vpop.f32.mrb[0].mxu0
    %v642 = vadd.f32 %v525, %v641
    %v643 = vpop.f32.mrb[0].mxu0
    %v644 = vpop.f32.mrb[0].mxu0
    %v645 = vadd.f32 %v525, %v644
    %v646 = vpop.f32.mrb[0].mxu0
    %647 = vmatprep.mubr.bf16.mxu0 0
    %648 = vmatmul.mubr.bf16.gmra.mrb[0].mxu0 %v501
    %v649 = vpop.f32.mrb[0].mxu0
    %v650 = vadd.f32 %v525, %v649
    %v651 = vpop.f32.mrb[0].mxu0
    %v652 = vpop.f32.mrb[0].mxu0
    %v653 = vadd.f32 %v525, %v652
    %v654 = vpop.f32.mrb[0].mxu0
    %655 = vmatprep.mubr.bf16.mxu0 0
    %656 = vmatmul.mubr.bf16.gmra.mrb[0].mxu0 %v502
    %v657 = vpop.f32.mrb[0].mxu0
    %v658 = vadd.f32 %v525, %v657
    %v659 = vpop.f32.mrb[0].mxu0
    %v660 = vpop.f32.mrb[0].mxu0
    %v661 = vadd.f32 %v525, %v660
    %v662 = vpop.f32.mrb[0].mxu0
    %663 = vmatprep.mubr.bf16.mxu0 0
    %664 = vmatmul.mubr.bf16.gmra.mrb[0].mxu0 %v503
    %v665 = vpop.f32.mrb[0].mxu0
    %v666 = vadd.f32 %v525, %v665
    %v667 = vpop.f32.mrb[0].mxu0
    %v668 = vpop.f32.mrb[0].mxu0
    %v669 = vadd.f32 %v525, %v668
    %v670 = vpop.f32.mrb[0].mxu0
    %671 = vdwg.mxu0
    %v672 = vmax.f32 %v610, 0.0
    %v673 = vmax.f32 %v613, 0.0
    %v674 = vmax.f32 %v618, 0.0
    %v675 = vmax.f32 %v621, 0.0
    %v676 = vmax.f32 %v626, 0.0
    %v677 = vmax.f32 %v629, 0.0
    %v678 = vmax.f32 %v634, 0.0
    %v679 = vmax.f32 %v637, 0.0
    %v680 = vmax.f32 %v642, 0.0
    %v681 = vmax.f32 %v645, 0.0
    %v682 = vmax.f32 %v650, 0.0
    %v683 = vmax.f32 %v653, 0.0
    %v684 = vmax.f32 %v658, 0.0
    %v685 = vmax.f32 %v661, 0.0
    %v686 = vmax.f32 %v666, 0.0
    %v687 = vmax.f32 %v669, 0.0
    %v688 = vpack.c.bf16 %v673, %v672
    %v689 = vpack.c.bf16 %v675, %v674
    %v690 = vpack.c.bf16 %v677, %v676
    %v691 = vpack.c.bf16 %v679, %v678
    %v692 = vpack.c.bf16 %v681, %v680
    %v693 = vpack.c.bf16 %v683, %v682
    %v694 = vpack.c.bf16 %v685, %v684
    %v695 = vpack.c.bf16 %v687, %v686
    %s696 = scalar_lea.vmem [#allocation8], 64
    %v697 = vld [vmem:[%s696] sm:$0xf]
    %v698 = vld [vmem:[%s696 + $0x4] sm:$0xf]
    %v699 = vld [vmem:[%s696 + $0x8] sm:$0xf]
    %v700 = vld [vmem:[%s696 + $0xc] sm:$0xf]
    %v701 = vld [vmem:[%s696 + $0x10] sm:$0xf]
    %v702 = vld [vmem:[%s696 + $0x14] sm:$0xf]
    %v703 = vld [vmem:[%s696 + $0x18] sm:$0xf]
    %v704 = vld [vmem:[%s696 + $0x1c] sm:$0xf]
    %v705 = vld [vmem:[%s696 + $0x20] sm:$0xf]
    %v706 = vld [vmem:[%s696 + $0x24] sm:$0xf]
    %v707 = vld [vmem:[%s696 + $0x28] sm:$0xf]
    %v708 = vld [vmem:[%s696 + $0x2c] sm:$0xf]
    %v709 = vld [vmem:[%s696 + $0x30] sm:$0xf]
    %v710 = vld [vmem:[%s696 + $0x34] sm:$0xf]
    %v711 = vld [vmem:[%s696 + $0x38] sm:$0xf]
    %v712 = vld [vmem:[%s696 + $0x3c] sm:$0xf]
    %s713 = scalar_lea.vmem %s4, 1
    %v714 = vld [vmem:[%s713] sm:$0x1]
    %v716 = vlaneseq
    %v717 = vshrl.u32 %v716, 7
    %v718 = vsub.s32 0, %v717
    %v719 = vrot.slane %v714, %v718
    %v737 = vunpack.c.l.b16 %v697
    %v738 = vunpack.c.l.b16 %v698
    %v739 = vunpack.c.l.b16 %v699
    %v740 = vunpack.c.l.b16 %v700
    %v741 = vunpack.c.l.b16 %v701
    %v742 = vunpack.c.l.b16 %v702
    %v743 = vunpack.c.l.b16 %v703
    %v744 = vunpack.c.l.b16 %v704
    %v745 = vunpack.c.l.b16 %v705
    %v746 = vunpack.c.l.b16 %v706
    %v747 = vunpack.c.l.b16 %v707
    %v748 = vunpack.c.l.b16 %v708
    %v749 = vunpack.c.l.b16 %v709
    %v750 = vunpack.c.l.b16 %v710
    %v751 = vunpack.c.l.b16 %v711
    %v752 = vunpack.c.l.b16 %v712
    %v753 = vpack.c.b16 %v738, %v737
    %v754 = vpack.c.b16 %v740, %v739
    %v755 = vpack.c.b16 %v742, %v741
    %v756 = vpack.c.b16 %v744, %v743
    %v757 = vpack.c.b16 %v746, %v745
    %v758 = vpack.c.b16 %v748, %v747
    %v759 = vpack.c.b16 %v750, %v749
    %v760 = vpack.c.b16 %v752, %v751
    %769 = vmatprep.subr.bf16.mxu0 0
    %770 = vmatpush1.bf16.msra.mxu0 %v753
    %771 = vmatprep.subr.bf16.mxu0 0
    %772 = vmatpush1.bf16.msra.mxu0 %v754
    %773 = vmatprep.subr.bf16.mxu0 0
    %774 = vmatpush1.bf16.msra.mxu0 %v755
    %775 = vmatprep.subr.bf16.mxu0 0
    %776 = vmatpush1.bf16.msra.mxu0 %v756
    %777 = vmatprep.subr.bf16.mxu0 0
    %778 = vmatpush1.bf16.msra.mxu0 %v757
    %779 = vmatprep.subr.bf16.mxu0 0
    %780 = vmatpush1.bf16.msra.mxu0 %v758
    %781 = vmatprep.subr.bf16.mxu0 0
    %782 = vmatpush1.bf16.msra.mxu0 %v759
    %783 = vmatprep.subr.bf16.mxu0 0
    %784 = vmatpush1.bf16.msra.mxu0 %v760
    %785 = vmatprep.subr.bf16.mxu0 0
    %786 = vmatpush1.bf16.msra.mxu0 0
    %787 = vmatprep.subr.bf16.mxu0 0
    %788 = vmatpush1.bf16.msra.mxu0 0
    %789 = vmatprep.subr.bf16.mxu0 0
    %790 = vmatpush1.bf16.msra.mxu0 0
    %791 = vmatprep.subr.bf16.mxu0 0
    %792 = vmatpush1.bf16.msra.mxu0 0
    %793 = vmatprep.subr.bf16.mxu0 0
    %794 = vmatpush1.bf16.msra.mxu0 0
    %795 = vmatprep.subr.bf16.mxu0 0
    %796 = vmatpush1.bf16.msra.mxu0 0
    %797 = vmatprep.subr.bf16.mxu0 0
    %798 = vmatpush1.bf16.msra.mxu0 0
    %799 = vmatprep.subr.bf16.mxu0 0
    %800 = vmatpush1.bf16.msra.mxu0 0
    %801 = vmatprep.mubr.bf16.mxu0 0
    %802 = vmatmul.mubr.bf16.gmra.mrb[0].mxu0 %v688
    %v803 = vpop.f32.mrb[0].mxu0
    %v804 = vadd.f32 %v719, %v803
    %v805 = vpop.f32.mrb[0].mxu0
    %v806 = vpop.f32.mrb[0].mxu0
    %v807 = vadd.f32 %v719, %v806
    %v808 = vpop.f32.mrb[0].mxu0
    %809 = vmatprep.mubr.bf16.mxu0 0
    %810 = vmatmul.mubr.bf16.gmra.mrb[0].mxu0 %v689
    %v811 = vpop.f32.mrb[0].mxu0
    %v812 = vadd.f32 %v719, %v811
    %v813 = vpop.f32.mrb[0].mxu0
    %v814 = vpop.f32.mrb[0].mxu0
    %v815 = vadd.f32 %v719, %v814
    %v816 = vpop.f32.mrb[0].mxu0
    %817 = vmatprep.mubr.bf16.mxu0 0
    %818 = vmatmul.mubr.bf16.gmra.mrb[0].mxu0 %v690
    %v819 = vpop.f32.mrb[0].mxu0
    %v820 = vadd.f32 %v719, %v819
    %v821 = vpop.f32.mrb[0].mxu0
    %v822 = vpop.f32.mrb[0].mxu0
    %v823 = vadd.f32 %v719, %v822
    %v824 = vpop.f32.mrb[0].mxu0
    %825 = vmatprep.mubr.bf16.mxu0 0
    %826 = vmatmul.mubr.bf16.gmra.mrb[0].mxu0 %v691
    %v827 = vpop.f32.mrb[0].mxu0
    %v828 = vadd.f32 %v719, %v827
    %v829 = vpop.f32.mrb[0].mxu0
    %v830 = vpop.f32.mrb[0].mxu0
    %v831 = vadd.f32 %v719, %v830
    %v832 = vpop.f32.mrb[0].mxu0
    %833 = vmatprep.mubr.bf16.mxu0 0
    %834 = vmatmul.mubr.bf16.gmra.mrb[0].mxu0 %v692
    %v835 = vpop.f32.mrb[0].mxu0
    %v836 = vadd.f32 %v719, %v835
    %v837 = vpop.f32.mrb[0].mxu0
    %v838 = vpop.f32.mrb[0].mxu0
    %v839 = vadd.f32 %v719, %v838
    %v840 = vpop.f32.mrb[0].mxu0
    %841 = vmatprep.mubr.bf16.mxu0 0
    %842 = vmatmul.mubr.bf16.gmra.mrb[0].mxu0 %v693
    %v843 = vpop.f32.mrb[0].mxu0
    %v844 = vadd.f32 %v719, %v843
    %v845 = vpop.f32.mrb[0].mxu0
    %v846 = vpop.f32.mrb[0].mxu0
    %v847 = vadd.f32 %v719, %v846
    %v848 = vpop.f32.mrb[0].mxu0
    %849 = vmatprep.mubr.bf16.mxu0 0
    %850 = vmatmul.mubr.bf16.gmra.mrb[0].mxu0 %v694
    %v851 = vpop.f32.mrb[0].mxu0
    %v852 = vadd.f32 %v719, %v851
    %v853 = vpop.f32.mrb[0].mxu0
    %v854 = vpop.f32.mrb[0].mxu0
    %v855 = vadd.f32 %v719, %v854
    %v856 = vpop.f32.mrb[0].mxu0
    %857 = vmatprep.mubr.bf16.mxu0 0
    %858 = vmatmul.mubr.bf16.gmra.mrb[0].mxu0 %v695
    %v859 = vpop.f32.mrb[0].mxu0
    %v860 = vadd.f32 %v719, %v859
    %v861 = vpop.f32.mrb[0].mxu0
    %v862 = vpop.f32.mrb[0].mxu0
    %v863 = vadd.f32 %v719, %v862
    %v864 = vpop.f32.mrb[0].mxu0
    %865 = vdwg.mxu0
    %v866 = vmax.f32 %v804, 0.0
    %v867 = vmax.f32 %v807, 0.0
    %v868 = vmax.f32 %v812, 0.0
    %v869 = vmax.f32 %v815, 0.0
    %v870 = vmax.f32 %v820, 0.0
    %v871 = vmax.f32 %v823, 0.0
    %v872 = vmax.f32 %v828, 0.0
    %v873 = vmax.f32 %v831, 0.0
    %v874 = vmax.f32 %v836, 0.0
    %v875 = vmax.f32 %v839, 0.0
    %v876 = vmax.f32 %v844, 0.0
    %v877 = vmax.f32 %v847, 0.0
    %v878 = vmax.f32 %v852, 0.0
    %v879 = vmax.f32 %v855, 0.0
    %v880 = vmax.f32 %v860, 0.0
    %v881 = vmax.f32 %v863, 0.0
    %v882 = vpack.c.bf16 %v867, %v866
    %v883 = vpack.c.bf16 %v869, %v868
    %v884 = vpack.c.bf16 %v871, %v870
    %v885 = vpack.c.bf16 %v873, %v872
    %v886 = vpack.c.bf16 %v875, %v874
    %v887 = vpack.c.bf16 %v877, %v876
    %v888 = vpack.c.bf16 %v879, %v878
    %v889 = vpack.c.bf16 %v881, %v880
    %s890 = scalar_lea.vmem [#allocation8], 128
    %v891 = vld [vmem:[%s890] sm:$0xf]
    %v892 = vld [vmem:[%s890 + $0x4] sm:$0xf]
    %v893 = vld [vmem:[%s890 + $0x8] sm:$0xf]
    %v894 = vld [vmem:[%s890 + $0xc] sm:$0xf]
    %v895 = vld [vmem:[%s890 + $0x10] sm:$0xf]
    %v896 = vld [vmem:[%s890 + $0x14] sm:$0xf]
    %v897 = vld [vmem:[%s890 + $0x18] sm:$0xf]
    %v898 = vld [vmem:[%s890 + $0x1c] sm:$0xf]
    %v899 = vld [vmem:[%s890 + $0x20] sm:$0xf]
    %v900 = vld [vmem:[%s890 + $0x24] sm:$0xf]
    %v901 = vld [vmem:[%s890 + $0x28] sm:$0xf]
    %v902 = vld [vmem:[%s890 + $0x2c] sm:$0xf]
    %v903 = vld [vmem:[%s890 + $0x30] sm:$0xf]
    %v904 = vld [vmem:[%s890 + $0x34] sm:$0xf]
    %v905 = vld [vmem:[%s890 + $0x38] sm:$0xf]
    %v906 = vld [vmem:[%s890 + $0x3c] sm:$0xf]
    %s907 = scalar_lea.vmem %s4, 2
    %v908 = vld [vmem:[%s907] sm:$0x1]
    %v910 = vlaneseq
    %v911 = vshrl.u32 %v910, 7
    %v912 = vsub.s32 0, %v911
    %v913 = vrot.slane %v908, %v912
    %v931 = vunpack.c.l.b16 %v891
    %v932 = vunpack.c.l.b16 %v892
    %v933 = vunpack.c.l.b16 %v893
    %v934 = vunpack.c.l.b16 %v894
    %v935 = vunpack.c.l.b16 %v895
    %v936 = vunpack.c.l.b16 %v896
    %v937 = vunpack.c.l.b16 %v897
    %v938 = vunpack.c.l.b16 %v898
    %v939 = vunpack.c.l.b16 %v899
    %v940 = vunpack.c.l.b16 %v900
    %v941 = vunpack.c.l.b16 %v901
    %v942 = vunpack.c.l.b16 %v902
    %v943 = vunpack.c.l.b16 %v903
    %v944 = vunpack.c.l.b16 %v904
    %v945 = vunpack.c.l.b16 %v905
    %v946 = vunpack.c.l.b16 %v906
    %v947 = vpack.c.b16 %v932, %v931
    %v948 = vpack.c.b16 %v934, %v933
    %v949 = vpack.c.b16 %v936, %v935
    %v950 = vpack.c.b16 %v938, %v937
    %v951 = vpack.c.b16 %v940, %v939
    %v952 = vpack.c.b16 %v942, %v941
    %v953 = vpack.c.b16 %v944, %v943
    %v954 = vpack.c.b16 %v946, %v945
    %963 = vmatprep.subr.bf16.mxu0 0
    %964 = vmatpush1.bf16.msra.mxu0 %v947
    %965 = vmatprep.subr.bf16.mxu0 0
    %966 = vmatpush1.bf16.msra.mxu0 %v948
    %967 = vmatprep.subr.bf16.mxu0 0
    %968 = vmatpush1.bf16.msra.mxu0 %v949
    %969 = vmatprep.subr.bf16.mxu0 0
    %970 = vmatpush1.bf16.msra.mxu0 %v950
    %971 = vmatprep.subr.bf16.mxu0 0
    %972 = vmatpush1.bf16.msra.mxu0 %v951
    %973 = vmatprep.subr.bf16.mxu0 0
    %974 = vmatpush1.bf16.msra.mxu0 %v952
    %975 = vmatprep.subr.bf16.mxu0 0
    %976 = vmatpush1.bf16.msra.mxu0 %v953
    %977 = vmatprep.subr.bf16.mxu0 0
    %978 = vmatpush1.bf16.msra.mxu0 %v954
    %979 = vmatprep.subr.bf16.mxu0 0
    %980 = vmatpush1.bf16.msra.mxu0 0
    %981 = vmatprep.subr.bf16.mxu0 0
    %982 = vmatpush1.bf16.msra.mxu0 0
    %983 = vmatprep.subr.bf16.mxu0 0
    %984 = vmatpush1.bf16.msra.mxu0 0
    %985 = vmatprep.subr.bf16.mxu0 0
    %986 = vmatpush1.bf16.msra.mxu0 0
    %987 = vmatprep.subr.bf16.mxu0 0
    %988 = vmatpush1.bf16.msra.mxu0 0
    %989 = vmatprep.subr.bf16.mxu0 0
    %990 = vmatpush1.bf16.msra.mxu0 0
    %991 = vmatprep.subr.bf16.mxu0 0
    %992 = vmatpush1.bf16.msra.mxu0 0
    %993 = vmatprep.subr.bf16.mxu0 0
    %994 = vmatpush1.bf16.msra.mxu0 0
    %995 = vmatprep.mubr.bf16.mxu0 0
    %996 = vmatmul.mubr.bf16.gmra.mrb[0].mxu0 %v882
    %v997 = vpop.f32.mrb[0].mxu0
    %v998 = vadd.f32 %v913, %v997
    %v999 = vpop.f32.mrb[0].mxu0
    %v1000 = vpop.f32.mrb[0].mxu0
    %v1001 = vadd.f32 %v913, %v1000
    %v1002 = vpop.f32.mrb[0].mxu0
    %1003 = vmatprep.mubr.bf16.mxu0 0
    %1004 = vmatmul.mubr.bf16.gmra.mrb[0].mxu0 %v883
    %v1005 = vpop.f32.mrb[0].mxu0
    %v1006 = vadd.f32 %v913, %v1005
    %v1007 = vpop.f32.mrb[0].mxu0
    %v1008 = vpop.f32.mrb[0].mxu0
    %v1009 = vadd.f32 %v913, %v1008
    %v1010 = vpop.f32.mrb[0].mxu0
    %1011 = vmatprep.mubr.bf16.mxu0 0
    %1012 = vmatmul.mubr.bf16.gmra.mrb[0].mxu0 %v884
    %v1013 = vpop.f32.mrb[0].mxu0
    %v1014 = vadd.f32 %v913, %v1013
    %v1015 = vpop.f32.mrb[0].mxu0
    %v1016 = vpop.f32.mrb[0].mxu0
    %v1017 = vadd.f32 %v913, %v1016
    %v1018 = vpop.f32.mrb[0].mxu0
    %1019 = vmatprep.mubr.bf16.mxu0 0
    %1020 = vmatmul.mubr.bf16.gmra.mrb[0].mxu0 %v885
    %v1021 = vpop.f32.mrb[0].mxu0
    %v1022 = vadd.f32 %v913, %v1021
    %v1023 = vpop.f32.mrb[0].mxu0
    %v1024 = vpop.f32.mrb[0].mxu0
    %v1025 = vadd.f32 %v913, %v1024
    %v1026 = vpop.f32.mrb[0].mxu0
    %1027 = vmatprep.mubr.bf16.mxu0 0
    %1028 = vmatmul.mubr.bf16.gmra.mrb[0].mxu0 %v886
    %v1029 = vpop.f32.mrb[0].mxu0
    %v1030 = vadd.f32 %v913, %v1029
    %v1031 = vpop.f32.mrb[0].mxu0
    %v1032 = vpop.f32.mrb[0].mxu0
    %v1033 = vadd.f32 %v913, %v1032
    %v1034 = vpop.f32.mrb[0].mxu0
    %1035 = vmatprep.mubr.bf16.mxu0 0
    %1036 = vmatmul.mubr.bf16.gmra.mrb[0].mxu0 %v887
    %v1037 = vpop.f32.mrb[0].mxu0
    %v1038 = vadd.f32 %v913, %v1037
    %v1039 = vpop.f32.mrb[0].mxu0
    %v1040 = vpop.f32.mrb[0].mxu0
    %v1041 = vadd.f32 %v913, %v1040
    %v1042 = vpop.f32.mrb[0].mxu0
    %1043 = vmatprep.mubr.bf16.mxu0 0
    %1044 = vmatmul.mubr.bf16.gmra.mrb[0].mxu0 %v888
    %v1045 = vpop.f32.mrb[0].mxu0
    %v1046 = vadd.f32 %v913, %v1045
    %v1047 = vpop.f32.mrb[0].mxu0
    %v1048 = vpop.f32.mrb[0].mxu0
    %v1049 = vadd.f32 %v913, %v1048
    %v1050 = vpop.f32.mrb[0].mxu0
    %1051 = vmatprep.mubr.bf16.mxu0 0
    %1052 = vmatmul.mubr.bf16.gmra.mrb[0].mxu0 %v889
    %v1053 = vpop.f32.mrb[0].mxu0
    %v1054 = vadd.f32 %v913, %v1053
    %v1055 = vpop.f32.mrb[0].mxu0
    %v1056 = vpop.f32.mrb[0].mxu0
    %v1057 = vadd.f32 %v913, %v1056
    %v1058 = vpop.f32.mrb[0].mxu0
    %1059 = vdwg.mxu0
    %v1060 = vmax.f32 %v998, 0.0
    %v1061 = vmax.f32 %v1001, 0.0
    %v1062 = vmax.f32 %v1006, 0.0
    %v1063 = vmax.f32 %v1009, 0.0
    %v1064 = vmax.f32 %v1014, 0.0
    %v1065 = vmax.f32 %v1017, 0.0
    %v1066 = vmax.f32 %v1022, 0.0
    %v1067 = vmax.f32 %v1025, 0.0
    %v1068 = vmax.f32 %v1030, 0.0
    %v1069 = vmax.f32 %v1033, 0.0
    %v1070 = vmax.f32 %v1038, 0.0
    %v1071 = vmax.f32 %v1041, 0.0
    %v1072 = vmax.f32 %v1046, 0.0
    %v1073 = vmax.f32 %v1049, 0.0
    %v1074 = vmax.f32 %v1054, 0.0
    %v1075 = vmax.f32 %v1057, 0.0
    %v1076 = vpack.c.bf16 %v1061, %v1060
    %v1077 = vpack.c.bf16 %v1063, %v1062
    %v1078 = vpack.c.bf16 %v1065, %v1064
    %v1079 = vpack.c.bf16 %v1067, %v1066
    %v1080 = vpack.c.bf16 %v1069, %v1068
    %v1081 = vpack.c.bf16 %v1071, %v1070
    %v1082 = vpack.c.bf16 %v1073, %v1072
    %v1083 = vpack.c.bf16 %v1075, %v1074
    %s1084 = scalar_lea.vmem [#allocation8], 192
    %v1085 = vld [vmem:[%s1084] sm:$0xf]
    %v1086 = vld [vmem:[%s1084 + $0x4] sm:$0xf]
    %v1087 = vld [vmem:[%s1084 + $0x8] sm:$0xf]
    %v1088 = vld [vmem:[%s1084 + $0xc] sm:$0xf]
    %v1089 = vld [vmem:[%s1084 + $0x10] sm:$0xf]
    %v1090 = vld [vmem:[%s1084 + $0x14] sm:$0xf]
    %v1091 = vld [vmem:[%s1084 + $0x18] sm:$0xf]
    %v1092 = vld [vmem:[%s1084 + $0x1c] sm:$0xf]
    %v1093 = vld [vmem:[%s1084 + $0x20] sm:$0xf]
    %v1094 = vld [vmem:[%s1084 + $0x24] sm:$0xf]
    %v1095 = vld [vmem:[%s1084 + $0x28] sm:$0xf]
    %v1096 = vld [vmem:[%s1084 + $0x2c] sm:$0xf]
    %v1097 = vld [vmem:[%s1084 + $0x30] sm:$0xf]
    %v1098 = vld [vmem:[%s1084 + $0x34] sm:$0xf]
    %v1099 = vld [vmem:[%s1084 + $0x38] sm:$0xf]
    %v1100 = vld [vmem:[%s1084 + $0x3c] sm:$0xf]
    %s1101 = scalar_lea.vmem %s4, 3
    %v1102 = vld [vmem:[%s1101] sm:$0x1]
    %v1104 = vlaneseq
    %v1105 = vshrl.u32 %v1104, 7
    %v1106 = vsub.s32 0, %v1105
    %v1107 = vrot.slane %v1102, %v1106
    %v1125 = vunpack.c.l.b16 %v1085
    %v1126 = vunpack.c.l.b16 %v1086
    %v1127 = vunpack.c.l.b16 %v1087
    %v1128 = vunpack.c.l.b16 %v1088
    %v1129 = vunpack.c.l.b16 %v1089
    %v1130 = vunpack.c.l.b16 %v1090
    %v1131 = vunpack.c.l.b16 %v1091
    %v1132 = vunpack.c.l.b16 %v1092
    %v1133 = vunpack.c.l.b16 %v1093
    %v1134 = vunpack.c.l.b16 %v1094
    %v1135 = vunpack.c.l.b16 %v1095
    %v1136 = vunpack.c.l.b16 %v1096
    %v1137 = vunpack.c.l.b16 %v1097
    %v1138 = vunpack.c.l.b16 %v1098
    %v1139 = vunpack.c.l.b16 %v1099
    %v1140 = vunpack.c.l.b16 %v1100
    %v1141 = vpack.c.b16 %v1126, %v1125
    %v1142 = vpack.c.b16 %v1128, %v1127
    %v1143 = vpack.c.b16 %v1130, %v1129
    %v1144 = vpack.c.b16 %v1132, %v1131
    %v1145 = vpack.c.b16 %v1134, %v1133
    %v1146 = vpack.c.b16 %v1136, %v1135
    %v1147 = vpack.c.b16 %v1138, %v1137
    %v1148 = vpack.c.b16 %v1140, %v1139
    %1157 = vmatprep.subr.bf16.mxu0 0
    %1158 = vmatpush1.bf16.msra.mxu0 %v1141
    %1159 = vmatprep.subr.bf16.mxu0 0
    %1160 = vmatpush1.bf16.msra.mxu0 %v1142
    %1161 = vmatprep.subr.bf16.mxu0 0
    %1162 = vmatpush1.bf16.msra.mxu0 %v1143
    %1163 = vmatprep.subr.bf16.mxu0 0
    %1164 = vmatpush1.bf16.msra.mxu0 %v1144
    %1165 = vmatprep.subr.bf16.mxu0 0
    %1166 = vmatpush1.bf16.msra.mxu0 %v1145
    %1167 = vmatprep.subr.bf16.mxu0 0
    %1168 = vmatpush1.bf16.msra.mxu0 %v1146
    %1169 = vmatprep.subr.bf16.mxu0 0
    %1170 = vmatpush1.bf16.msra.mxu0 %v1147
    %1171 = vmatprep.subr.bf16.mxu0 0
    %1172 = vmatpush1.bf16.msra.mxu0 %v1148
    %1173 = vmatprep.subr.bf16.mxu0 0
    %1174 = vmatpush1.bf16.msra.mxu0 0
    %1175 = vmatprep.subr.bf16.mxu0 0
    %1176 = vmatpush1.bf16.msra.mxu0 0
    %1177 = vmatprep.subr.bf16.mxu0 0
    %1178 = vmatpush1.bf16.msra.mxu0 0
    %1179 = vmatprep.subr.bf16.mxu0 0
    %1180 = vmatpush1.bf16.msra.mxu0 0
    %1181 = vmatprep.subr.bf16.mxu0 0
    %1182 = vmatpush1.bf16.msra.mxu0 0
    %1183 = vmatprep.subr.bf16.mxu0 0
    %1184 = vmatpush1.bf16.msra.mxu0 0
    %1185 = vmatprep.subr.bf16.mxu0 0
    %1186 = vmatpush1.bf16.msra.mxu0 0
    %1187 = vmatprep.subr.bf16.mxu0 0
    %1188 = vmatpush1.bf16.msra.mxu0 0
    %1189 = vmatprep.mubr.bf16.mxu0 0
    %1190 = vmatmul.mubr.bf16.gmra.mrb[0].mxu0 %v1076
    %v1191 = vpop.f32.mrb[0].mxu0
    %v1192 = vadd.f32 %v1107, %v1191
    %v1193 = vpop.f32.mrb[0].mxu0
    %v1194 = vpop.f32.mrb[0].mxu0
    %v1195 = vadd.f32 %v1107, %v1194
    %v1196 = vpop.f32.mrb[0].mxu0
    %1197 = vmatprep.mubr.bf16.mxu0 0
    %1198 = vmatmul.mubr.bf16.gmra.mrb[0].mxu0 %v1077
    %v1199 = vpop.f32.mrb[0].mxu0
    %v1200 = vadd.f32 %v1107, %v1199
    %v1201 = vpop.f32.mrb[0].mxu0
    %v1202 = vpop.f32.mrb[0].mxu0
    %v1203 = vadd.f32 %v1107, %v1202
    %v1204 = vpop.f32.mrb[0].mxu0
    %1205 = vmatprep.mubr.bf16.mxu0 0
    %1206 = vmatmul.mubr.bf16.gmra.mrb[0].mxu0 %v1078
    %v1207 = vpop.f32.mrb[0].mxu0
    %v1208 = vadd.f32 %v1107, %v1207
    %v1209 = vpop.f32.mrb[0].mxu0
    %v1210 = vpop.f32.mrb[0].mxu0
    %v1211 = vadd.f32 %v1107, %v1210
    %v1212 = vpop.f32.mrb[0].mxu0
    %1213 = vmatprep.mubr.bf16.mxu0 0
    %1214 = vmatmul.mubr.bf16.gmra.mrb[0].mxu0 %v1079
    %v1215 = vpop.f32.mrb[0].mxu0
    %v1216 = vadd.f32 %v1107, %v1215
    %v1217 = vpop.f32.mrb[0].mxu0
    %v1218 = vpop.f32.mrb[0].mxu0
    %v1219 = vadd.f32 %v1107, %v1218
    %v1220 = vpop.f32.mrb[0].mxu0
    %1221 = vmatprep.mubr.bf16.mxu0 0
    %1222 = vmatmul.mubr.bf16.gmra.mrb[0].mxu0 %v1080
    %v1223 = vpop.f32.mrb[0].mxu0
    %v1224 = vadd.f32 %v1107, %v1223
    %v1225 = vpop.f32.mrb[0].mxu0
    %v1226 = vpop.f32.mrb[0].mxu0
    %v1227 = vadd.f32 %v1107, %v1226
    %v1228 = vpop.f32.mrb[0].mxu0
    %1229 = vmatprep.mubr.bf16.mxu0 0
    %1230 = vmatmul.mubr.bf16.gmra.mrb[0].mxu0 %v1081
    %v1231 = vpop.f32.mrb[0].mxu0
    %v1232 = vadd.f32 %v1107, %v1231
    %v1233 = vpop.f32.mrb[0].mxu0
    %v1234 = vpop.f32.mrb[0].mxu0
    %v1235 = vadd.f32 %v1107, %v1234
    %v1236 = vpop.f32.mrb[0].mxu0
    %1237 = vmatprep.mubr.bf16.mxu0 0
    %1238 = vmatmul.mubr.bf16.gmra.mrb[0].mxu0 %v1082
    %v1239 = vpop.f32.mrb[0].mxu0
    %v1240 = vadd.f32 %v1107, %v1239
    %v1241 = vpop.f32.mrb[0].mxu0
    %v1242 = vpop.f32.mrb[0].mxu0
    %v1243 = vadd.f32 %v1107, %v1242
    %v1244 = vpop.f32.mrb[0].mxu0
    %1245 = vmatprep.mubr.bf16.mxu0 0
    %1246 = vmatmul.mubr.bf16.gmra.mrb[0].mxu0 %v1083
    %v1247 = vpop.f32.mrb[0].mxu0
    %v1248 = vadd.f32 %v1107, %v1247
    %v1249 = vpop.f32.mrb[0].mxu0
    %v1250 = vpop.f32.mrb[0].mxu0
    %v1251 = vadd.f32 %v1107, %v1250
    %v1252 = vpop.f32.mrb[0].mxu0
    %1253 = vdwg.mxu0
    %v1254 = vmax.f32 %v1192, 0.0
    %v1255 = vmax.f32 %v1195, 0.0
    %v1256 = vmax.f32 %v1200, 0.0
    %v1257 = vmax.f32 %v1203, 0.0
    %v1258 = vmax.f32 %v1208, 0.0
    %v1259 = vmax.f32 %v1211, 0.0
    %v1260 = vmax.f32 %v1216, 0.0
    %v1261 = vmax.f32 %v1219, 0.0
    %v1262 = vmax.f32 %v1224, 0.0
    %v1263 = vmax.f32 %v1227, 0.0
    %v1264 = vmax.f32 %v1232, 0.0
    %v1265 = vmax.f32 %v1235, 0.0
    %v1266 = vmax.f32 %v1240, 0.0
    %v1267 = vmax.f32 %v1243, 0.0
    %v1268 = vmax.f32 %v1248, 0.0
    %v1269 = vmax.f32 %v1251, 0.0
    %v1270 = vld [vmem:[#allocation7] sm:$0xff]
    %v1271 = vld [vmem:[#allocation7 + $0x8] sm:$0xff]
    %v1272 = vld [vmem:[#allocation7 + $0x10] sm:$0xff]
    %v1273 = vld [vmem:[#allocation7 + $0x18] sm:$0xff]
    %v1274 = vld [vmem:[#allocation7 + $0x20] sm:$0xff]
    %v1275 = vld [vmem:[#allocation7 + $0x28] sm:$0xff]
    %v1276 = vld [vmem:[#allocation7 + $0x30] sm:$0xff]
    %v1277 = vld [vmem:[#allocation7 + $0x38] sm:$0xff]
    %v1278 = vld [vmem:[#allocation7 + $0x40] sm:$0xff]
    %v1279 = vld [vmem:[#allocation7 + $0x48] sm:$0xff]
    %v1280 = vld [vmem:[#allocation7 + $0x50] sm:$0xff]
    %v1281 = vld [vmem:[#allocation7 + $0x58] sm:$0xff]
    %v1282 = vld [vmem:[#allocation7 + $0x60] sm:$0xff]
    %v1283 = vld [vmem:[#allocation7 + $0x68] sm:$0xff]
    %v1284 = vld [vmem:[#allocation7 + $0x70] sm:$0xff]
    %v1285 = vld [vmem:[#allocation7 + $0x78] sm:$0xff]
    %v1286 = vtanh.pop %v1270
    %v1287 = vtanh.pop %v1271
    %v1288 = vtanh.pop %v1272
    %v1289 = vtanh.pop %v1273
    %v1290 = vtanh.pop %v1274
    %v1291 = vtanh.pop %v1275
    %v1292 = vtanh.pop %v1276
    %v1293 = vtanh.pop %v1277
    %v1294 = vtanh.pop %v1278
    %v1295 = vtanh.pop %v1279
    %v1296 = vtanh.pop %v1280
    %v1297 = vtanh.pop %v1281
    %v1298 = vtanh.pop %v1282
    %v1299 = vtanh.pop %v1283
    %v1300 = vtanh.pop %v1284
    %v1301 = vtanh.pop %v1285
    %v1302 = vadd.f32 %v1286, 1.0
    %v1303 = vadd.f32 %v1287, 1.0
    %v1304 = vadd.f32 %v1288, 1.0
    %v1305 = vadd.f32 %v1289, 1.0
    %v1306 = vadd.f32 %v1290, 1.0
    %v1307 = vadd.f32 %v1291, 1.0
    %v1308 = vadd.f32 %v1292, 1.0
    %v1309 = vadd.f32 %v1293, 1.0
    %v1310 = vadd.f32 %v1294, 1.0
    %v1311 = vadd.f32 %v1295, 1.0
    %v1312 = vadd.f32 %v1296, 1.0
    %v1313 = vadd.f32 %v1297, 1.0
    %v1314 = vadd.f32 %v1298, 1.0
    %v1315 = vadd.f32 %v1299, 1.0
    %v1316 = vadd.f32 %v1300, 1.0
    %v1317 = vadd.f32 %v1301, 1.0
    %v1318 = vmul.f32 %v1254, %v1302
    %v1319 = vmul.f32 %v1255, %v1303
    %v1320 = vmul.f32 %v1256, %v1304
    %v1321 = vmul.f32 %v1257, %v1305
    %v1322 = vmul.f32 %v1258, %v1306
    %v1323 = vmul.f32 %v1259, %v1307
    %v1324 = vmul.f32 %v1260, %v1308
    %v1325 = vmul.f32 %v1261, %v1309
    %v1326 = vmul.f32 %v1262, %v1310
    %v1327 = vmul.f32 %v1263, %v1311
    %v1328 = vmul.f32 %v1264, %v1312
    %v1329 = vmul.f32 %v1265, %v1313
    %v1330 = vmul.f32 %v1266, %v1314
    %v1331 = vmul.f32 %v1267, %v1315
    %v1332 = vmul.f32 %v1268, %v1316
    %v1333 = vmul.f32 %v1269, %v1317
    %1334 = vst [vmem:[#allocation14] sm:$0xff] %v1318
    %1335 = vst [vmem:[#allocation14 + $0x8] sm:$0xff] %v1319
    %1336 = vst [vmem:[#allocation14 + $0x10] sm:$0xff] %v1320
    %1337 = vst [vmem:[#allocation14 + $0x18] sm:$0xff] %v1321
    %1338 = vst [vmem:[#allocation14 + $0x20] sm:$0xff] %v1322
    %1339 = vst [vmem:[#allocation14 + $0x28] sm:$0xff] %v1323
    %1340 = vst [vmem:[#allocation14 + $0x30] sm:$0xff] %v1324
    %1341 = vst [vmem:[#allocation14 + $0x38] sm:$0xff] %v1325
    %1342 = vst [vmem:[#allocation14 + $0x40] sm:$0xff] %v1326
    %1343 = vst [vmem:[#allocation14 + $0x48] sm:$0xff] %v1327
    %1344 = vst [vmem:[#allocation14 + $0x50] sm:$0xff] %v1328
    %1345 = vst [vmem:[#allocation14 + $0x58] sm:$0xff] %v1329
    %1346 = vst [vmem:[#allocation14 + $0x60] sm:$0xff] %v1330
    %1347 = vst [vmem:[#allocation14 + $0x68] sm:$0xff] %v1331
    %1348 = vst [vmem:[#allocation14 + $0x70] sm:$0xff] %v1332
    %1349 = vst [vmem:[#allocation14 + $0x78] sm:$0xff] %v1333
    %v1350 = vmul.f32 %v1318, %v417
    %v1351 = vmul.f32 %v1319, %v419
    %v1352 = vmul.f32 %v1320, %v421
    %v1353 = vmul.f32 %v1321, %v423
    %v1354 = vmul.f32 %v1322, %v425
    %v1355 = vmul.f32 %v1323, %v427
    %v1356 = vmul.f32 %v1324, %v429
    %v1357 = vmul.f32 %v1325, %v431
    %v1358 = vmul.f32 %v1326, %v433
    %v1359 = vmul.f32 %v1327, %v435
    %v1360 = vmul.f32 %v1328, %v437
    %v1361 = vmul.f32 %v1329, %v439
    %v1362 = vmul.f32 %v1330, %v441
    %v1363 = vmul.f32 %v1331, %v443
    %v1364 = vmul.f32 %v1332, %v445
    %v1365 = vmul.f32 %v1333, %v447
    %v1366 = vpack.c.bf16 %v1351, %v1350
    %v1367 = vpack.c.bf16 %v1353, %v1352
    %v1368 = vpack.c.bf16 %v1355, %v1354
    %v1369 = vpack.c.bf16 %v1357, %v1356
    %v1370 = vpack.c.bf16 %v1359, %v1358
    %v1371 = vpack.c.bf16 %v1361, %v1360
    %v1372 = vpack.c.bf16 %v1363, %v1362
    %v1373 = vpack.c.bf16 %v1365, %v1364
    %v1374 = vld [vmem:[#allocation10] sm:$0xf]
    %v1375 = vld [vmem:[#allocation10 + $0x4] sm:$0xf]
    %v1376 = vld [vmem:[#allocation10 + $0x8] sm:$0xf]
    %v1377 = vld [vmem:[#allocation10 + $0xc] sm:$0xf]
    %v1378 = vld [vmem:[#allocation10 + $0x10] sm:$0xf]
    %v1379 = vld [vmem:[#allocation10 + $0x14] sm:$0xf]
    %v1380 = vld [vmem:[#allocation10 + $0x18] sm:$0xf]
    %v1381 = vld [vmem:[#allocation10 + $0x1c] sm:$0xf]
    %v1382 = vld [vmem:[#allocation10 + $0x20] sm:$0xf]
    %v1383 = vld [vmem:[#allocation10 + $0x24] sm:$0xf]
    %v1384 = vld [vmem:[#allocation10 + $0x28] sm:$0xf]
    %v1385 = vld [vmem:[#allocation10 + $0x2c] sm:$0xf]
    %v1386 = vld [vmem:[#allocation10 + $0x30] sm:$0xf]
    %v1387 = vld [vmem:[#allocation10 + $0x34] sm:$0xf]
    %v1388 = vld [vmem:[#allocation10 + $0x38] sm:$0xf]
    %v1389 = vld [vmem:[#allocation10 + $0x3c] sm:$0xf]
    %v1390 = vld [vmem:[%s6] sm:$0x1]
    %v1392 = vlaneseq
    %v1393 = vshrl.u32 %v1392, 7
    %v1394 = vsub.s32 0, %v1393
    %v1395 = vrot.slane %v1390, %v1394
    %v1413 = vunpack.c.l.b16 %v1374
    %v1414 = vunpack.c.l.b16 %v1375
    %v1415 = vunpack.c.l.b16 %v1376
    %v1416 = vunpack.c.l.b16 %v1377
    %v1417 = vunpack.c.l.b16 %v1378
    %v1418 = vunpack.c.l.b16 %v1379
    %v1419 = vunpack.c.l.b16 %v1380
    %v1420 = vunpack.c.l.b16 %v1381
    %v1421 = vunpack.c.l.b16 %v1382
    %v1422 = vunpack.c.l.b16 %v1383
    %v1423 = vunpack.c.l.b16 %v1384
    %v1424 = vunpack.c.l.b16 %v1385
    %v1425 = vunpack.c.l.b16 %v1386
    %v1426 = vunpack.c.l.b16 %v1387
    %v1427 = vunpack.c.l.b16 %v1388
    %v1428 = vunpack.c.l.b16 %v1389
    %v1429 = vpack.c.b16 %v1414, %v1413
    %v1430 = vpack.c.b16 %v1416, %v1415
    %v1431 = vpack.c.b16 %v1418, %v1417
    %v1432 = vpack.c.b16 %v1420, %v1419
    %v1433 = vpack.c.b16 %v1422, %v1421
    %v1434 = vpack.c.b16 %v1424, %v1423
    %v1435 = vpack.c.b16 %v1426, %v1425
    %v1436 = vpack.c.b16 %v1428, %v1427
    %1445 = vmatprep.subr.bf16.mxu0 0
    %1446 = vmatpush1.bf16.msra.mxu0 %v1429
    %1447 = vmatprep.subr.bf16.mxu0 0
    %1448 = vmatpush1.bf16.msra.mxu0 %v1430
    %1449 = vmatprep.subr.bf16.mxu0 0
    %1450 = vmatpush1.bf16.msra.mxu0 %v1431
    %1451 = vmatprep.subr.bf16.mxu0 0
    %1452 = vmatpush1.bf16.msra.mxu0 %v1432
    %1453 = vmatprep.subr.bf16.mxu0 0
    %1454 = vmatpush1.bf16.msra.mxu0 %v1433
    %1455 = vmatprep.subr.bf16.mxu0 0
    %1456 = vmatpush1.bf16.msra.mxu0 %v1434
    %1457 = vmatprep.subr.bf16.mxu0 0
    %1458 = vmatpush1.bf16.msra.mxu0 %v1435
    %1459 = vmatprep.subr.bf16.mxu0 0
    %1460 = vmatpush1.bf16.msra.mxu0 %v1436
    %1461 = vmatprep.subr.bf16.mxu0 0
    %1462 = vmatpush1.bf16.msra.mxu0 0
    %1463 = vmatprep.subr.bf16.mxu0 0
    %1464 = vmatpush1.bf16.msra.mxu0 0
    %1465 = vmatprep.subr.bf16.mxu0 0
    %1466 = vmatpush1.bf16.msra.mxu0 0
    %1467 = vmatprep.subr.bf16.mxu0 0
    %1468 = vmatpush1.bf16.msra.mxu0 0
    %1469 = vmatprep.subr.bf16.mxu0 0
    %1470 = vmatpush1.bf16.msra.mxu0 0
    %1471 = vmatprep.subr.bf16.mxu0 0
    %1472 = vmatpush1.bf16.msra.mxu0 0
    %1473 = vmatprep.subr.bf16.mxu0 0
    %1474 = vmatpush1.bf16.msra.mxu0 0
    %1475 = vmatprep.subr.bf16.mxu0 0
    %1476 = vmatpush1.bf16.msra.mxu0 0
    %1477 = vmatprep.mubr.bf16.mxu0 0
    %1478 = vmatmul.mubr.bf16.gmra.mrb[0].mxu0 %v1366
    %v1479 = vpop.f32.mrb[0].mxu0
    %v1480 = vadd.f32 %v1395, %v1479
    %v1481 = vpop.f32.mrb[0].mxu0
    %v1482 = vpop.f32.mrb[0].mxu0
    %v1483 = vadd.f32 %v1395, %v1482
    %v1484 = vpop.f32.mrb[0].mxu0
    %1485 = vmatprep.mubr.bf16.mxu0 0
    %1486 = vmatmul.mubr.bf16.gmra.mrb[0].mxu0 %v1367
    %v1487 = vpop.f32.mrb[0].mxu0
    %v1488 = vadd.f32 %v1395, %v1487
    %v1489 = vpop.f32.mrb[0].mxu0
    %v1490 = vpop.f32.mrb[0].mxu0
    %v1491 = vadd.f32 %v1395, %v1490
    %v1492 = vpop.f32.mrb[0].mxu0
    %1493 = vmatprep.mubr.bf16.mxu0 0
    %1494 = vmatmul.mubr.bf16.gmra.mrb[0].mxu0 %v1368
    %v1495 = vpop.f32.mrb[0].mxu0
    %v1496 = vadd.f32 %v1395, %v1495
    %v1497 = vpop.f32.mrb[0].mxu0
    %v1498 = vpop.f32.mrb[0].mxu0
    %v1499 = vadd.f32 %v1395, %v1498
    %v1500 = vpop.f32.mrb[0].mxu0
    %1501 = vmatprep.mubr.bf16.mxu0 0
    %1502 = vmatmul.mubr.bf16.gmra.mrb[0].mxu0 %v1369
    %v1503 = vpop.f32.mrb[0].mxu0
    %v1504 = vadd.f32 %v1395, %v1503
    %v1505 = vpop.f32.mrb[0].mxu0
    %v1506 = vpop.f32.mrb[0].mxu0
    %v1507 = vadd.f32 %v1395, %v1506
    %v1508 = vpop.f32.mrb[0].mxu0
    %1509 = vmatprep.mubr.bf16.mxu0 0
    %1510 = vmatmul.mubr.bf16.gmra.mrb[0].mxu0 %v1370
    %v1511 = vpop.f32.mrb[0].mxu0
    %v1512 = vadd.f32 %v1395, %v1511
    %v1513 = vpop.f32.mrb[0].mxu0
    %v1514 = vpop.f32.mrb[0].mxu0
    %v1515 = vadd.f32 %v1395, %v1514
    %v1516 = vpop.f32.mrb[0].mxu0
    %1517 = vmatprep.mubr.bf16.mxu0 0
    %1518 = vmatmul.mubr.bf16.gmra.mrb[0].mxu0 %v1371
    %v1519 = vpop.f32.mrb[0].mxu0
    %v1520 = vadd.f32 %v1395, %v1519
    %v1521 = vpop.f32.mrb[0].mxu0
    %v1522 = vpop.f32.mrb[0].mxu0
    %v1523 = vadd.f32 %v1395, %v1522
    %v1524 = vpop.f32.mrb[0].mxu0
    %1525 = vmatprep.mubr.bf16.mxu0 0
    %1526 = vmatmul.mubr.bf16.gmra.mrb[0].mxu0 %v1372
    %v1527 = vpop.f32.mrb[0].mxu0
    %v1528 = vadd.f32 %v1395, %v1527
    %v1529 = vpop.f32.mrb[0].mxu0
    %v1530 = vpop.f32.mrb[0].mxu0
    %v1531 = vadd.f32 %v1395, %v1530
    %v1532 = vpop.f32.mrb[0].mxu0
    %1533 = vmatprep.mubr.bf16.mxu0 0
    %1534 = vmatmul.mubr.bf16.gmra.mrb[0].mxu0 %v1373
    %v1535 = vpop.f32.mrb[0].mxu0
    %v1536 = vadd.f32 %v1395, %v1535
    %v1537 = vpop.f32.mrb[0].mxu0
    %v1538 = vpop.f32.mrb[0].mxu0
    %v1539 = vadd.f32 %v1395, %v1538
    %v1540 = vpop.f32.mrb[0].mxu0
    %1541 = vdwg.mxu0
    %v1542 = vtanh.pop %v1480
    %v1543 = vtanh.pop %v1483
    %v1544 = vtanh.pop %v1488
    %v1545 = vtanh.pop %v1491
    %v1546 = vtanh.pop %v1496
    %v1547 = vtanh.pop %v1499
    %v1548 = vtanh.pop %v1504
    %v1549 = vtanh.pop %v1507
    %v1550 = vtanh.pop %v1512
    %v1551 = vtanh.pop %v1515
    %v1552 = vtanh.pop %v1520
    %v1553 = vtanh.pop %v1523
    %v1554 = vtanh.pop %v1528
    %v1555 = vtanh.pop %v1531
    %v1556 = vtanh.pop %v1536
    %v1557 = vtanh.pop %v1539
    %v1558 = vmul.f32 %v1542, %v417
    %v1559 = vmul.f32 %v1543, %v419
    %v1560 = vmul.f32 %v1544, %v421
    %v1561 = vmul.f32 %v1545, %v423
    %v1562 = vmul.f32 %v1546, %v425
    %v1563 = vmul.f32 %v1547, %v427
    %v1564 = vmul.f32 %v1548, %v429
    %v1565 = vmul.f32 %v1549, %v431
    %v1566 = vmul.f32 %v1550, %v433
    %v1567 = vmul.f32 %v1551, %v435
    %v1568 = vmul.f32 %v1552, %v437
    %v1569 = vmul.f32 %v1553, %v439
    %v1570 = vmul.f32 %v1554, %v441
    %v1571 = vmul.f32 %v1555, %v443
    %v1572 = vmul.f32 %v1556, %v445
    %v1573 = vmul.f32 %v1557, %v447
    %v1574 = vpack.c.bf16 %v1559, %v1558
    %v1575 = vpack.c.bf16 %v1561, %v1560
    %v1576 = vpack.c.bf16 %v1563, %v1562
    %v1577 = vpack.c.bf16 %v1565, %v1564
    %v1578 = vpack.c.bf16 %v1567, %v1566
    %v1579 = vpack.c.bf16 %v1569, %v1568
    %v1580 = vpack.c.bf16 %v1571, %v1570
    %v1581 = vpack.c.bf16 %v1573, %v1572
    %s1582 = scalar_lea.vmem [#allocation10], 64
    %v1583 = vld [vmem:[%s1582] sm:$0xf]
    %v1584 = vld [vmem:[%s1582 + $0x4] sm:$0xf]
    %v1585 = vld [vmem:[%s1582 + $0x8] sm:$0xf]
    %v1586 = vld [vmem:[%s1582 + $0xc] sm:$0xf]
    %v1587 = vld [vmem:[%s1582 + $0x10] sm:$0xf]
    %v1588 = vld [vmem:[%s1582 + $0x14] sm:$0xf]
    %v1589 = vld [vmem:[%s1582 + $0x18] sm:$0xf]
    %v1590 = vld [vmem:[%s1582 + $0x1c] sm:$0xf]
    %v1591 = vld [vmem:[%s1582 + $0x20] sm:$0xf]
    %v1592 = vld [vmem:[%s1582 + $0x24] sm:$0xf]
    %v1593 = vld [vmem:[%s1582 + $0x28] sm:$0xf]
    %v1594 = vld [vmem:[%s1582 + $0x2c] sm:$0xf]
    %v1595 = vld [vmem:[%s1582 + $0x30] sm:$0xf]
    %v1596 = vld [vmem:[%s1582 + $0x34] sm:$0xf]
    %v1597 = vld [vmem:[%s1582 + $0x38] sm:$0xf]
    %v1598 = vld [vmem:[%s1582 + $0x3c] sm:$0xf]
    %s1599 = scalar_lea.vmem %s6, 1
    %v1600 = vld [vmem:[%s1599] sm:$0x1]
    %v1602 = vlaneseq
    %v1603 = vshrl.u32 %v1602, 7
    %v1604 = vsub.s32 0, %v1603
    %v1605 = vrot.slane %v1600, %v1604
    %v1623 = vunpack.c.l.b16 %v1583
    %v1624 = vunpack.c.l.b16 %v1584
    %v1625 = vunpack.c.l.b16 %v1585
    %v1626 = vunpack.c.l.b16 %v1586
    %v1627 = vunpack.c.l.b16 %v1587
    %v1628 = vunpack.c.l.b16 %v1588
    %v1629 = vunpack.c.l.b16 %v1589
    %v1630 = vunpack.c.l.b16 %v1590
    %v1631 = vunpack.c.l.b16 %v1591
    %v1632 = vunpack.c.l.b16 %v1592
    %v1633 = vunpack.c.l.b16 %v1593
    %v1634 = vunpack.c.l.b16 %v1594
    %v1635 = vunpack.c.l.b16 %v1595
    %v1636 = vunpack.c.l.b16 %v1596
    %v1637 = vunpack.c.l.b16 %v1597
    %v1638 = vunpack.c.l.b16 %v1598
    %v1639 = vpack.c.b16 %v1624, %v1623
    %v1640 = vpack.c.b16 %v1626, %v1625
    %v1641 = vpack.c.b16 %v1628, %v1627
    %v1642 = vpack.c.b16 %v1630, %v1629
    %v1643 = vpack.c.b16 %v1632, %v1631
    %v1644 = vpack.c.b16 %v1634, %v1633
    %v1645 = vpack.c.b16 %v1636, %v1635
    %v1646 = vpack.c.b16 %v1638, %v1637
    %1655 = vmatprep.subr.bf16.mxu0 0
    %1656 = vmatpush1.bf16.msra.mxu0 %v1639
    %1657 = vmatprep.subr.bf16.mxu0 0
    %1658 = vmatpush1.bf16.msra.mxu0 %v1640
    %1659 = vmatprep.subr.bf16.mxu0 0
    %1660 = vmatpush1.bf16.msra.mxu0 %v1641
    %1661 = vmatprep.subr.bf16.mxu0 0
    %1662 = vmatpush1.bf16.msra.mxu0 %v1642
    %1663 = vmatprep.subr.bf16.mxu0 0
    %1664 = vmatpush1.bf16.msra.mxu0 %v1643
    %1665 = vmatprep.subr.bf16.mxu0 0
    %1666 = vmatpush1.bf16.msra.mxu0 %v1644
    %1667 = vmatprep.subr.bf16.mxu0 0
    %1668 = vmatpush1.bf16.msra.mxu0 %v1645
    %1669 = vmatprep.subr.bf16.mxu0 0
    %1670 = vmatpush1.bf16.msra.mxu0 %v1646
    %1671 = vmatprep.subr.bf16.mxu0 0
    %1672 = vmatpush1.bf16.msra.mxu0 0
    %1673 = vmatprep.subr.bf16.mxu0 0
    %1674 = vmatpush1.bf16.msra.mxu0 0
    %1675 = vmatprep.subr.bf16.mxu0 0
    %1676 = vmatpush1.bf16.msra.mxu0 0
    %1677 = vmatprep.subr.bf16.mxu0 0
    %1678 = vmatpush1.bf16.msra.mxu0 0
    %1679 = vmatprep.subr.bf16.mxu0 0
    %1680 = vmatpush1.bf16.msra.mxu0 0
    %1681 = vmatprep.subr.bf16.mxu0 0
    %1682 = vmatpush1.bf16.msra.mxu0 0
    %1683 = vmatprep.subr.bf16.mxu0 0
    %1684 = vmatpush1.bf16.msra.mxu0 0
    %1685 = vmatprep.subr.bf16.mxu0 0
    %1686 = vmatpush1.bf16.msra.mxu0 0
    %1687 = vmatprep.mubr.bf16.mxu0 0
    %1688 = vmatmul.mubr.bf16.gmra.mrb[0].mxu0 %v1574
    %v1689 = vpop.f32.mrb[0].mxu0
    %v1690 = vadd.f32 %v1605, %v1689
    %v1691 = vpop.f32.mrb[0].mxu0
    %v1692 = vpop.f32.mrb[0].mxu0
    %v1693 = vadd.f32 %v1605, %v1692
    %v1694 = vpop.f32.mrb[0].mxu0
    %1695 = vmatprep.mubr.bf16.mxu0 0
    %1696 = vmatmul.mubr.bf16.gmra.mrb[0].mxu0 %v1575
    %v1697 = vpop.f32.mrb[0].mxu0
    %v1698 = vadd.f32 %v1605, %v1697
    %v1699 = vpop.f32.mrb[0].mxu0
    %v1700 = vpop.f32.mrb[0].mxu0
    %v1701 = vadd.f32 %v1605, %v1700
    %v1702 = vpop.f32.mrb[0].mxu0
    %1703 = vmatprep.mubr.bf16.mxu0 0
    %1704 = vmatmul.mubr.bf16.gmra.mrb[0].mxu0 %v1576
    %v1705 = vpop.f32.mrb[0].mxu0
    %v1706 = vadd.f32 %v1605, %v1705
    %v1707 = vpop.f32.mrb[0].mxu0
    %v1708 = vpop.f32.mrb[0].mxu0
    %v1709 = vadd.f32 %v1605, %v1708
    %v1710 = vpop.f32.mrb[0].mxu0
    %1711 = vmatprep.mubr.bf16.mxu0 0
    %1712 = vmatmul.mubr.bf16.gmra.mrb[0].mxu0 %v1577
    %v1713 = vpop.f32.mrb[0].mxu0
    %v1714 = vadd.f32 %v1605, %v1713
    %v1715 = vpop.f32.mrb[0].mxu0
    %v1716 = vpop.f32.mrb[0].mxu0
    %v1717 = vadd.f32 %v1605, %v1716
    %v1718 = vpop.f32.mrb[0].mxu0
    %1719 = vmatprep.mubr.bf16.mxu0 0
    %1720 = vmatmul.mubr.bf16.gmra.mrb[0].mxu0 %v1578
    %v1721 = vpop.f32.mrb[0].mxu0
    %v1722 = vadd.f32 %v1605, %v1721
    %v1723 = vpop.f32.mrb[0].mxu0
    %v1724 = vpop.f32.mrb[0].mxu0
    %v1725 = vadd.f32 %v1605, %v1724
    %v1726 = vpop.f32.mrb[0].mxu0
    %1727 = vmatprep.mubr.bf16.mxu0 0
    %1728 = vmatmul.mubr.bf16.gmra.mrb[0].mxu0 %v1579
    %v1729 = vpop.f32.mrb[0].mxu0
    %v1730 = vadd.f32 %v1605, %v1729
    %v1731 = vpop.f32.mrb[0].mxu0
    %v1732 = vpop.f32.mrb[0].mxu0
    %v1733 = vadd.f32 %v1605, %v1732
    %v1734 = vpop.f32.mrb[0].mxu0
    %1735 = vmatprep.mubr.bf16.mxu0 0
    %1736 = vmatmul.mubr.bf16.gmra.mrb[0].mxu0 %v1580
    %v1737 = vpop.f32.mrb[0].mxu0
    %v1738 = vadd.f32 %v1605, %v1737
    %v1739 = vpop.f32.mrb[0].mxu0
    %v1740 = vpop.f32.mrb[0].mxu0
    %v1741 = vadd.f32 %v1605, %v1740
    %v1742 = vpop.f32.mrb[0].mxu0
    %1743 = vmatprep.mubr.bf16.mxu0 0
    %1744 = vmatmul.mubr.bf16.gmra.mrb[0].mxu0 %v1581
    %v1745 = vpop.f32.mrb[0].mxu0
    %v1746 = vadd.f32 %v1605, %v1745
    %v1747 = vpop.f32.mrb[0].mxu0
    %v1748 = vpop.f32.mrb[0].mxu0
    %v1749 = vadd.f32 %v1605, %v1748
    %v1750 = vpop.f32.mrb[0].mxu0
    %1751 = vdwg.mxu0
    %v1752 = vtanh.pop %v1690
    %v1753 = vtanh.pop %v1693
    %v1754 = vtanh.pop %v1698
    %v1755 = vtanh.pop %v1701
    %v1756 = vtanh.pop %v1706
    %v1757 = vtanh.pop %v1709
    %v1758 = vtanh.pop %v1714
    %v1759 = vtanh.pop %v1717
    %v1760 = vtanh.pop %v1722
    %v1761 = vtanh.pop %v1725
    %v1762 = vtanh.pop %v1730
    %v1763 = vtanh.pop %v1733
    %v1764 = vtanh.pop %v1738
    %v1765 = vtanh.pop %v1741
    %v1766 = vtanh.pop %v1746
    %v1767 = vtanh.pop %v1749
    %v1768 = vmul.f32 %v1752, %v417
    %v1769 = vmul.f32 %v1753, %v419
    %v1770 = vmul.f32 %v1754, %v421
    %v1771 = vmul.f32 %v1755, %v423
    %v1772 = vmul.f32 %v1756, %v425
    %v1773 = vmul.f32 %v1757, %v427
    %v1774 = vmul.f32 %v1758, %v429
    %v1775 = vmul.f32 %v1759, %v431
    %v1776 = vmul.f32 %v1760, %v433
    %v1777 = vmul.f32 %v1761, %v435
    %v1778 = vmul.f32 %v1762, %v437
    %v1779 = vmul.f32 %v1763, %v439
    %v1780 = vmul.f32 %v1764, %v441
    %v1781 = vmul.f32 %v1765, %v443
    %v1782 = vmul.f32 %v1766, %v445
    %v1783 = vmul.f32 %v1767, %v447
    %v1784 = vpack.c.bf16 %v1769, %v1768
    %v1785 = vpack.c.bf16 %v1771, %v1770
    %v1786 = vpack.c.bf16 %v1773, %v1772
    %v1787 = vpack.c.bf16 %v1775, %v1774
    %v1788 = vpack.c.bf16 %v1777, %v1776
    %v1789 = vpack.c.bf16 %v1779, %v1778
    %v1790 = vpack.c.bf16 %v1781, %v1780
    %v1791 = vpack.c.bf16 %v1783, %v1782
    %s1792 = scalar_lea.vmem [#allocation10], 128
    %v1793 = vld [vmem:[%s1792] sm:$0xf]
    %v1794 = vld [vmem:[%s1792 + $0x4] sm:$0xf]
    %v1795 = vld [vmem:[%s1792 + $0x8] sm:$0xf]
    %v1796 = vld [vmem:[%s1792 + $0xc] sm:$0xf]
    %v1797 = vld [vmem:[%s1792 + $0x10] sm:$0xf]
    %v1798 = vld [vmem:[%s1792 + $0x14] sm:$0xf]
    %v1799 = vld [vmem:[%s1792 + $0x18] sm:$0xf]
    %v1800 = vld [vmem:[%s1792 + $0x1c] sm:$0xf]
    %v1801 = vld [vmem:[%s1792 + $0x20] sm:$0xf]
    %v1802 = vld [vmem:[%s1792 + $0x24] sm:$0xf]
    %v1803 = vld [vmem:[%s1792 + $0x28] sm:$0xf]
    %v1804 = vld [vmem:[%s1792 + $0x2c] sm:$0xf]
    %v1805 = vld [vmem:[%s1792 + $0x30] sm:$0xf]
    %v1806 = vld [vmem:[%s1792 + $0x34] sm:$0xf]
    %v1807 = vld [vmem:[%s1792 + $0x38] sm:$0xf]
    %v1808 = vld [vmem:[%s1792 + $0x3c] sm:$0xf]
    %s1809 = scalar_lea.vmem %s6, 2
    %v1810 = vld [vmem:[%s1809] sm:$0x1]
    %v1812 = vlaneseq
    %v1813 = vshrl.u32 %v1812, 7
    %v1814 = vsub.s32 0, %v1813
    %v1815 = vrot.slane %v1810, %v1814
    %v1833 = vunpack.c.l.b16 %v1793
    %v1834 = vunpack.c.l.b16 %v1794
    %v1835 = vunpack.c.l.b16 %v1795
    %v1836 = vunpack.c.l.b16 %v1796
    %v1837 = vunpack.c.l.b16 %v1797
    %v1838 = vunpack.c.l.b16 %v1798
    %v1839 = vunpack.c.l.b16 %v1799
    %v1840 = vunpack.c.l.b16 %v1800
    %v1841 = vunpack.c.l.b16 %v1801
    %v1842 = vunpack.c.l.b16 %v1802
    %v1843 = vunpack.c.l.b16 %v1803
    %v1844 = vunpack.c.l.b16 %v1804
    %v1845 = vunpack.c.l.b16 %v1805
    %v1846 = vunpack.c.l.b16 %v1806
    %v1847 = vunpack.c.l.b16 %v1807
    %v1848 = vunpack.c.l.b16 %v1808
    %v1849 = vpack.c.b16 %v1834, %v1833
    %v1850 = vpack.c.b16 %v1836, %v1835
    %v1851 = vpack.c.b16 %v1838, %v1837
    %v1852 = vpack.c.b16 %v1840, %v1839
    %v1853 = vpack.c.b16 %v1842, %v1841
    %v1854 = vpack.c.b16 %v1844, %v1843
    %v1855 = vpack.c.b16 %v1846, %v1845
    %v1856 = vpack.c.b16 %v1848, %v1847
    %1865 = vmatprep.subr.bf16.mxu0 0
    %1866 = vmatpush1.bf16.msra.mxu0 %v1849
    %1867 = vmatprep.subr.bf16.mxu0 0
    %1868 = vmatpush1.bf16.msra.mxu0 %v1850
    %1869 = vmatprep.subr.bf16.mxu0 0
    %1870 = vmatpush1.bf16.msra.mxu0 %v1851
    %1871 = vmatprep.subr.bf16.mxu0 0
    %1872 = vmatpush1.bf16.msra.mxu0 %v1852
    %1873 = vmatprep.subr.bf16.mxu0 0
    %1874 = vmatpush1.bf16.msra.mxu0 %v1853
    %1875 = vmatprep.subr.bf16.mxu0 0
    %1876 = vmatpush1.bf16.msra.mxu0 %v1854
    %1877 = vmatprep.subr.bf16.mxu0 0
    %1878 = vmatpush1.bf16.msra.mxu0 %v1855
    %1879 = vmatprep.subr.bf16.mxu0 0
    %1880 = vmatpush1.bf16.msra.mxu0 %v1856
    %1881 = vmatprep.subr.bf16.mxu0 0
    %1882 = vmatpush1.bf16.msra.mxu0 0
    %1883 = vmatprep.subr.bf16.mxu0 0
    %1884 = vmatpush1.bf16.msra.mxu0 0
    %1885 = vmatprep.subr.bf16.mxu0 0
    %1886 = vmatpush1.bf16.msra.mxu0 0
    %1887 = vmatprep.subr.bf16.mxu0 0
    %1888 = vmatpush1.bf16.msra.mxu0 0
    %1889 = vmatprep.subr.bf16.mxu0 0
    %1890 = vmatpush1.bf16.msra.mxu0 0
    %1891 = vmatprep.subr.bf16.mxu0 0
    %1892 = vmatpush1.bf16.msra.mxu0 0
    %1893 = vmatprep.subr.bf16.mxu0 0
    %1894 = vmatpush1.bf16.msra.mxu0 0
    %1895 = vmatprep.subr.bf16.mxu0 0
    %1896 = vmatpush1.bf16.msra.mxu0 0
    %1897 = vmatprep.mubr.bf16.mxu0 0
    %1898 = vmatmul.mubr.bf16.gmra.mrb[0].mxu0 %v1784
    %v1899 = vpop.f32.mrb[0].mxu0
    %v1900 = vadd.f32 %v1815, %v1899
    %v1901 = vpop.f32.mrb[0].mxu0
    %v1902 = vpop.f32.mrb[0].mxu0
    %v1903 = vadd.f32 %v1815, %v1902
    %v1904 = vpop.f32.mrb[0].mxu0
    %1905 = vmatprep.mubr.bf16.mxu0 0
    %1906 = vmatmul.mubr.bf16.gmra.mrb[0].mxu0 %v1785
    %v1907 = vpop.f32.mrb[0].mxu0
    %v1908 = vadd.f32 %v1815, %v1907
    %v1909 = vpop.f32.mrb[0].mxu0
    %v1910 = vpop.f32.mrb[0].mxu0
    %v1911 = vadd.f32 %v1815, %v1910
    %v1912 = vpop.f32.mrb[0].mxu0
    %1913 = vmatprep.mubr.bf16.mxu0 0
    %1914 = vmatmul.mubr.bf16.gmra.mrb[0].mxu0 %v1786
    %v1915 = vpop.f32.mrb[0].mxu0
    %v1916 = vadd.f32 %v1815, %v1915
    %v1917 = vpop.f32.mrb[0].mxu0
    %v1918 = vpop.f32.mrb[0].mxu0
    %v1919 = vadd.f32 %v1815, %v1918
    %v1920 = vpop.f32.mrb[0].mxu0
    %1921 = vmatprep.mubr.bf16.mxu0 0
    %1922 = vmatmul.mubr.bf16.gmra.mrb[0].mxu0 %v1787
    %v1923 = vpop.f32.mrb[0].mxu0
    %v1924 = vadd.f32 %v1815, %v1923
    %v1925 = vpop.f32.mrb[0].mxu0
    %v1926 = vpop.f32.mrb[0].mxu0
    %v1927 = vadd.f32 %v1815, %v1926
    %v1928 = vpop.f32.mrb[0].mxu0
    %1929 = vmatprep.mubr.bf16.mxu0 0
    %1930 = vmatmul.mubr.bf16.gmra.mrb[0].mxu0 %v1788
    %v1931 = vpop.f32.mrb[0].mxu0
    %v1932 = vadd.f32 %v1815, %v1931
    %v1933 = vpop.f32.mrb[0].mxu0
    %v1934 = vpop.f32.mrb[0].mxu0
    %v1935 = vadd.f32 %v1815, %v1934
    %v1936 = vpop.f32.mrb[0].mxu0
    %1937 = vmatprep.mubr.bf16.mxu0 0
    %1938 = vmatmul.mubr.bf16.gmra.mrb[0].mxu0 %v1789
    %v1939 = vpop.f32.mrb[0].mxu0
    %v1940 = vadd.f32 %v1815, %v1939
    %v1941 = vpop.f32.mrb[0].mxu0
    %v1942 = vpop.f32.mrb[0].mxu0
    %v1943 = vadd.f32 %v1815, %v1942
    %v1944 = vpop.f32.mrb[0].mxu0
    %1945 = vmatprep.mubr.bf16.mxu0 0
    %1946 = vmatmul.mubr.bf16.gmra.mrb[0].mxu0 %v1790
    %v1947 = vpop.f32.mrb[0].mxu0
    %v1948 = vadd.f32 %v1815, %v1947
    %v1949 = vpop.f32.mrb[0].mxu0
    %v1950 = vpop.f32.mrb[0].mxu0
    %v1951 = vadd.f32 %v1815, %v1950
    %v1952 = vpop.f32.mrb[0].mxu0
    %1953 = vmatprep.mubr.bf16.mxu0 0
    %1954 = vmatmul.mubr.bf16.gmra.mrb[0].mxu0 %v1791
    %v1955 = vpop.f32.mrb[0].mxu0
    %v1956 = vadd.f32 %v1815, %v1955
    %v1957 = vpop.f32.mrb[0].mxu0
    %v1958 = vpop.f32.mrb[0].mxu0
    %v1959 = vadd.f32 %v1815, %v1958
    %v1960 = vpop.f32.mrb[0].mxu0
    %1961 = vdwg.mxu0
    %v1962 = vtanh.pop %v1900
    %v1963 = vtanh.pop %v1903
    %v1964 = vtanh.pop %v1908
    %v1965 = vtanh.pop %v1911
    %v1966 = vtanh.pop %v1916
    %v1967 = vtanh.pop %v1919
    %v1968 = vtanh.pop %v1924
    %v1969 = vtanh.pop %v1927
    %v1970 = vtanh.pop %v1932
    %v1971 = vtanh.pop %v1935
    %v1972 = vtanh.pop %v1940
    %v1973 = vtanh.pop %v1943
    %v1974 = vtanh.pop %v1948
    %v1975 = vtanh.pop %v1951
    %v1976 = vtanh.pop %v1956
    %v1977 = vtanh.pop %v1959
    %v1978 = vmul.f32 %v1962, %v417
    %v1979 = vmul.f32 %v1963, %v419
    %v1980 = vmul.f32 %v1964, %v421
    %v1981 = vmul.f32 %v1965, %v423
    %v1982 = vmul.f32 %v1966, %v425
    %v1983 = vmul.f32 %v1967, %v427
    %v1984 = vmul.f32 %v1968, %v429
    %v1985 = vmul.f32 %v1969, %v431
    %v1986 = vmul.f32 %v1970, %v433
    %v1987 = vmul.f32 %v1971, %v435
    %v1988 = vmul.f32 %v1972, %v437
    %v1989 = vmul.f32 %v1973, %v439
    %v1990 = vmul.f32 %v1974, %v441
    %v1991 = vmul.f32 %v1975, %v443
    %v1992 = vmul.f32 %v1976, %v445
    %v1993 = vmul.f32 %v1977, %v447
    %v1994 = vpack.c.bf16 %v1979, %v1978
    %v1995 = vpack.c.bf16 %v1981, %v1980
    %v1996 = vpack.c.bf16 %v1983, %v1982
    %v1997 = vpack.c.bf16 %v1985, %v1984
    %v1998 = vpack.c.bf16 %v1987, %v1986
    %v1999 = vpack.c.bf16 %v1989, %v1988
    %v2000 = vpack.c.bf16 %v1991, %v1990
    %v2001 = vpack.c.bf16 %v1993, %v1992
    %s2002 = scalar_lea.vmem [#allocation10], 192
    %v2003 = vld [vmem:[%s2002] sm:$0xf]
    %v2004 = vld [vmem:[%s2002 + $0x4] sm:$0xf]
    %v2005 = vld [vmem:[%s2002 + $0x8] sm:$0xf]
    %v2006 = vld [vmem:[%s2002 + $0xc] sm:$0xf]
    %v2007 = vld [vmem:[%s2002 + $0x10] sm:$0xf]
    %v2008 = vld [vmem:[%s2002 + $0x14] sm:$0xf]
    %v2009 = vld [vmem:[%s2002 + $0x18] sm:$0xf]
    %v2010 = vld [vmem:[%s2002 + $0x1c] sm:$0xf]
    %v2011 = vld [vmem:[%s2002 + $0x20] sm:$0xf]
    %v2012 = vld [vmem:[%s2002 + $0x24] sm:$0xf]
    %v2013 = vld [vmem:[%s2002 + $0x28] sm:$0xf]
    %v2014 = vld [vmem:[%s2002 + $0x2c] sm:$0xf]
    %v2015 = vld [vmem:[%s2002 + $0x30] sm:$0xf]
    %v2016 = vld [vmem:[%s2002 + $0x34] sm:$0xf]
    %v2017 = vld [vmem:[%s2002 + $0x38] sm:$0xf]
    %v2018 = vld [vmem:[%s2002 + $0x3c] sm:$0xf]
    %s2019 = scalar_lea.vmem %s6, 3
    %v2020 = vld [vmem:[%s2019] sm:$0x1]
    %v2022 = vlaneseq
    %v2023 = vshrl.u32 %v2022, 7
    %v2024 = vsub.s32 0, %v2023
    %v2025 = vrot.slane %v2020, %v2024
    %v2043 = vunpack.c.l.b16 %v2003
    %v2044 = vunpack.c.l.b16 %v2004
    %v2045 = vunpack.c.l.b16 %v2005
    %v2046 = vunpack.c.l.b16 %v2006
    %v2047 = vunpack.c.l.b16 %v2007
    %v2048 = vunpack.c.l.b16 %v2008
    %v2049 = vunpack.c.l.b16 %v2009
    %v2050 = vunpack.c.l.b16 %v2010
    %v2051 = vunpack.c.l.b16 %v2011
    %v2052 = vunpack.c.l.b16 %v2012
    %v2053 = vunpack.c.l.b16 %v2013
    %v2054 = vunpack.c.l.b16 %v2014
    %v2055 = vunpack.c.l.b16 %v2015
    %v2056 = vunpack.c.l.b16 %v2016
    %v2057 = vunpack.c.l.b16 %v2017
    %v2058 = vunpack.c.l.b16 %v2018
    %v2059 = vpack.c.b16 %v2044, %v2043
    %v2060 = vpack.c.b16 %v2046, %v2045
    %v2061 = vpack.c.b16 %v2048, %v2047
    %v2062 = vpack.c.b16 %v2050, %v2049
    %v2063 = vpack.c.b16 %v2052, %v2051
    %v2064 = vpack.c.b16 %v2054, %v2053
    %v2065 = vpack.c.b16 %v2056, %v2055
    %v2066 = vpack.c.b16 %v2058, %v2057
    %2075 = vmatprep.subr.bf16.mxu0 0
    %2076 = vmatpush1.bf16.msra.mxu0 %v2059
    %2077 = vmatprep.subr.bf16.mxu0 0
    %2078 = vmatpush1.bf16.msra.mxu0 %v2060
    %2079 = vmatprep.subr.bf16.mxu0 0
    %2080 = vmatpush1.bf16.msra.mxu0 %v2061
    %2081 = vmatprep.subr.bf16.mxu0 0
    %2082 = vmatpush1.bf16.msra.mxu0 %v2062
    %2083 = vmatprep.subr.bf16.mxu0 0
    %2084 = vmatpush1.bf16.msra.mxu0 %v2063
    %2085 = vmatprep.subr.bf16.mxu0 0
    %2086 = vmatpush1.bf16.msra.mxu0 %v2064
    %2087 = vmatprep.subr.bf16.mxu0 0
    %2088 = vmatpush1.bf16.msra.mxu0 %v2065
    %2089 = vmatprep.subr.bf16.mxu0 0
    %2090 = vmatpush1.bf16.msra.mxu0 %v2066
    %2091 = vmatprep.subr.bf16.mxu0 0
    %2092 = vmatpush1.bf16.msra.mxu0 0
    %2093 = vmatprep.subr.bf16.mxu0 0
    %2094 = vmatpush1.bf16.msra.mxu0 0
    %2095 = vmatprep.subr.bf16.mxu0 0
    %2096 = vmatpush1.bf16.msra.mxu0 0
    %2097 = vmatprep.subr.bf16.mxu0 0
    %2098 = vmatpush1.bf16.msra.mxu0 0
    %2099 = vmatprep.subr.bf16.mxu0 0
    %2100 = vmatpush1.bf16.msra.mxu0 0
    %2101 = vmatprep.subr.bf16.mxu0 0
    %2102 = vmatpush1.bf16.msra.mxu0 0
    %2103 = vmatprep.subr.bf16.mxu0 0
    %2104 = vmatpush1.bf16.msra.mxu0 0
    %2105 = vmatprep.subr.bf16.mxu0 0
    %2106 = vmatpush1.bf16.msra.mxu0 0
    %2107 = vmatprep.mubr.bf16.mxu0 0
    %2108 = vmatmul.mubr.bf16.gmra.mrb[0].mxu0 %v1994
    %v2109 = vpop.f32.mrb[0].mxu0
    %v2110 = vadd.f32 %v2025, %v2109
    %v2111 = vpop.f32.mrb[0].mxu0
    %v2112 = vpop.f32.mrb[0].mxu0
    %v2113 = vadd.f32 %v2025, %v2112
    %v2114 = vpop.f32.mrb[0].mxu0
    %2115 = vmatprep.mubr.bf16.mxu0 0
    %2116 = vmatmul.mubr.bf16.gmra.mrb[0].mxu0 %v1995
    %v2117 = vpop.f32.mrb[0].mxu0
    %v2118 = vadd.f32 %v2025, %v2117
    %v2119 = vpop.f32.mrb[0].mxu0
    %v2120 = vpop.f32.mrb[0].mxu0
    %v2121 = vadd.f32 %v2025, %v2120
    %v2122 = vpop.f32.mrb[0].mxu0
    %2123 = vmatprep.mubr.bf16.mxu0 0
    %2124 = vmatmul.mubr.bf16.gmra.mrb[0].mxu0 %v1996
    %v2125 = vpop.f32.mrb[0].mxu0
    %v2126 = vadd.f32 %v2025, %v2125
    %v2127 = vpop.f32.mrb[0].mxu0
    %v2128 = vpop.f32.mrb[0].mxu0
    %v2129 = vadd.f32 %v2025, %v2128
    %v2130 = vpop.f32.mrb[0].mxu0
    %2131 = vmatprep.mubr.bf16.mxu0 0
    %2132 = vmatmul.mubr.bf16.gmra.mrb[0].mxu0 %v1997
    %v2133 = vpop.f32.mrb[0].mxu0
    %v2134 = vadd.f32 %v2025, %v2133
    %v2135 = vpop.f32.mrb[0].mxu0
    %v2136 = vpop.f32.mrb[0].mxu0
    %v2137 = vadd.f32 %v2025, %v2136
    %v2138 = vpop.f32.mrb[0].mxu0
    %2139 = vmatprep.mubr.bf16.mxu0 0
    %2140 = vmatmul.mubr.bf16.gmra.mrb[0].mxu0 %v1998
    %v2141 = vpop.f32.mrb[0].mxu0
    %v2142 = vadd.f32 %v2025, %v2141
    %v2143 = vpop.f32.mrb[0].mxu0
    %v2144 = vpop.f32.mrb[0].mxu0
    %v2145 = vadd.f32 %v2025, %v2144
    %v2146 = vpop.f32.mrb[0].mxu0
    %2147 = vmatprep.mubr.bf16.mxu0 0
    %2148 = vmatmul.mubr.bf16.gmra.mrb[0].mxu0 %v1999
    %v2149 = vpop.f32.mrb[0].mxu0
    %v2150 = vadd.f32 %v2025, %v2149
    %v2151 = vpop.f32.mrb[0].mxu0
    %v2152 = vpop.f32.mrb[0].mxu0
    %v2153 = vadd.f32 %v2025, %v2152
    %v2154 = vpop.f32.mrb[0].mxu0
    %2155 = vmatprep.mubr.bf16.mxu0 0
    %2156 = vmatmul.mubr.bf16.gmra.mrb[0].mxu0 %v2000
    %v2157 = vpop.f32.mrb[0].mxu0
    %v2158 = vadd.f32 %v2025, %v2157
    %v2159 = vpop.f32.mrb[0].mxu0
    %v2160 = vpop.f32.mrb[0].mxu0
    %v2161 = vadd.f32 %v2025, %v2160
    %v2162 = vpop.f32.mrb[0].mxu0
    %2163 = vmatprep.mubr.bf16.mxu0 0
    %2164 = vmatmul.mubr.bf16.gmra.mrb[0].mxu0 %v2001
    %v2165 = vpop.f32.mrb[0].mxu0
    %v2166 = vadd.f32 %v2025, %v2165
    %v2167 = vpop.f32.mrb[0].mxu0
    %v2168 = vpop.f32.mrb[0].mxu0
    %v2169 = vadd.f32 %v2025, %v2168
    %v2170 = vpop.f32.mrb[0].mxu0
    %2171 = vdwg.mxu0
    %v2172 = vtanh.pop %v2110
    %v2173 = vtanh.pop %v2113
    %v2174 = vtanh.pop %v2118
    %v2175 = vtanh.pop %v2121
    %v2176 = vtanh.pop %v2126
    %v2177 = vtanh.pop %v2129
    %v2178 = vtanh.pop %v2134
    %v2179 = vtanh.pop %v2137
    %v2180 = vtanh.pop %v2142
    %v2181 = vtanh.pop %v2145
    %v2182 = vtanh.pop %v2150
    %v2183 = vtanh.pop %v2153
    %v2184 = vtanh.pop %v2158
    %v2185 = vtanh.pop %v2161
    %v2186 = vtanh.pop %v2166
    %v2187 = vtanh.pop %v2169
    %v2188 = vmul.f32 %v2172, %v417
    %v2189 = vmul.f32 %v2173, %v419
    %v2190 = vmul.f32 %v2174, %v421
    %v2191 = vmul.f32 %v2175, %v423
    %v2192 = vmul.f32 %v2176, %v425
    %v2193 = vmul.f32 %v2177, %v427
    %v2194 = vmul.f32 %v2178, %v429
    %v2195 = vmul.f32 %v2179, %v431
    %v2196 = vmul.f32 %v2180, %v433
    %v2197 = vmul.f32 %v2181, %v435
    %v2198 = vmul.f32 %v2182, %v437
    %v2199 = vmul.f32 %v2183, %v439
    %v2200 = vmul.f32 %v2184, %v441
    %v2201 = vmul.f32 %v2185, %v443
    %v2202 = vmul.f32 %v2186, %v445
    %v2203 = vmul.f32 %v2187, %v447
    %v2204 = vpack.c.bf16 %v2189, %v2188
    %v2205 = vpack.c.bf16 %v2191, %v2190
    %v2206 = vpack.c.bf16 %v2193, %v2192
    %v2207 = vpack.c.bf16 %v2195, %v2194
    %v2208 = vpack.c.bf16 %v2197, %v2196
    %v2209 = vpack.c.bf16 %v2199, %v2198
    %v2210 = vpack.c.bf16 %v2201, %v2200
    %v2211 = vpack.c.bf16 %v2203, %v2202
    %2212 = vmatprep.subr.bf16.mxu0 0
    %2213 = vmatpush1.bf16.msra.mxu0 %v1429
    %2214 = vmatprep.subr.bf16.mxu0 0
    %2215 = vmatpush1.bf16.msra.mxu0 %v1430
    %2216 = vmatprep.subr.bf16.mxu0 0
    %2217 = vmatpush1.bf16.msra.mxu0 %v1431
    %2218 = vmatprep.subr.bf16.mxu0 0
    %2219 = vmatpush1.bf16.msra.mxu0 %v1432
    %2220 = vmatprep.subr.bf16.mxu0 0
    %2221 = vmatpush1.bf16.msra.mxu0 %v1433
    %2222 = vmatprep.subr.bf16.mxu0 0
    %2223 = vmatpush1.bf16.msra.mxu0 %v1434
    %2224 = vmatprep.subr.bf16.mxu0 0
    %2225 = vmatpush1.bf16.msra.mxu0 %v1435
    %2226 = vmatprep.subr.bf16.mxu0 0
    %2227 = vmatpush1.bf16.msra.mxu0 %v1436
    %2228 = vmatprep.subr.bf16.mxu0 0
    %2229 = vmatpush1.bf16.msra.mxu0 0
    %2230 = vmatprep.subr.bf16.mxu0 0
    %2231 = vmatpush1.bf16.msra.mxu0 0
    %2232 = vmatprep.subr.bf16.mxu0 0
    %2233 = vmatpush1.bf16.msra.mxu0 0
    %2234 = vmatprep.subr.bf16.mxu0 0
    %2235 = vmatpush1.bf16.msra.mxu0 0
    %2236 = vmatprep.subr.bf16.mxu0 0
    %2237 = vmatpush1.bf16.msra.mxu0 0
    %2238 = vmatprep.subr.bf16.mxu0 0
    %2239 = vmatpush1.bf16.msra.mxu0 0
    %2240 = vmatprep.subr.bf16.mxu0 0
    %2241 = vmatpush1.bf16.msra.mxu0 0
    %2242 = vmatprep.subr.bf16.mxu0 0
    %2243 = vmatpush1.bf16.msra.mxu0 0
    %2244 = vmatprep.mubr.bf16.mxu0 0
    %2245 = vmatmul.mubr.bf16.gmra.mrb[0].mxu0 %v2204
    %v2246 = vpop.f32.mrb[0].mxu0
    %v2247 = vadd.f32 %v1395, %v2246
    %v2248 = vpop.f32.mrb[0].mxu0
    %v2249 = vpop.f32.mrb[0].mxu0
    %v2250 = vadd.f32 %v1395, %v2249
    %v2251 = vpop.f32.mrb[0].mxu0
    %2252 = vmatprep.mubr.bf16.mxu0 0
    %2253 = vmatmul.mubr.bf16.gmra.mrb[0].mxu0 %v2205
    %v2254 = vpop.f32.mrb[0].mxu0
    %v2255 = vadd.f32 %v1395, %v2254
    %v2256 = vpop.f32.mrb[0].mxu0
    %v2257 = vpop.f32.mrb[0].mxu0
    %v2258 = vadd.f32 %v1395, %v2257
    %v2259 = vpop.f32.mrb[0].mxu0
    %2260 = vmatprep.mubr.bf16.mxu0 0
    %2261 = vmatmul.mubr.bf16.gmra.mrb[0].mxu0 %v2206
    %v2262 = vpop.f32.mrb[0].mxu0
    %v2263 = vadd.f32 %v1395, %v2262
    %v2264 = vpop.f32.mrb[0].mxu0
    %v2265 = vpop.f32.mrb[0].mxu0
    %v2266 = vadd.f32 %v1395, %v2265
    %v2267 = vpop.f32.mrb[0].mxu0
    %2268 = vmatprep.mubr.bf16.mxu0 0
    %2269 = vmatmul.mubr.bf16.gmra.mrb[0].mxu0 %v2207
    %v2270 = vpop.f32.mrb[0].mxu0
    %v2271 = vadd.f32 %v1395, %v2270
    %v2272 = vpop.f32.mrb[0].mxu0
    %v2273 = vpop.f32.mrb[0].mxu0
    %v2274 = vadd.f32 %v1395, %v2273
    %v2275 = vpop.f32.mrb[0].mxu0
    %2276 = vmatprep.mubr.bf16.mxu0 0
    %2277 = vmatmul.mubr.bf16.gmra.mrb[0].mxu0 %v2208
    %v2278 = vpop.f32.mrb[0].mxu0
    %v2279 = vadd.f32 %v1395, %v2278
    %v2280 = vpop.f32.mrb[0].mxu0
    %v2281 = vpop.f32.mrb[0].mxu0
    %v2282 = vadd.f32 %v1395, %v2281
    %v2283 = vpop.f32.mrb[0].mxu0
    %2284 = vmatprep.mubr.bf16.mxu0 0
    %2285 = vmatmul.mubr.bf16.gmra.mrb[0].mxu0 %v2209
    %v2286 = vpop.f32.mrb[0].mxu0
    %v2287 = vadd.f32 %v1395, %v2286
    %v2288 = vpop.f32.mrb[0].mxu0
    %v2289 = vpop.f32.mrb[0].mxu0
    %v2290 = vadd.f32 %v1395, %v2289
    %v2291 = vpop.f32.mrb[0].mxu0
    %2292 = vmatprep.mubr.bf16.mxu0 0
    %2293 = vmatmul.mubr.bf16.gmra.mrb[0].mxu0 %v2210
    %v2294 = vpop.f32.mrb[0].mxu0
    %v2295 = vadd.f32 %v1395, %v2294
    %v2296 = vpop.f32.mrb[0].mxu0
    %v2297 = vpop.f32.mrb[0].mxu0
    %v2298 = vadd.f32 %v1395, %v2297
    %v2299 = vpop.f32.mrb[0].mxu0
    %2300 = vmatprep.mubr.bf16.mxu0 0
    %2301 = vmatmul.mubr.bf16.gmra.mrb[0].mxu0 %v2211
    %v2302 = vpop.f32.mrb[0].mxu0
    %v2303 = vadd.f32 %v1395, %v2302
    %v2304 = vpop.f32.mrb[0].mxu0
    %v2305 = vpop.f32.mrb[0].mxu0
    %v2306 = vadd.f32 %v1395, %v2305
    %v2307 = vpop.f32.mrb[0].mxu0
    %2308 = vdwg.mxu0
    %v2309 = vtanh.pop %v2247
    %v2310 = vtanh.pop %v2250
    %v2311 = vtanh.pop %v2255
    %v2312 = vtanh.pop %v2258
    %v2313 = vtanh.pop %v2263
    %v2314 = vtanh.pop %v2266
    %v2315 = vtanh.pop %v2271
    %v2316 = vtanh.pop %v2274
    %v2317 = vtanh.pop %v2279
    %v2318 = vtanh.pop %v2282
    %v2319 = vtanh.pop %v2287
    %v2320 = vtanh.pop %v2290
    %v2321 = vtanh.pop %v2295
    %v2322 = vtanh.pop %v2298
    %v2323 = vtanh.pop %v2303
    %v2324 = vtanh.pop %v2306
    %v2325 = vmul.f32 %v2309, %v417
    %v2326 = vmul.f32 %v2310, %v419
    %v2327 = vmul.f32 %v2311, %v421
    %v2328 = vmul.f32 %v2312, %v423
    %v2329 = vmul.f32 %v2313, %v425
    %v2330 = vmul.f32 %v2314, %v427
    %v2331 = vmul.f32 %v2315, %v429
    %v2332 = vmul.f32 %v2316, %v431
    %v2333 = vmul.f32 %v2317, %v433
    %v2334 = vmul.f32 %v2318, %v435
    %v2335 = vmul.f32 %v2319, %v437
    %v2336 = vmul.f32 %v2320, %v439
    %v2337 = vmul.f32 %v2321, %v441
    %v2338 = vmul.f32 %v2322, %v443
    %v2339 = vmul.f32 %v2323, %v445
    %v2340 = vmul.f32 %v2324, %v447
    %v2341 = vpack.c.bf16 %v2326, %v2325
    %v2342 = vpack.c.bf16 %v2328, %v2327
    %v2343 = vpack.c.bf16 %v2330, %v2329
    %v2344 = vpack.c.bf16 %v2332, %v2331
    %v2345 = vpack.c.bf16 %v2334, %v2333
    %v2346 = vpack.c.bf16 %v2336, %v2335
    %v2347 = vpack.c.bf16 %v2338, %v2337
    %v2348 = vpack.c.bf16 %v2340, %v2339
    %2349 = vmatprep.subr.bf16.mxu0 0
    %2350 = vmatpush1.bf16.msra.mxu0 %v1639
    %2351 = vmatprep.subr.bf16.mxu0 0
    %2352 = vmatpush1.bf16.msra.mxu0 %v1640
    %2353 = vmatprep.subr.bf16.mxu0 0
    %2354 = vmatpush1.bf16.msra.mxu0 %v1641
    %2355 = vmatprep.subr.bf16.mxu0 0
    %2356 = vmatpush1.bf16.msra.mxu0 %v1642
    %2357 = vmatprep.subr.bf16.mxu0 0
    %2358 = vmatpush1.bf16.msra.mxu0 %v1643
    %2359 = vmatprep.subr.bf16.mxu0 0
    %2360 = vmatpush1.bf16.msra.mxu0 %v1644
    %2361 = vmatprep.subr.bf16.mxu0 0
    %2362 = vmatpush1.bf16.msra.mxu0 %v1645
    %2363 = vmatprep.subr.bf16.mxu0 0
    %2364 = vmatpush1.bf16.msra.mxu0 %v1646
    %2365 = vmatprep.subr.bf16.mxu0 0
    %2366 = vmatpush1.bf16.msra.mxu0 0
    %2367 = vmatprep.subr.bf16.mxu0 0
    %2368 = vmatpush1.bf16.msra.mxu0 0
    %2369 = vmatprep.subr.bf16.mxu0 0
    %2370 = vmatpush1.bf16.msra.mxu0 0
    %2371 = vmatprep.subr.bf16.mxu0 0
    %2372 = vmatpush1.bf16.msra.mxu0 0
    %2373 = vmatprep.subr.bf16.mxu0 0
    %2374 = vmatpush1.bf16.msra.mxu0 0
    %2375 = vmatprep.subr.bf16.mxu0 0
    %2376 = vmatpush1.bf16.msra.mxu0 0
    %2377 = vmatprep.subr.bf16.mxu0 0
    %2378 = vmatpush1.bf16.msra.mxu0 0
    %2379 = vmatprep.subr.bf16.mxu0 0
    %2380 = vmatpush1.bf16.msra.mxu0 0
    %2381 = vmatprep.mubr.bf16.mxu0 0
    %2382 = vmatmul.mubr.bf16.gmra.mrb[0].mxu0 %v2341
    %v2383 = vpop.f32.mrb[0].mxu0
    %v2384 = vadd.f32 %v1605, %v2383
    %v2385 = vpop.f32.mrb[0].mxu0
    %v2386 = vpop.f32.mrb[0].mxu0
    %v2387 = vadd.f32 %v1605, %v2386
    %v2388 = vpop.f32.mrb[0].mxu0
    %2389 = vmatprep.mubr.bf16.mxu0 0
    %2390 = vmatmul.mubr.bf16.gmra.mrb[0].mxu0 %v2342
    %v2391 = vpop.f32.mrb[0].mxu0
    %v2392 = vadd.f32 %v1605, %v2391
    %v2393 = vpop.f32.mrb[0].mxu0
    %v2394 = vpop.f32.mrb[0].mxu0
    %v2395 = vadd.f32 %v1605, %v2394
    %v2396 = vpop.f32.mrb[0].mxu0
    %2397 = vmatprep.mubr.bf16.mxu0 0
    %2398 = vmatmul.mubr.bf16.gmra.mrb[0].mxu0 %v2343
    %v2399 = vpop.f32.mrb[0].mxu0
    %v2400 = vadd.f32 %v1605, %v2399
    %v2401 = vpop.f32.mrb[0].mxu0
    %v2402 = vpop.f32.mrb[0].mxu0
    %v2403 = vadd.f32 %v1605, %v2402
    %v2404 = vpop.f32.mrb[0].mxu0
    %2405 = vmatprep.mubr.bf16.mxu0 0
    %2406 = vmatmul.mubr.bf16.gmra.mrb[0].mxu0 %v2344
    %v2407 = vpop.f32.mrb[0].mxu0
    %v2408 = vadd.f32 %v1605, %v2407
    %v2409 = vpop.f32.mrb[0].mxu0
    %v2410 = vpop.f32.mrb[0].mxu0
    %v2411 = vadd.f32 %v1605, %v2410
    %v2412 = vpop.f32.mrb[0].mxu0
    %2413 = vmatprep.mubr.bf16.mxu0 0
    %2414 = vmatmul.mubr.bf16.gmra.mrb[0].mxu0 %v2345
    %v2415 = vpop.f32.mrb[0].mxu0
    %v2416 = vadd.f32 %v1605, %v2415
    %v2417 = vpop.f32.mrb[0].mxu0
    %v2418 = vpop.f32.mrb[0].mxu0
    %v2419 = vadd.f32 %v1605, %v2418
    %v2420 = vpop.f32.mrb[0].mxu0
    %2421 = vmatprep.mubr.bf16.mxu0 0
    %2422 = vmatmul.mubr.bf16.gmra.mrb[0].mxu0 %v2346
    %v2423 = vpop.f32.mrb[0].mxu0
    %v2424 = vadd.f32 %v1605, %v2423
    %v2425 = vpop.f32.mrb[0].mxu0
    %v2426 = vpop.f32.mrb[0].mxu0
    %v2427 = vadd.f32 %v1605, %v2426
    %v2428 = vpop.f32.mrb[0].mxu0
    %2429 = vmatprep.mubr.bf16.mxu0 0
    %2430 = vmatmul.mubr.bf16.gmra.mrb[0].mxu0 %v2347
    %v2431 = vpop.f32.mrb[0].mxu0
    %v2432 = vadd.f32 %v1605, %v2431
    %v2433 = vpop.f32.mrb[0].mxu0
    %v2434 = vpop.f32.mrb[0].mxu0
    %v2435 = vadd.f32 %v1605, %v2434
    %v2436 = vpop.f32.mrb[0].mxu0
    %2437 = vmatprep.mubr.bf16.mxu0 0
    %2438 = vmatmul.mubr.bf16.gmra.mrb[0].mxu0 %v2348
    %v2439 = vpop.f32.mrb[0].mxu0
    %v2440 = vadd.f32 %v1605, %v2439
    %v2441 = vpop.f32.mrb[0].mxu0
    %v2442 = vpop.f32.mrb[0].mxu0
    %v2443 = vadd.f32 %v1605, %v2442
    %v2444 = vpop.f32.mrb[0].mxu0
    %2445 = vdwg.mxu0
    %v2446 = vtanh.pop %v2384
    %v2447 = vtanh.pop %v2387
    %v2448 = vtanh.pop %v2392
    %v2449 = vtanh.pop %v2395
    %v2450 = vtanh.pop %v2400
    %v2451 = vtanh.pop %v2403
    %v2452 = vtanh.pop %v2408
    %v2453 = vtanh.pop %v2411
    %v2454 = vtanh.pop %v2416
    %v2455 = vtanh.pop %v2419
    %v2456 = vtanh.pop %v2424
    %v2457 = vtanh.pop %v2427
    %v2458 = vtanh.pop %v2432
    %v2459 = vtanh.pop %v2435
    %v2460 = vtanh.pop %v2440
    %v2461 = vtanh.pop %v2443
    %v2462 = vmul.f32 %v2446, %v417
    %v2463 = vmul.f32 %v2447, %v419
    %v2464 = vmul.f32 %v2448, %v421
    %v2465 = vmul.f32 %v2449, %v423
    %v2466 = vmul.f32 %v2450, %v425
    %v2467 = vmul.f32 %v2451, %v427
    %v2468 = vmul.f32 %v2452, %v429
    %v2469 = vmul.f32 %v2453, %v431
    %v2470 = vmul.f32 %v2454, %v433
    %v2471 = vmul.f32 %v2455, %v435
    %v2472 = vmul.f32 %v2456, %v437
    %v2473 = vmul.f32 %v2457, %v439
    %v2474 = vmul.f32 %v2458, %v441
    %v2475 = vmul.f32 %v2459, %v443
    %v2476 = vmul.f32 %v2460, %v445
    %v2477 = vmul.f32 %v2461, %v447
    %v2478 = vpack.c.bf16 %v2463, %v2462
    %v2479 = vpack.c.bf16 %v2465, %v2464
    %v2480 = vpack.c.bf16 %v2467, %v2466
    %v2481 = vpack.c.bf16 %v2469, %v2468
    %v2482 = vpack.c.bf16 %v2471, %v2470
    %v2483 = vpack.c.bf16 %v2473, %v2472
    %v2484 = vpack.c.bf16 %v2475, %v2474
    %v2485 = vpack.c.bf16 %v2477, %v2476
    %2486 = vmatprep.subr.bf16.mxu0 0
    %2487 = vmatpush1.bf16.msra.mxu0 %v1849
    %2488 = vmatprep.subr.bf16.mxu0 0
    %2489 = vmatpush1.bf16.msra.mxu0 %v1850
    %2490 = vmatprep.subr.bf16.mxu0 0
    %2491 = vmatpush1.bf16.msra.mxu0 %v1851
    %2492 = vmatprep.subr.bf16.mxu0 0
    %2493 = vmatpush1.bf16.msra.mxu0 %v1852
    %2494 = vmatprep.subr.bf16.mxu0 0
    %2495 = vmatpush1.bf16.msra.mxu0 %v1853
    %2496 = vmatprep.subr.bf16.mxu0 0
    %2497 = vmatpush1.bf16.msra.mxu0 %v1854
    %2498 = vmatprep.subr.bf16.mxu0 0
    %2499 = vmatpush1.bf16.msra.mxu0 %v1855
    %2500 = vmatprep.subr.bf16.mxu0 0
    %2501 = vmatpush1.bf16.msra.mxu0 %v1856
    %2502 = vmatprep.subr.bf16.mxu0 0
    %2503 = vmatpush1.bf16.msra.mxu0 0
    %2504 = vmatprep.subr.bf16.mxu0 0
    %2505 = vmatpush1.bf16.msra.mxu0 0
    %2506 = vmatprep.subr.bf16.mxu0 0
    %2507 = vmatpush1.bf16.msra.mxu0 0
    %2508 = vmatprep.subr.bf16.mxu0 0
    %2509 = vmatpush1.bf16.msra.mxu0 0
    %2510 = vmatprep.subr.bf16.mxu0 0
    %2511 = vmatpush1.bf16.msra.mxu0 0
    %2512 = vmatprep.subr.bf16.mxu0 0
    %2513 = vmatpush1.bf16.msra.mxu0 0
    %2514 = vmatprep.subr.bf16.mxu0 0
    %2515 = vmatpush1.bf16.msra.mxu0 0
    %2516 = vmatprep.subr.bf16.mxu0 0
    %2517 = vmatpush1.bf16.msra.mxu0 0
    %2518 = vmatprep.mubr.bf16.mxu0 0
    %2519 = vmatmul.mubr.bf16.gmra.mrb[0].mxu0 %v2478
    %v2520 = vpop.f32.mrb[0].mxu0
    %v2521 = vadd.f32 %v1815, %v2520
    %v2522 = vpop.f32.mrb[0].mxu0
    %v2523 = vpop.f32.mrb[0].mxu0
    %v2524 = vadd.f32 %v1815, %v2523
    %v2525 = vpop.f32.mrb[0].mxu0
    %2526 = vmatprep.mubr.bf16.mxu0 0
    %2527 = vmatmul.mubr.bf16.gmra.mrb[0].mxu0 %v2479
    %v2528 = vpop.f32.mrb[0].mxu0
    %v2529 = vadd.f32 %v1815, %v2528
    %v2530 = vpop.f32.mrb[0].mxu0
    %v2531 = vpop.f32.mrb[0].mxu0
    %v2532 = vadd.f32 %v1815, %v2531
    %v2533 = vpop.f32.mrb[0].mxu0
    %2534 = vmatprep.mubr.bf16.mxu0 0
    %2535 = vmatmul.mubr.bf16.gmra.mrb[0].mxu0 %v2480
    %v2536 = vpop.f32.mrb[0].mxu0
    %v2537 = vadd.f32 %v1815, %v2536
    %v2538 = vpop.f32.mrb[0].mxu0
    %v2539 = vpop.f32.mrb[0].mxu0
    %v2540 = vadd.f32 %v1815, %v2539
    %v2541 = vpop.f32.mrb[0].mxu0
    %2542 = vmatprep.mubr.bf16.mxu0 0
    %2543 = vmatmul.mubr.bf16.gmra.mrb[0].mxu0 %v2481
    %v2544 = vpop.f32.mrb[0].mxu0
    %v2545 = vadd.f32 %v1815, %v2544
    %v2546 = vpop.f32.mrb[0].mxu0
    %v2547 = vpop.f32.mrb[0].mxu0
    %v2548 = vadd.f32 %v1815, %v2547
    %v2549 = vpop.f32.mrb[0].mxu0
    %2550 = vmatprep.mubr.bf16.mxu0 0
    %2551 = vmatmul.mubr.bf16.gmra.mrb[0].mxu0 %v2482
    %v2552 = vpop.f32.mrb[0].mxu0
    %v2553 = vadd.f32 %v1815, %v2552
    %v2554 = vpop.f32.mrb[0].mxu0
    %v2555 = vpop.f32.mrb[0].mxu0
    %v2556 = vadd.f32 %v1815, %v2555
    %v2557 = vpop.f32.mrb[0].mxu0
    %2558 = vmatprep.mubr.bf16.mxu0 0
    %2559 = vmatmul.mubr.bf16.gmra.mrb[0].mxu0 %v2483
    %v2560 = vpop.f32.mrb[0].mxu0
    %v2561 = vadd.f32 %v1815, %v2560
    %v2562 = vpop.f32.mrb[0].mxu0
    %v2563 = vpop.f32.mrb[0].mxu0
    %v2564 = vadd.f32 %v1815, %v2563
    %v2565 = vpop.f32.mrb[0].mxu0
    %2566 = vmatprep.mubr.bf16.mxu0 0
    %2567 = vmatmul.mubr.bf16.gmra.mrb[0].mxu0 %v2484
    %v2568 = vpop.f32.mrb[0].mxu0
    %v2569 = vadd.f32 %v1815, %v2568
    %v2570 = vpop.f32.mrb[0].mxu0
    %v2571 = vpop.f32.mrb[0].mxu0
    %v2572 = vadd.f32 %v1815, %v2571
    %v2573 = vpop.f32.mrb[0].mxu0
    %2574 = vmatprep.mubr.bf16.mxu0 0
    %2575 = vmatmul.mubr.bf16.gmra.mrb[0].mxu0 %v2485
    %v2576 = vpop.f32.mrb[0].mxu0
    %v2577 = vadd.f32 %v1815, %v2576
    %v2578 = vpop.f32.mrb[0].mxu0
    %v2579 = vpop.f32.mrb[0].mxu0
    %v2580 = vadd.f32 %v1815, %v2579
    %v2581 = vpop.f32.mrb[0].mxu0
    %2582 = vdwg.mxu0
    %v2583 = vtanh.pop %v2521
    %v2584 = vtanh.pop %v2524
    %v2585 = vtanh.pop %v2529
    %v2586 = vtanh.pop %v2532
    %v2587 = vtanh.pop %v2537
    %v2588 = vtanh.pop %v2540
    %v2589 = vtanh.pop %v2545
    %v2590 = vtanh.pop %v2548
    %v2591 = vtanh.pop %v2553
    %v2592 = vtanh.pop %v2556
    %v2593 = vtanh.pop %v2561
    %v2594 = vtanh.pop %v2564
    %v2595 = vtanh.pop %v2569
    %v2596 = vtanh.pop %v2572
    %v2597 = vtanh.pop %v2577
    %v2598 = vtanh.pop %v2580
    %v2599 = vmul.f32 %v2583, %v417
    %v2600 = vmul.f32 %v2584, %v419
    %v2601 = vmul.f32 %v2585, %v421
    %v2602 = vmul.f32 %v2586, %v423
    %v2603 = vmul.f32 %v2587, %v425
    %v2604 = vmul.f32 %v2588, %v427
    %v2605 = vmul.f32 %v2589, %v429
    %v2606 = vmul.f32 %v2590, %v431
    %v2607 = vmul.f32 %v2591, %v433
    %v2608 = vmul.f32 %v2592, %v435
    %v2609 = vmul.f32 %v2593, %v437
    %v2610 = vmul.f32 %v2594, %v439
    %v2611 = vmul.f32 %v2595, %v441
    %v2612 = vmul.f32 %v2596, %v443
    %v2613 = vmul.f32 %v2597, %v445
    %v2614 = vmul.f32 %v2598, %v447
    %v2615 = vpack.c.bf16 %v2600, %v2599
    %v2616 = vpack.c.bf16 %v2602, %v2601
    %v2617 = vpack.c.bf16 %v2604, %v2603
    %v2618 = vpack.c.bf16 %v2606, %v2605
    %v2619 = vpack.c.bf16 %v2608, %v2607
    %v2620 = vpack.c.bf16 %v2610, %v2609
    %v2621 = vpack.c.bf16 %v2612, %v2611
    %v2622 = vpack.c.bf16 %v2614, %v2613
    %2623 = vmatprep.subr.bf16.mxu0 0
    %2624 = vmatpush1.bf16.msra.mxu0 %v2059
    %2625 = vmatprep.subr.bf16.mxu0 0
    %2626 = vmatpush1.bf16.msra.mxu0 %v2060
    %2627 = vmatprep.subr.bf16.mxu0 0
    %2628 = vmatpush1.bf16.msra.mxu0 %v2061
    %2629 = vmatprep.subr.bf16.mxu0 0
    %2630 = vmatpush1.bf16.msra.mxu0 %v2062
    %2631 = vmatprep.subr.bf16.mxu0 0
    %2632 = vmatpush1.bf16.msra.mxu0 %v2063
    %2633 = vmatprep.subr.bf16.mxu0 0
    %2634 = vmatpush1.bf16.msra.mxu0 %v2064
    %2635 = vmatprep.subr.bf16.mxu0 0
    %2636 = vmatpush1.bf16.msra.mxu0 %v2065
    %2637 = vmatprep.subr.bf16.mxu0 0
    %2638 = vmatpush1.bf16.msra.mxu0 %v2066
    %2639 = vmatprep.subr.bf16.mxu0 0
    %2640 = vmatpush1.bf16.msra.mxu0 0
    %2641 = vmatprep.subr.bf16.mxu0 0
    %2642 = vmatpush1.bf16.msra.mxu0 0
    %2643 = vmatprep.subr.bf16.mxu0 0
    %2644 = vmatpush1.bf16.msra.mxu0 0
    %2645 = vmatprep.subr.bf16.mxu0 0
    %2646 = vmatpush1.bf16.msra.mxu0 0
    %2647 = vmatprep.subr.bf16.mxu0 0
    %2648 = vmatpush1.bf16.msra.mxu0 0
    %2649 = vmatprep.subr.bf16.mxu0 0
    %2650 = vmatpush1.bf16.msra.mxu0 0
    %2651 = vmatprep.subr.bf16.mxu0 0
    %2652 = vmatpush1.bf16.msra.mxu0 0
    %2653 = vmatprep.subr.bf16.mxu0 0
    %2654 = vmatpush1.bf16.msra.mxu0 0
    %2655 = vmatprep.mubr.bf16.mxu0 0
    %2656 = vmatmul.mubr.bf16.gmra.mrb[0].mxu0 %v2615
    %v2657 = vpop.f32.mrb[0].mxu0
    %v2658 = vadd.f32 %v2025, %v2657
    %v2659 = vpop.f32.mrb[0].mxu0
    %v2660 = vpop.f32.mrb[0].mxu0
    %v2661 = vadd.f32 %v2025, %v2660
    %v2662 = vpop.f32.mrb[0].mxu0
    %2663 = vmatprep.mubr.bf16.mxu0 0
    %2664 = vmatmul.mubr.bf16.gmra.mrb[0].mxu0 %v2616
    %v2665 = vpop.f32.mrb[0].mxu0
    %v2666 = vadd.f32 %v2025, %v2665
    %v2667 = vpop.f32.mrb[0].mxu0
    %v2668 = vpop.f32.mrb[0].mxu0
    %v2669 = vadd.f32 %v2025, %v2668
    %v2670 = vpop.f32.mrb[0].mxu0
    %2671 = vmatprep.mubr.bf16.mxu0 0
    %2672 = vmatmul.mubr.bf16.gmra.mrb[0].mxu0 %v2617
    %v2673 = vpop.f32.mrb[0].mxu0
    %v2674 = vadd.f32 %v2025, %v2673
    %v2675 = vpop.f32.mrb[0].mxu0
    %v2676 = vpop.f32.mrb[0].mxu0
    %v2677 = vadd.f32 %v2025, %v2676
    %v2678 = vpop.f32.mrb[0].mxu0
    %2679 = vmatprep.mubr.bf16.mxu0 0
    %2680 = vmatmul.mubr.bf16.gmra.mrb[0].mxu0 %v2618
    %v2681 = vpop.f32.mrb[0].mxu0
    %v2682 = vadd.f32 %v2025, %v2681
    %v2683 = vpop.f32.mrb[0].mxu0
    %v2684 = vpop.f32.mrb[0].mxu0
    %v2685 = vadd.f32 %v2025, %v2684
    %v2686 = vpop.f32.mrb[0].mxu0
    %2687 = vmatprep.mubr.bf16.mxu0 0
    %2688 = vmatmul.mubr.bf16.gmra.mrb[0].mxu0 %v2619
    %v2689 = vpop.f32.mrb[0].mxu0
    %v2690 = vadd.f32 %v2025, %v2689
    %v2691 = vpop.f32.mrb[0].mxu0
    %v2692 = vpop.f32.mrb[0].mxu0
    %v2693 = vadd.f32 %v2025, %v2692
    %v2694 = vpop.f32.mrb[0].mxu0
    %2695 = vmatprep.mubr.bf16.mxu0 0
    %2696 = vmatmul.mubr.bf16.gmra.mrb[0].mxu0 %v2620
    %v2697 = vpop.f32.mrb[0].mxu0
    %v2698 = vadd.f32 %v2025, %v2697
    %v2699 = vpop.f32.mrb[0].mxu0
    %v2700 = vpop.f32.mrb[0].mxu0
    %v2701 = vadd.f32 %v2025, %v2700
    %v2702 = vpop.f32.mrb[0].mxu0
    %2703 = vmatprep.mubr.bf16.mxu0 0
    %2704 = vmatmul.mubr.bf16.gmra.mrb[0].mxu0 %v2621
    %v2705 = vpop.f32.mrb[0].mxu0
    %v2706 = vadd.f32 %v2025, %v2705
    %v2707 = vpop.f32.mrb[0].mxu0
    %v2708 = vpop.f32.mrb[0].mxu0
    %v2709 = vadd.f32 %v2025, %v2708
    %v2710 = vpop.f32.mrb[0].mxu0
    %2711 = vmatprep.mubr.bf16.mxu0 0
    %2712 = vmatmul.mubr.bf16.gmra.mrb[0].mxu0 %v2622
    %v2713 = vpop.f32.mrb[0].mxu0
    %v2714 = vadd.f32 %v2025, %v2713
    %v2715 = vpop.f32.mrb[0].mxu0
    %v2716 = vpop.f32.mrb[0].mxu0
    %v2717 = vadd.f32 %v2025, %v2716
    %v2718 = vpop.f32.mrb[0].mxu0
    %2719 = vdwg.mxu0
    %v2720 = vtanh.pop %v2658
    %v2721 = vtanh.pop %v2661
    %v2722 = vtanh.pop %v2666
    %v2723 = vtanh.pop %v2669
    %v2724 = vtanh.pop %v2674
    %v2725 = vtanh.pop %v2677
    %v2726 = vtanh.pop %v2682
    %v2727 = vtanh.pop %v2685
    %v2728 = vtanh.pop %v2690
    %v2729 = vtanh.pop %v2693
    %v2730 = vtanh.pop %v2698
    %v2731 = vtanh.pop %v2701
    %v2732 = vtanh.pop %v2706
    %v2733 = vtanh.pop %v2709
    %v2734 = vtanh.pop %v2714
    %v2735 = vtanh.pop %v2717
    %v2736 = vmul.f32 %v2720, %v417
    %v2737 = vmul.f32 %v2721, %v419
    %v2738 = vmul.f32 %v2722, %v421
    %v2739 = vmul.f32 %v2723, %v423
    %v2740 = vmul.f32 %v2724, %v425
    %v2741 = vmul.f32 %v2725, %v427
    %v2742 = vmul.f32 %v2726, %v429
    %v2743 = vmul.f32 %v2727, %v431
    %v2744 = vmul.f32 %v2728, %v433
    %v2745 = vmul.f32 %v2729, %v435
    %v2746 = vmul.f32 %v2730, %v437
    %v2747 = vmul.f32 %v2731, %v439
    %v2748 = vmul.f32 %v2732, %v441
    %v2749 = vmul.f32 %v2733, %v443
    %v2750 = vmul.f32 %v2734, %v445
    %v2751 = vmul.f32 %v2735, %v447
    %v2752 = vpack.c.bf16 %v2737, %v2736
    %v2753 = vpack.c.bf16 %v2739, %v2738
    %v2754 = vpack.c.bf16 %v2741, %v2740
    %v2755 = vpack.c.bf16 %v2743, %v2742
    %v2756 = vpack.c.bf16 %v2745, %v2744
    %v2757 = vpack.c.bf16 %v2747, %v2746
    %v2758 = vpack.c.bf16 %v2749, %v2748
    %v2759 = vpack.c.bf16 %v2751, %v2750
    %2760 = vmatprep.subr.bf16.mxu0 0
    %2761 = vmatpush1.bf16.msra.mxu0 %v1429
    %2762 = vmatprep.subr.bf16.mxu0 0
    %2763 = vmatpush1.bf16.msra.mxu0 %v1430
    %2764 = vmatprep.subr.bf16.mxu0 0
    %2765 = vmatpush1.bf16.msra.mxu0 %v1431
    %2766 = vmatprep.subr.bf16.mxu0 0
    %2767 = vmatpush1.bf16.msra.mxu0 %v1432
    %2768 = vmatprep.subr.bf16.mxu0 0
    %2769 = vmatpush1.bf16.msra.mxu0 %v1433
    %2770 = vmatprep.subr.bf16.mxu0 0
    %2771 = vmatpush1.bf16.msra.mxu0 %v1434
    %2772 = vmatprep.subr.bf16.mxu0 0
    %2773 = vmatpush1.bf16.msra.mxu0 %v1435
    %2774 = vmatprep.subr.bf16.mxu0 0
    %2775 = vmatpush1.bf16.msra.mxu0 %v1436
    %2776 = vmatprep.subr.bf16.mxu0 0
    %2777 = vmatpush1.bf16.msra.mxu0 0
    %2778 = vmatprep.subr.bf16.mxu0 0
    %2779 = vmatpush1.bf16.msra.mxu0 0
    %2780 = vmatprep.subr.bf16.mxu0 0
    %2781 = vmatpush1.bf16.msra.mxu0 0
    %2782 = vmatprep.subr.bf16.mxu0 0
    %2783 = vmatpush1.bf16.msra.mxu0 0
    %2784 = vmatprep.subr.bf16.mxu0 0
    %2785 = vmatpush1.bf16.msra.mxu0 0
    %2786 = vmatprep.subr.bf16.mxu0 0
    %2787 = vmatpush1.bf16.msra.mxu0 0
    %2788 = vmatprep.subr.bf16.mxu0 0
    %2789 = vmatpush1.bf16.msra.mxu0 0
    %2790 = vmatprep.subr.bf16.mxu0 0
    %2791 = vmatpush1.bf16.msra.mxu0 0
    %2792 = vmatprep.mubr.bf16.mxu0 0
    %2793 = vmatmul.mubr.bf16.gmra.mrb[0].mxu0 %v2752
    %v2794 = vpop.f32.mrb[0].mxu0
    %v2795 = vadd.f32 %v1395, %v2794
    %v2796 = vpop.f32.mrb[0].mxu0
    %v2797 = vpop.f32.mrb[0].mxu0
    %v2798 = vadd.f32 %v1395, %v2797
    %v2799 = vpop.f32.mrb[0].mxu0
    %2800 = vmatprep.mubr.bf16.mxu0 0
    %2801 = vmatmul.mubr.bf16.gmra.mrb[0].mxu0 %v2753
    %v2802 = vpop.f32.mrb[0].mxu0
    %v2803 = vadd.f32 %v1395, %v2802
    %v2804 = vpop.f32.mrb[0].mxu0
    %v2805 = vpop.f32.mrb[0].mxu0
    %v2806 = vadd.f32 %v1395, %v2805
    %v2807 = vpop.f32.mrb[0].mxu0
    %2808 = vmatprep.mubr.bf16.mxu0 0
    %2809 = vmatmul.mubr.bf16.gmra.mrb[0].mxu0 %v2754
    %v2810 = vpop.f32.mrb[0].mxu0
    %v2811 = vadd.f32 %v1395, %v2810
    %v2812 = vpop.f32.mrb[0].mxu0
    %v2813 = vpop.f32.mrb[0].mxu0
    %v2814 = vadd.f32 %v1395, %v2813
    %v2815 = vpop.f32.mrb[0].mxu0
    %2816 = vmatprep.mubr.bf16.mxu0 0
    %2817 = vmatmul.mubr.bf16.gmra.mrb[0].mxu0 %v2755
    %v2818 = vpop.f32.mrb[0].mxu0
    %v2819 = vadd.f32 %v1395, %v2818
    %v2820 = vpop.f32.mrb[0].mxu0
    %v2821 = vpop.f32.mrb[0].mxu0
    %v2822 = vadd.f32 %v1395, %v2821
    %v2823 = vpop.f32.mrb[0].mxu0
    %2824 = vmatprep.mubr.bf16.mxu0 0
    %2825 = vmatmul.mubr.bf16.gmra.mrb[0].mxu0 %v2756
    %v2826 = vpop.f32.mrb[0].mxu0
    %v2827 = vadd.f32 %v1395, %v2826
    %v2828 = vpop.f32.mrb[0].mxu0
    %v2829 = vpop.f32.mrb[0].mxu0
    %v2830 = vadd.f32 %v1395, %v2829
    %v2831 = vpop.f32.mrb[0].mxu0
    %2832 = vmatprep.mubr.bf16.mxu0 0
    %2833 = vmatmul.mubr.bf16.gmra.mrb[0].mxu0 %v2757
    %v2834 = vpop.f32.mrb[0].mxu0
    %v2835 = vadd.f32 %v1395, %v2834
    %v2836 = vpop.f32.mrb[0].mxu0
    %v2837 = vpop.f32.mrb[0].mxu0
    %v2838 = vadd.f32 %v1395, %v2837
    %v2839 = vpop.f32.mrb[0].mxu0
    %2840 = vmatprep.mubr.bf16.mxu0 0
    %2841 = vmatmul.mubr.bf16.gmra.mrb[0].mxu0 %v2758
    %v2842 = vpop.f32.mrb[0].mxu0
    %v2843 = vadd.f32 %v1395, %v2842
    %v2844 = vpop.f32.mrb[0].mxu0
    %v2845 = vpop.f32.mrb[0].mxu0
    %v2846 = vadd.f32 %v1395, %v2845
    %v2847 = vpop.f32.mrb[0].mxu0
    %2848 = vmatprep.mubr.bf16.mxu0 0
    %2849 = vmatmul.mubr.bf16.gmra.mrb[0].mxu0 %v2759
    %v2850 = vpop.f32.mrb[0].mxu0
    %v2851 = vadd.f32 %v1395, %v2850
    %v2852 = vpop.f32.mrb[0].mxu0
    %v2853 = vpop.f32.mrb[0].mxu0
    %v2854 = vadd.f32 %v1395, %v2853
    %v2855 = vpop.f32.mrb[0].mxu0
    %2856 = vdwg.mxu0
    %v2857 = vtanh.pop %v2795
    %v2858 = vtanh.pop %v2798
    %v2859 = vtanh.pop %v2803
    %v2860 = vtanh.pop %v2806
    %v2861 = vtanh.pop %v2811
    %v2862 = vtanh.pop %v2814
    %v2863 = vtanh.pop %v2819
    %v2864 = vtanh.pop %v2822
    %v2865 = vtanh.pop %v2827
    %v2866 = vtanh.pop %v2830
    %v2867 = vtanh.pop %v2835
    %v2868 = vtanh.pop %v2838
    %v2869 = vtanh.pop %v2843
    %v2870 = vtanh.pop %v2846
    %v2871 = vtanh.pop %v2851
    %v2872 = vtanh.pop %v2854
    %v2873 = vmul.f32 %v2857, %v417
    %v2874 = vmul.f32 %v2858, %v419
    %v2875 = vmul.f32 %v2859, %v421
    %v2876 = vmul.f32 %v2860, %v423
    %v2877 = vmul.f32 %v2861, %v425
    %v2878 = vmul.f32 %v2862, %v427
    %v2879 = vmul.f32 %v2863, %v429
    %v2880 = vmul.f32 %v2864, %v431
    %v2881 = vmul.f32 %v2865, %v433
    %v2882 = vmul.f32 %v2866, %v435
    %v2883 = vmul.f32 %v2867, %v437
    %v2884 = vmul.f32 %v2868, %v439
    %v2885 = vmul.f32 %v2869, %v441
    %v2886 = vmul.f32 %v2870, %v443
    %v2887 = vmul.f32 %v2871, %v445
    %v2888 = vmul.f32 %v2872, %v447
    %v2889 = vpack.c.bf16 %v2874, %v2873
    %v2890 = vpack.c.bf16 %v2876, %v2875
    %v2891 = vpack.c.bf16 %v2878, %v2877
    %v2892 = vpack.c.bf16 %v2880, %v2879
    %v2893 = vpack.c.bf16 %v2882, %v2881
    %v2894 = vpack.c.bf16 %v2884, %v2883
    %v2895 = vpack.c.bf16 %v2886, %v2885
    %v2896 = vpack.c.bf16 %v2888, %v2887
    %2897 = vmatprep.subr.bf16.mxu0 0
    %2898 = vmatpush1.bf16.msra.mxu0 %v1639
    %2899 = vmatprep.subr.bf16.mxu0 0
    %2900 = vmatpush1.bf16.msra.mxu0 %v1640
    %2901 = vmatprep.subr.bf16.mxu0 0
    %2902 = vmatpush1.bf16.msra.mxu0 %v1641
    %2903 = vmatprep.subr.bf16.mxu0 0
    %2904 = vmatpush1.bf16.msra.mxu0 %v1642
    %2905 = vmatprep.subr.bf16.mxu0 0
    %2906 = vmatpush1.bf16.msra.mxu0 %v1643
    %2907 = vmatprep.subr.bf16.mxu0 0
    %2908 = vmatpush1.bf16.msra.mxu0 %v1644
    %2909 = vmatprep.subr.bf16.mxu0 0
    %2910 = vmatpush1.bf16.msra.mxu0 %v1645
    %2911 = vmatprep.subr.bf16.mxu0 0
    %2912 = vmatpush1.bf16.msra.mxu0 %v1646
    %2913 = vmatprep.subr.bf16.mxu0 0
    %2914 = vmatpush1.bf16.msra.mxu0 0
    %2915 = vmatprep.subr.bf16.mxu0 0
    %2916 = vmatpush1.bf16.msra.mxu0 0
    %2917 = vmatprep.subr.bf16.mxu0 0
    %2918 = vmatpush1.bf16.msra.mxu0 0
    %2919 = vmatprep.subr.bf16.mxu0 0
    %2920 = vmatpush1.bf16.msra.mxu0 0
    %2921 = vmatprep.subr.bf16.mxu0 0
    %2922 = vmatpush1.bf16.msra.mxu0 0
    %2923 = vmatprep.subr.bf16.mxu0 0
    %2924 = vmatpush1.bf16.msra.mxu0 0
    %2925 = vmatprep.subr.bf16.mxu0 0
    %2926 = vmatpush1.bf16.msra.mxu0 0
    %2927 = vmatprep.subr.bf16.mxu0 0
    %2928 = vmatpush1.bf16.msra.mxu0 0
    %2929 = vmatprep.mubr.bf16.mxu0 0
    %2930 = vmatmul.mubr.bf16.gmra.mrb[0].mxu0 %v2889
    %v2931 = vpop.f32.mrb[0].mxu0
    %v2932 = vadd.f32 %v1605, %v2931
    %v2933 = vpop.f32.mrb[0].mxu0
    %v2934 = vpop.f32.mrb[0].mxu0
    %v2935 = vadd.f32 %v1605, %v2934
    %v2936 = vpop.f32.mrb[0].mxu0
    %2937 = vmatprep.mubr.bf16.mxu0 0
    %2938 = vmatmul.mubr.bf16.gmra.mrb[0].mxu0 %v2890
    %v2939 = vpop.f32.mrb[0].mxu0
    %v2940 = vadd.f32 %v1605, %v2939
    %v2941 = vpop.f32.mrb[0].mxu0
    %v2942 = vpop.f32.mrb[0].mxu0
    %v2943 = vadd.f32 %v1605, %v2942
    %v2944 = vpop.f32.mrb[0].mxu0
    %2945 = vmatprep.mubr.bf16.mxu0 0
    %2946 = vmatmul.mubr.bf16.gmra.mrb[0].mxu0 %v2891
    %v2947 = vpop.f32.mrb[0].mxu0
    %v2948 = vadd.f32 %v1605, %v2947
    %v2949 = vpop.f32.mrb[0].mxu0
    %v2950 = vpop.f32.mrb[0].mxu0
    %v2951 = vadd.f32 %v1605, %v2950
    %v2952 = vpop.f32.mrb[0].mxu0
    %2953 = vmatprep.mubr.bf16.mxu0 0
    %2954 = vmatmul.mubr.bf16.gmra.mrb[0].mxu0 %v2892
    %v2955 = vpop.f32.mrb[0].mxu0
    %v2956 = vadd.f32 %v1605, %v2955
    %v2957 = vpop.f32.mrb[0].mxu0
    %v2958 = vpop.f32.mrb[0].mxu0
    %v2959 = vadd.f32 %v1605, %v2958
    %v2960 = vpop.f32.mrb[0].mxu0
    %2961 = vmatprep.mubr.bf16.mxu0 0
    %2962 = vmatmul.mubr.bf16.gmra.mrb[0].mxu0 %v2893
    %v2963 = vpop.f32.mrb[0].mxu0
    %v2964 = vadd.f32 %v1605, %v2963
    %v2965 = vpop.f32.mrb[0].mxu0
    %v2966 = vpop.f32.mrb[0].mxu0
    %v2967 = vadd.f32 %v1605, %v2966
    %v2968 = vpop.f32.mrb[0].mxu0
    %2969 = vmatprep.mubr.bf16.mxu0 0
    %2970 = vmatmul.mubr.bf16.gmra.mrb[0].mxu0 %v2894
    %v2971 = vpop.f32.mrb[0].mxu0
    %v2972 = vadd.f32 %v1605, %v2971
    %v2973 = vpop.f32.mrb[0].mxu0
    %v2974 = vpop.f32.mrb[0].mxu0
    %v2975 = vadd.f32 %v1605, %v2974
    %v2976 = vpop.f32.mrb[0].mxu0
    %2977 = vmatprep.mubr.bf16.mxu0 0
    %2978 = vmatmul.mubr.bf16.gmra.mrb[0].mxu0 %v2895
    %v2979 = vpop.f32.mrb[0].mxu0
    %v2980 = vadd.f32 %v1605, %v2979
    %v2981 = vpop.f32.mrb[0].mxu0
    %v2982 = vpop.f32.mrb[0].mxu0
    %v2983 = vadd.f32 %v1605, %v2982
    %v2984 = vpop.f32.mrb[0].mxu0
    %2985 = vmatprep.mubr.bf16.mxu0 0
    %2986 = vmatmul.mubr.bf16.gmra.mrb[0].mxu0 %v2896
    %v2987 = vpop.f32.mrb[0].mxu0
    %v2988 = vadd.f32 %v1605, %v2987
    %v2989 = vpop.f32.mrb[0].mxu0
    %v2990 = vpop.f32.mrb[0].mxu0
    %v2991 = vadd.f32 %v1605, %v2990
    %v2992 = vpop.f32.mrb[0].mxu0
    %2993 = vdwg.mxu0
    %v2994 = vtanh.pop %v2932
    %v2995 = vtanh.pop %v2935
    %v2996 = vtanh.pop %v2940
    %v2997 = vtanh.pop %v2943
    %v2998 = vtanh.pop %v2948
    %v2999 = vtanh.pop %v2951
    %v3000 = vtanh.pop %v2956
    %v3001 = vtanh.pop %v2959
    %v3002 = vtanh.pop %v2964
    %v3003 = vtanh.pop %v2967
    %v3004 = vtanh.pop %v2972
    %v3005 = vtanh.pop %v2975
    %v3006 = vtanh.pop %v2980
    %v3007 = vtanh.pop %v2983
    %v3008 = vtanh.pop %v2988
    %v3009 = vtanh.pop %v2991
    %v3010 = vmul.f32 %v2994, %v417
    %v3011 = vmul.f32 %v2995, %v419
    %v3012 = vmul.f32 %v2996, %v421
    %v3013 = vmul.f32 %v2997, %v423
    %v3014 = vmul.f32 %v2998, %v425
    %v3015 = vmul.f32 %v2999, %v427
    %v3016 = vmul.f32 %v3000, %v429
    %v3017 = vmul.f32 %v3001, %v431
    %v3018 = vmul.f32 %v3002, %v433
    %v3019 = vmul.f32 %v3003, %v435
    %v3020 = vmul.f32 %v3004, %v437
    %v3021 = vmul.f32 %v3005, %v439
    %v3022 = vmul.f32 %v3006, %v441
    %v3023 = vmul.f32 %v3007, %v443
    %v3024 = vmul.f32 %v3008, %v445
    %v3025 = vmul.f32 %v3009, %v447
    %v3026 = vpack.c.bf16 %v3011, %v3010
    %v3027 = vpack.c.bf16 %v3013, %v3012
    %v3028 = vpack.c.bf16 %v3015, %v3014
    %v3029 = vpack.c.bf16 %v3017, %v3016
    %v3030 = vpack.c.bf16 %v3019, %v3018
    %v3031 = vpack.c.bf16 %v3021, %v3020
    %v3032 = vpack.c.bf16 %v3023, %v3022
    %v3033 = vpack.c.bf16 %v3025, %v3024
    %3034 = vmatprep.subr.bf16.mxu0 0
    %3035 = vmatpush1.bf16.msra.mxu0 %v1849
    %3036 = vmatprep.subr.bf16.mxu0 0
    %3037 = vmatpush1.bf16.msra.mxu0 %v1850
    %3038 = vmatprep.subr.bf16.mxu0 0
    %3039 = vmatpush1.bf16.msra.mxu0 %v1851
    %3040 = vmatprep.subr.bf16.mxu0 0
    %3041 = vmatpush1.bf16.msra.mxu0 %v1852
    %3042 = vmatprep.subr.bf16.mxu0 0
    %3043 = vmatpush1.bf16.msra.mxu0 %v1853
    %3044 = vmatprep.subr.bf16.mxu0 0
    %3045 = vmatpush1.bf16.msra.mxu0 %v1854
    %3046 = vmatprep.subr.bf16.mxu0 0
    %3047 = vmatpush1.bf16.msra.mxu0 %v1855
    %3048 = vmatprep.subr.bf16.mxu0 0
    %3049 = vmatpush1.bf16.msra.mxu0 %v1856
    %3050 = vmatprep.subr.bf16.mxu0 0
    %3051 = vmatpush1.bf16.msra.mxu0 0
    %3052 = vmatprep.subr.bf16.mxu0 0
    %3053 = vmatpush1.bf16.msra.mxu0 0
    %3054 = vmatprep.subr.bf16.mxu0 0
    %3055 = vmatpush1.bf16.msra.mxu0 0
    %3056 = vmatprep.subr.bf16.mxu0 0
    %3057 = vmatpush1.bf16.msra.mxu0 0
    %3058 = vmatprep.subr.bf16.mxu0 0
    %3059 = vmatpush1.bf16.msra.mxu0 0
    %3060 = vmatprep.subr.bf16.mxu0 0
    %3061 = vmatpush1.bf16.msra.mxu0 0
    %3062 = vmatprep.subr.bf16.mxu0 0
    %3063 = vmatpush1.bf16.msra.mxu0 0
    %3064 = vmatprep.subr.bf16.mxu0 0
    %3065 = vmatpush1.bf16.msra.mxu0 0
    %3066 = vmatprep.mubr.bf16.mxu0 0
    %3067 = vmatmul.mubr.bf16.gmra.mrb[0].mxu0 %v3026
    %v3068 = vpop.f32.mrb[0].mxu0
    %v3069 = vadd.f32 %v1815, %v3068
    %v3070 = vpop.f32.mrb[0].mxu0
    %v3071 = vpop.f32.mrb[0].mxu0
    %v3072 = vadd.f32 %v1815, %v3071
    %v3073 = vpop.f32.mrb[0].mxu0
    %3074 = vmatprep.mubr.bf16.mxu0 0
    %3075 = vmatmul.mubr.bf16.gmra.mrb[0].mxu0 %v3027
    %v3076 = vpop.f32.mrb[0].mxu0
    %v3077 = vadd.f32 %v1815, %v3076
    %v3078 = vpop.f32.mrb[0].mxu0
    %v3079 = vpop.f32.mrb[0].mxu0
    %v3080 = vadd.f32 %v1815, %v3079
    %v3081 = vpop.f32.mrb[0].mxu0
    %3082 = vmatprep.mubr.bf16.mxu0 0
    %3083 = vmatmul.mubr.bf16.gmra.mrb[0].mxu0 %v3028
    %v3084 = vpop.f32.mrb[0].mxu0
    %v3085 = vadd.f32 %v1815, %v3084
    %v3086 = vpop.f32.mrb[0].mxu0
    %v3087 = vpop.f32.mrb[0].mxu0
    %v3088 = vadd.f32 %v1815, %v3087
    %v3089 = vpop.f32.mrb[0].mxu0
    %3090 = vmatprep.mubr.bf16.mxu0 0
    %3091 = vmatmul.mubr.bf16.gmra.mrb[0].mxu0 %v3029
    %v3092 = vpop.f32.mrb[0].mxu0
    %v3093 = vadd.f32 %v1815, %v3092
    %v3094 = vpop.f32.mrb[0].mxu0
    %v3095 = vpop.f32.mrb[0].mxu0
    %v3096 = vadd.f32 %v1815, %v3095
    %v3097 = vpop.f32.mrb[0].mxu0
    %3098 = vmatprep.mubr.bf16.mxu0 0
    %3099 = vmatmul.mubr.bf16.gmra.mrb[0].mxu0 %v3030
    %v3100 = vpop.f32.mrb[0].mxu0
    %v3101 = vadd.f32 %v1815, %v3100
    %v3102 = vpop.f32.mrb[0].mxu0
    %v3103 = vpop.f32.mrb[0].mxu0
    %v3104 = vadd.f32 %v1815, %v3103
    %v3105 = vpop.f32.mrb[0].mxu0
    %3106 = vmatprep.mubr.bf16.mxu0 0
    %3107 = vmatmul.mubr.bf16.gmra.mrb[0].mxu0 %v3031
    %v3108 = vpop.f32.mrb[0].mxu0
    %v3109 = vadd.f32 %v1815, %v3108
    %v3110 = vpop.f32.mrb[0].mxu0
    %v3111 = vpop.f32.mrb[0].mxu0
    %v3112 = vadd.f32 %v1815, %v3111
    %v3113 = vpop.f32.mrb[0].mxu0
    %3114 = vmatprep.mubr.bf16.mxu0 0
    %3115 = vmatmul.mubr.bf16.gmra.mrb[0].mxu0 %v3032
    %v3116 = vpop.f32.mrb[0].mxu0
    %v3117 = vadd.f32 %v1815, %v3116
    %v3118 = vpop.f32.mrb[0].mxu0
    %v3119 = vpop.f32.mrb[0].mxu0
    %v3120 = vadd.f32 %v1815, %v3119
    %v3121 = vpop.f32.mrb[0].mxu0
    %3122 = vmatprep.mubr.bf16.mxu0 0
    %3123 = vmatmul.mubr.bf16.gmra.mrb[0].mxu0 %v3033
    %v3124 = vpop.f32.mrb[0].mxu0
    %v3125 = vadd.f32 %v1815, %v3124
    %v3126 = vpop.f32.mrb[0].mxu0
    %v3127 = vpop.f32.mrb[0].mxu0
    %v3128 = vadd.f32 %v1815, %v3127
    %v3129 = vpop.f32.mrb[0].mxu0
    %3130 = vdwg.mxu0
    %v3131 = vtanh.pop %v3069
    %v3132 = vtanh.pop %v3072
    %v3133 = vtanh.pop %v3077
    %v3134 = vtanh.pop %v3080
    %v3135 = vtanh.pop %v3085
    %v3136 = vtanh.pop %v3088
    %v3137 = vtanh.pop %v3093
    %v3138 = vtanh.pop %v3096
    %v3139 = vtanh.pop %v3101
    %v3140 = vtanh.pop %v3104
    %v3141 = vtanh.pop %v3109
    %v3142 = vtanh.pop %v3112
    %v3143 = vtanh.pop %v3117
    %v3144 = vtanh.pop %v3120
    %v3145 = vtanh.pop %v3125
    %v3146 = vtanh.pop %v3128
    %v3147 = vmul.f32 %v3131, %v417
    %v3148 = vmul.f32 %v3132, %v419
    %v3149 = vmul.f32 %v3133, %v421
    %v3150 = vmul.f32 %v3134, %v423
    %v3151 = vmul.f32 %v3135, %v425
    %v3152 = vmul.f32 %v3136, %v427
    %v3153 = vmul.f32 %v3137, %v429
    %v3154 = vmul.f32 %v3138, %v431
    %v3155 = vmul.f32 %v3139, %v433
    %v3156 = vmul.f32 %v3140, %v435
    %v3157 = vmul.f32 %v3141, %v437
    %v3158 = vmul.f32 %v3142, %v439
    %v3159 = vmul.f32 %v3143, %v441
    %v3160 = vmul.f32 %v3144, %v443
    %v3161 = vmul.f32 %v3145, %v445
    %v3162 = vmul.f32 %v3146, %v447
    %v3163 = vpack.c.bf16 %v3148, %v3147
    %v3164 = vpack.c.bf16 %v3150, %v3149
    %v3165 = vpack.c.bf16 %v3152, %v3151
    %v3166 = vpack.c.bf16 %v3154, %v3153
    %v3167 = vpack.c.bf16 %v3156, %v3155
    %v3168 = vpack.c.bf16 %v3158, %v3157
    %v3169 = vpack.c.bf16 %v3160, %v3159
    %v3170 = vpack.c.bf16 %v3162, %v3161
    %3171 = vmatprep.subr.bf16.mxu0 0
    %3172 = vmatpush1.bf16.msra.mxu0 %v2059
    %3173 = vmatprep.subr.bf16.mxu0 0
    %3174 = vmatpush1.bf16.msra.mxu0 %v2060
    %3175 = vmatprep.subr.bf16.mxu0 0
    %3176 = vmatpush1.bf16.msra.mxu0 %v2061
    %3177 = vmatprep.subr.bf16.mxu0 0
    %3178 = vmatpush1.bf16.msra.mxu0 %v2062
    %3179 = vmatprep.subr.bf16.mxu0 0
    %3180 = vmatpush1.bf16.msra.mxu0 %v2063
    %3181 = vmatprep.subr.bf16.mxu0 0
    %3182 = vmatpush1.bf16.msra.mxu0 %v2064
    %3183 = vmatprep.subr.bf16.mxu0 0
    %3184 = vmatpush1.bf16.msra.mxu0 %v2065
    %3185 = vmatprep.subr.bf16.mxu0 0
    %3186 = vmatpush1.bf16.msra.mxu0 %v2066
    %3187 = vmatprep.subr.bf16.mxu0 0
    %3188 = vmatpush1.bf16.msra.mxu0 0
    %3189 = vmatprep.subr.bf16.mxu0 0
    %3190 = vmatpush1.bf16.msra.mxu0 0
    %3191 = vmatprep.subr.bf16.mxu0 0
    %3192 = vmatpush1.bf16.msra.mxu0 0
    %3193 = vmatprep.subr.bf16.mxu0 0
    %3194 = vmatpush1.bf16.msra.mxu0 0
    %3195 = vmatprep.subr.bf16.mxu0 0
    %3196 = vmatpush1.bf16.msra.mxu0 0
    %3197 = vmatprep.subr.bf16.mxu0 0
    %3198 = vmatpush1.bf16.msra.mxu0 0
    %3199 = vmatprep.subr.bf16.mxu0 0
    %3200 = vmatpush1.bf16.msra.mxu0 0
    %3201 = vmatprep.subr.bf16.mxu0 0
    %3202 = vmatpush1.bf16.msra.mxu0 0
    %3203 = vmatprep.mubr.bf16.mxu0 0
    %3204 = vmatmul.mubr.bf16.gmra.mrb[0].mxu0 %v3163
    %v3205 = vpop.f32.mrb[0].mxu0
    %v3206 = vadd.f32 %v2025, %v3205
    %v3207 = vpop.f32.mrb[0].mxu0
    %v3208 = vpop.f32.mrb[0].mxu0
    %v3209 = vadd.f32 %v2025, %v3208
    %v3210 = vpop.f32.mrb[0].mxu0
    %3211 = vmatprep.mubr.bf16.mxu0 0
    %3212 = vmatmul.mubr.bf16.gmra.mrb[0].mxu0 %v3164
    %v3213 = vpop.f32.mrb[0].mxu0
    %v3214 = vadd.f32 %v2025, %v3213
    %v3215 = vpop.f32.mrb[0].mxu0
    %v3216 = vpop.f32.mrb[0].mxu0
    %v3217 = vadd.f32 %v2025, %v3216
    %v3218 = vpop.f32.mrb[0].mxu0
    %3219 = vmatprep.mubr.bf16.mxu0 0
    %3220 = vmatmul.mubr.bf16.gmra.mrb[0].mxu0 %v3165
    %v3221 = vpop.f32.mrb[0].mxu0
    %v3222 = vadd.f32 %v2025, %v3221
    %v3223 = vpop.f32.mrb[0].mxu0
    %v3224 = vpop.f32.mrb[0].mxu0
    %v3225 = vadd.f32 %v2025, %v3224
    %v3226 = vpop.f32.mrb[0].mxu0
    %3227 = vmatprep.mubr.bf16.mxu0 0
    %3228 = vmatmul.mubr.bf16.gmra.mrb[0].mxu0 %v3166
    %v3229 = vpop.f32.mrb[0].mxu0
    %v3230 = vadd.f32 %v2025, %v3229
    %v3231 = vpop.f32.mrb[0].mxu0
    %v3232 = vpop.f32.mrb[0].mxu0
    %v3233 = vadd.f32 %v2025, %v3232
    %v3234 = vpop.f32.mrb[0].mxu0
    %3235 = vmatprep.mubr.bf16.mxu0 0
    %3236 = vmatmul.mubr.bf16.gmra.mrb[0].mxu0 %v3167
    %v3237 = vpop.f32.mrb[0].mxu0
    %v3238 = vadd.f32 %v2025, %v3237
    %v3239 = vpop.f32.mrb[0].mxu0
    %v3240 = vpop.f32.mrb[0].mxu0
    %v3241 = vadd.f32 %v2025, %v3240
    %v3242 = vpop.f32.mrb[0].mxu0
    %3243 = vmatprep.mubr.bf16.mxu0 0
    %3244 = vmatmul.mubr.bf16.gmra.mrb[0].mxu0 %v3168
    %v3245 = vpop.f32.mrb[0].mxu0
    %v3246 = vadd.f32 %v2025, %v3245
    %v3247 = vpop.f32.mrb[0].mxu0
    %v3248 = vpop.f32.mrb[0].mxu0
    %v3249 = vadd.f32 %v2025, %v3248
    %v3250 = vpop.f32.mrb[0].mxu0
    %3251 = vmatprep.mubr.bf16.mxu0 0
    %3252 = vmatmul.mubr.bf16.gmra.mrb[0].mxu0 %v3169
    %v3253 = vpop.f32.mrb[0].mxu0
    %v3254 = vadd.f32 %v2025, %v3253
    %v3255 = vpop.f32.mrb[0].mxu0
    %v3256 = vpop.f32.mrb[0].mxu0
    %v3257 = vadd.f32 %v2025, %v3256
    %v3258 = vpop.f32.mrb[0].mxu0
    %3259 = vmatprep.mubr.bf16.mxu0 0
    %3260 = vmatmul.mubr.bf16.gmra.mrb[0].mxu0 %v3170
    %v3261 = vpop.f32.mrb[0].mxu0
    %v3262 = vadd.f32 %v2025, %v3261
    %v3263 = vpop.f32.mrb[0].mxu0
    %v3264 = vpop.f32.mrb[0].mxu0
    %v3265 = vadd.f32 %v2025, %v3264
    %v3266 = vpop.f32.mrb[0].mxu0
    %3267 = vdwg.mxu0
    %v3268 = vtanh.pop %v3206
    %v3269 = vtanh.pop %v3209
    %v3270 = vtanh.pop %v3214
    %v3271 = vtanh.pop %v3217
    %v3272 = vtanh.pop %v3222
    %v3273 = vtanh.pop %v3225
    %v3274 = vtanh.pop %v3230
    %v3275 = vtanh.pop %v3233
    %v3276 = vtanh.pop %v3238
    %v3277 = vtanh.pop %v3241
    %v3278 = vtanh.pop %v3246
    %v3279 = vtanh.pop %v3249
    %v3280 = vtanh.pop %v3254
    %v3281 = vtanh.pop %v3257
    %v3282 = vtanh.pop %v3262
    %v3283 = vtanh.pop %v3265
    %v3284 = vmul.f32 %v3268, %v417
    %v3285 = vmul.f32 %v3269, %v419
    %v3286 = vmul.f32 %v3270, %v421
    %v3287 = vmul.f32 %v3271, %v423
    %v3288 = vmul.f32 %v3272, %v425
    %v3289 = vmul.f32 %v3273, %v427
    %v3290 = vmul.f32 %v3274, %v429
    %v3291 = vmul.f32 %v3275, %v431
    %v3292 = vmul.f32 %v3276, %v433
    %v3293 = vmul.f32 %v3277, %v435
    %v3294 = vmul.f32 %v3278, %v437
    %v3295 = vmul.f32 %v3279, %v439
    %v3296 = vmul.f32 %v3280, %v441
    %v3297 = vmul.f32 %v3281, %v443
    %v3298 = vmul.f32 %v3282, %v445
    %v3299 = vmul.f32 %v3283, %v447
    %v3300 = vpack.c.bf16 %v3285, %v3284
    %v3301 = vpack.c.bf16 %v3287, %v3286
    %v3302 = vpack.c.bf16 %v3289, %v3288
    %v3303 = vpack.c.bf16 %v3291, %v3290
    %v3304 = vpack.c.bf16 %v3293, %v3292
    %v3305 = vpack.c.bf16 %v3295, %v3294
    %v3306 = vpack.c.bf16 %v3297, %v3296
    %v3307 = vpack.c.bf16 %v3299, %v3298
    %3308 = vmatprep.subr.bf16.mxu0 0
    %3309 = vmatpush1.bf16.msra.mxu0 %v1429
    %3310 = vmatprep.subr.bf16.mxu0 0
    %3311 = vmatpush1.bf16.msra.mxu0 %v1430
    %3312 = vmatprep.subr.bf16.mxu0 0
    %3313 = vmatpush1.bf16.msra.mxu0 %v1431
    %3314 = vmatprep.subr.bf16.mxu0 0
    %3315 = vmatpush1.bf16.msra.mxu0 %v1432
    %3316 = vmatprep.subr.bf16.mxu0 0
    %3317 = vmatpush1.bf16.msra.mxu0 %v1433
    %3318 = vmatprep.subr.bf16.mxu0 0
    %3319 = vmatpush1.bf16.msra.mxu0 %v1434
    %3320 = vmatprep.subr.bf16.mxu0 0
    %3321 = vmatpush1.bf16.msra.mxu0 %v1435
    %3322 = vmatprep.subr.bf16.mxu0 0
    %3323 = vmatpush1.bf16.msra.mxu0 %v1436
    %3324 = vmatprep.subr.bf16.mxu0 0
    %3325 = vmatpush1.bf16.msra.mxu0 0
    %3326 = vmatprep.subr.bf16.mxu0 0
    %3327 = vmatpush1.bf16.msra.mxu0 0
    %3328 = vmatprep.subr.bf16.mxu0 0
    %3329 = vmatpush1.bf16.msra.mxu0 0
    %3330 = vmatprep.subr.bf16.mxu0 0
    %3331 = vmatpush1.bf16.msra.mxu0 0
    %3332 = vmatprep.subr.bf16.mxu0 0
    %3333 = vmatpush1.bf16.msra.mxu0 0
    %3334 = vmatprep.subr.bf16.mxu0 0
    %3335 = vmatpush1.bf16.msra.mxu0 0
    %3336 = vmatprep.subr.bf16.mxu0 0
    %3337 = vmatpush1.bf16.msra.mxu0 0
    %3338 = vmatprep.subr.bf16.mxu0 0
    %3339 = vmatpush1.bf16.msra.mxu0 0
    %3340 = vmatprep.mubr.bf16.mxu0 0
    %3341 = vmatmul.mubr.bf16.gmra.mrb[0].mxu0 %v3300
    %v3342 = vpop.f32.mrb[0].mxu0
    %v3343 = vadd.f32 %v1395, %v3342
    %v3344 = vpop.f32.mrb[0].mxu0
    %v3345 = vpop.f32.mrb[0].mxu0
    %v3346 = vadd.f32 %v1395, %v3345
    %v3347 = vpop.f32.mrb[0].mxu0
    %3348 = vmatprep.mubr.bf16.mxu0 0
    %3349 = vmatmul.mubr.bf16.gmra.mrb[0].mxu0 %v3301
    %v3350 = vpop.f32.mrb[0].mxu0
    %v3351 = vadd.f32 %v1395, %v3350
    %v3352 = vpop.f32.mrb[0].mxu0
    %v3353 = vpop.f32.mrb[0].mxu0
    %v3354 = vadd.f32 %v1395, %v3353
    %v3355 = vpop.f32.mrb[0].mxu0
    %3356 = vmatprep.mubr.bf16.mxu0 0
    %3357 = vmatmul.mubr.bf16.gmra.mrb[0].mxu0 %v3302
    %v3358 = vpop.f32.mrb[0].mxu0
    %v3359 = vadd.f32 %v1395, %v3358
    %v3360 = vpop.f32.mrb[0].mxu0
    %v3361 = vpop.f32.mrb[0].mxu0
    %v3362 = vadd.f32 %v1395, %v3361
    %v3363 = vpop.f32.mrb[0].mxu0
    %3364 = vmatprep.mubr.bf16.mxu0 0
    %3365 = vmatmul.mubr.bf16.gmra.mrb[0].mxu0 %v3303
    %v3366 = vpop.f32.mrb[0].mxu0
    %v3367 = vadd.f32 %v1395, %v3366
    %v3368 = vpop.f32.mrb[0].mxu0
    %v3369 = vpop.f32.mrb[0].mxu0
    %v3370 = vadd.f32 %v1395, %v3369
    %v3371 = vpop.f32.mrb[0].mxu0
    %3372 = vmatprep.mubr.bf16.mxu0 0
    %3373 = vmatmul.mubr.bf16.gmra.mrb[0].mxu0 %v3304
    %v3374 = vpop.f32.mrb[0].mxu0
    %v3375 = vadd.f32 %v1395, %v3374
    %v3376 = vpop.f32.mrb[0].mxu0
    %v3377 = vpop.f32.mrb[0].mxu0
    %v3378 = vadd.f32 %v1395, %v3377
    %v3379 = vpop.f32.mrb[0].mxu0
    %3380 = vmatprep.mubr.bf16.mxu0 0
    %3381 = vmatmul.mubr.bf16.gmra.mrb[0].mxu0 %v3305
    %v3382 = vpop.f32.mrb[0].mxu0
    %v3383 = vadd.f32 %v1395, %v3382
    %v3384 = vpop.f32.mrb[0].mxu0
    %v3385 = vpop.f32.mrb[0].mxu0
    %v3386 = vadd.f32 %v1395, %v3385
    %v3387 = vpop.f32.mrb[0].mxu0
    %3388 = vmatprep.mubr.bf16.mxu0 0
    %3389 = vmatmul.mubr.bf16.gmra.mrb[0].mxu0 %v3306
    %v3390 = vpop.f32.mrb[0].mxu0
    %v3391 = vadd.f32 %v1395, %v3390
    %v3392 = vpop.f32.mrb[0].mxu0
    %v3393 = vpop.f32.mrb[0].mxu0
    %v3394 = vadd.f32 %v1395, %v3393
    %v3395 = vpop.f32.mrb[0].mxu0
    %3396 = vmatprep.mubr.bf16.mxu0 0
    %3397 = vmatmul.mubr.bf16.gmra.mrb[0].mxu0 %v3307
    %v3398 = vpop.f32.mrb[0].mxu0
    %v3399 = vadd.f32 %v1395, %v3398
    %v3400 = vpop.f32.mrb[0].mxu0
    %v3401 = vpop.f32.mrb[0].mxu0
    %v3402 = vadd.f32 %v1395, %v3401
    %v3403 = vpop.f32.mrb[0].mxu0
    %3404 = vdwg.mxu0
    %v3405 = vtanh.pop %v3343
    %v3406 = vtanh.pop %v3346
    %v3407 = vtanh.pop %v3351
    %v3408 = vtanh.pop %v3354
    %v3409 = vtanh.pop %v3359
    %v3410 = vtanh.pop %v3362
    %v3411 = vtanh.pop %v3367
    %v3412 = vtanh.pop %v3370
    %v3413 = vtanh.pop %v3375
    %v3414 = vtanh.pop %v3378
    %v3415 = vtanh.pop %v3383
    %v3416 = vtanh.pop %v3386
    %v3417 = vtanh.pop %v3391
    %v3418 = vtanh.pop %v3394
    %v3419 = vtanh.pop %v3399
    %v3420 = vtanh.pop %v3402
    %v3421 = vmul.f32 %v3405, %v417
    %v3422 = vmul.f32 %v3406, %v419
    %v3423 = vmul.f32 %v3407, %v421
    %v3424 = vmul.f32 %v3408, %v423
    %v3425 = vmul.f32 %v3409, %v425
    %v3426 = vmul.f32 %v3410, %v427
    %v3427 = vmul.f32 %v3411, %v429
    %v3428 = vmul.f32 %v3412, %v431
    %v3429 = vmul.f32 %v3413, %v433
    %v3430 = vmul.f32 %v3414, %v435
    %v3431 = vmul.f32 %v3415, %v437
    %v3432 = vmul.f32 %v3416, %v439
    %v3433 = vmul.f32 %v3417, %v441
    %v3434 = vmul.f32 %v3418, %v443
    %v3435 = vmul.f32 %v3419, %v445
    %v3436 = vmul.f32 %v3420, %v447
    %v3437 = vpack.c.bf16 %v3422, %v3421
    %v3438 = vpack.c.bf16 %v3424, %v3423
    %v3439 = vpack.c.bf16 %v3426, %v3425
    %v3440 = vpack.c.bf16 %v3428, %v3427
    %v3441 = vpack.c.bf16 %v3430, %v3429
    %v3442 = vpack.c.bf16 %v3432, %v3431
    %v3443 = vpack.c.bf16 %v3434, %v3433
    %v3444 = vpack.c.bf16 %v3436, %v3435
    %3445 = vmatprep.subr.bf16.mxu0 0
    %3446 = vmatpush1.bf16.msra.mxu0 %v1639
    %3447 = vmatprep.subr.bf16.mxu0 0
    %3448 = vmatpush1.bf16.msra.mxu0 %v1640
    %3449 = vmatprep.subr.bf16.mxu0 0
    %3450 = vmatpush1.bf16.msra.mxu0 %v1641
    %3451 = vmatprep.subr.bf16.mxu0 0
    %3452 = vmatpush1.bf16.msra.mxu0 %v1642
    %3453 = vmatprep.subr.bf16.mxu0 0
    %3454 = vmatpush1.bf16.msra.mxu0 %v1643
    %3455 = vmatprep.subr.bf16.mxu0 0
    %3456 = vmatpush1.bf16.msra.mxu0 %v1644
    %3457 = vmatprep.subr.bf16.mxu0 0
    %3458 = vmatpush1.bf16.msra.mxu0 %v1645
    %3459 = vmatprep.subr.bf16.mxu0 0
    %3460 = vmatpush1.bf16.msra.mxu0 %v1646
    %3461 = vmatprep.subr.bf16.mxu0 0
    %3462 = vmatpush1.bf16.msra.mxu0 0
    %3463 = vmatprep.subr.bf16.mxu0 0
    %3464 = vmatpush1.bf16.msra.mxu0 0
    %3465 = vmatprep.subr.bf16.mxu0 0
    %3466 = vmatpush1.bf16.msra.mxu0 0
    %3467 = vmatprep.subr.bf16.mxu0 0
    %3468 = vmatpush1.bf16.msra.mxu0 0
    %3469 = vmatprep.subr.bf16.mxu0 0
    %3470 = vmatpush1.bf16.msra.mxu0 0
    %3471 = vmatprep.subr.bf16.mxu0 0
    %3472 = vmatpush1.bf16.msra.mxu0 0
    %3473 = vmatprep.subr.bf16.mxu0 0
    %3474 = vmatpush1.bf16.msra.mxu0 0
    %3475 = vmatprep.subr.bf16.mxu0 0
    %3476 = vmatpush1.bf16.msra.mxu0 0
    %3477 = vmatprep.mubr.bf16.mxu0 0
    %3478 = vmatmul.mubr.bf16.gmra.mrb[0].mxu0 %v3437
    %v3479 = vpop.f32.mrb[0].mxu0
    %v3480 = vadd.f32 %v1605, %v3479
    %v3481 = vpop.f32.mrb[0].mxu0
    %v3482 = vpop.f32.mrb[0].mxu0
    %v3483 = vadd.f32 %v1605, %v3482
    %v3484 = vpop.f32.mrb[0].mxu0
    %3485 = vmatprep.mubr.bf16.mxu0 0
    %3486 = vmatmul.mubr.bf16.gmra.mrb[0].mxu0 %v3438
    %v3487 = vpop.f32.mrb[0].mxu0
    %v3488 = vadd.f32 %v1605, %v3487
    %v3489 = vpop.f32.mrb[0].mxu0
    %v3490 = vpop.f32.mrb[0].mxu0
    %v3491 = vadd.f32 %v1605, %v3490
    %v3492 = vpop.f32.mrb[0].mxu0
    %3493 = vmatprep.mubr.bf16.mxu0 0
    %3494 = vmatmul.mubr.bf16.gmra.mrb[0].mxu0 %v3439
    %v3495 = vpop.f32.mrb[0].mxu0
    %v3496 = vadd.f32 %v1605, %v3495
    %v3497 = vpop.f32.mrb[0].mxu0
    %v3498 = vpop.f32.mrb[0].mxu0
    %v3499 = vadd.f32 %v1605, %v3498
    %v3500 = vpop.f32.mrb[0].mxu0
    %3501 = vmatprep.mubr.bf16.mxu0 0
    %3502 = vmatmul.mubr.bf16.gmra.mrb[0].mxu0 %v3440
    %v3503 = vpop.f32.mrb[0].mxu0
    %v3504 = vadd.f32 %v1605, %v3503
    %v3505 = vpop.f32.mrb[0].mxu0
    %v3506 = vpop.f32.mrb[0].mxu0
    %v3507 = vadd.f32 %v1605, %v3506
    %v3508 = vpop.f32.mrb[0].mxu0
    %3509 = vmatprep.mubr.bf16.mxu0 0
    %3510 = vmatmul.mubr.bf16.gmra.mrb[0].mxu0 %v3441
    %v3511 = vpop.f32.mrb[0].mxu0
    %v3512 = vadd.f32 %v1605, %v3511
    %v3513 = vpop.f32.mrb[0].mxu0
    %v3514 = vpop.f32.mrb[0].mxu0
    %v3515 = vadd.f32 %v1605, %v3514
    %v3516 = vpop.f32.mrb[0].mxu0
    %3517 = vmatprep.mubr.bf16.mxu0 0
    %3518 = vmatmul.mubr.bf16.gmra.mrb[0].mxu0 %v3442
    %v3519 = vpop.f32.mrb[0].mxu0
    %v3520 = vadd.f32 %v1605, %v3519
    %v3521 = vpop.f32.mrb[0].mxu0
    %v3522 = vpop.f32.mrb[0].mxu0
    %v3523 = vadd.f32 %v1605, %v3522
    %v3524 = vpop.f32.mrb[0].mxu0
    %3525 = vmatprep.mubr.bf16.mxu0 0
    %3526 = vmatmul.mubr.bf16.gmra.mrb[0].mxu0 %v3443
    %v3527 = vpop.f32.mrb[0].mxu0
    %v3528 = vadd.f32 %v1605, %v3527
    %v3529 = vpop.f32.mrb[0].mxu0
    %v3530 = vpop.f32.mrb[0].mxu0
    %v3531 = vadd.f32 %v1605, %v3530
    %v3532 = vpop.f32.mrb[0].mxu0
    %3533 = vmatprep.mubr.bf16.mxu0 0
    %3534 = vmatmul.mubr.bf16.gmra.mrb[0].mxu0 %v3444
    %v3535 = vpop.f32.mrb[0].mxu0
    %v3536 = vadd.f32 %v1605, %v3535
    %v3537 = vpop.f32.mrb[0].mxu0
    %v3538 = vpop.f32.mrb[0].mxu0
    %v3539 = vadd.f32 %v1605, %v3538
    %v3540 = vpop.f32.mrb[0].mxu0
    %3541 = vdwg.mxu0
    %v3542 = vtanh.pop %v3480
    %v3543 = vtanh.pop %v3483
    %v3544 = vtanh.pop %v3488
    %v3545 = vtanh.pop %v3491
    %v3546 = vtanh.pop %v3496
    %v3547 = vtanh.pop %v3499
    %v3548 = vtanh.pop %v3504
    %v3549 = vtanh.pop %v3507
    %v3550 = vtanh.pop %v3512
    %v3551 = vtanh.pop %v3515
    %v3552 = vtanh.pop %v3520
    %v3553 = vtanh.pop %v3523
    %v3554 = vtanh.pop %v3528
    %v3555 = vtanh.pop %v3531
    %v3556 = vtanh.pop %v3536
    %v3557 = vtanh.pop %v3539
    %v3558 = vmul.f32 %v3542, %v417
    %v3559 = vmul.f32 %v3543, %v419
    %v3560 = vmul.f32 %v3544, %v421
    %v3561 = vmul.f32 %v3545, %v423
    %v3562 = vmul.f32 %v3546, %v425
    %v3563 = vmul.f32 %v3547, %v427
    %v3564 = vmul.f32 %v3548, %v429
    %v3565 = vmul.f32 %v3549, %v431
    %v3566 = vmul.f32 %v3550, %v433
    %v3567 = vmul.f32 %v3551, %v435
    %v3568 = vmul.f32 %v3552, %v437
    %v3569 = vmul.f32 %v3553, %v439
    %v3570 = vmul.f32 %v3554, %v441
    %v3571 = vmul.f32 %v3555, %v443
    %v3572 = vmul.f32 %v3556, %v445
    %v3573 = vmul.f32 %v3557, %v447
    %v3574 = vpack.c.bf16 %v3559, %v3558
    %v3575 = vpack.c.bf16 %v3561, %v3560
    %v3576 = vpack.c.bf16 %v3563, %v3562
    %v3577 = vpack.c.bf16 %v3565, %v3564
    %v3578 = vpack.c.bf16 %v3567, %v3566
    %v3579 = vpack.c.bf16 %v3569, %v3568
    %v3580 = vpack.c.bf16 %v3571, %v3570
    %v3581 = vpack.c.bf16 %v3573, %v3572
    %3582 = vmatprep.subr.bf16.mxu0 0
    %3583 = vmatpush1.bf16.msra.mxu0 %v1849
    %3584 = vmatprep.subr.bf16.mxu0 0
    %3585 = vmatpush1.bf16.msra.mxu0 %v1850
    %3586 = vmatprep.subr.bf16.mxu0 0
    %3587 = vmatpush1.bf16.msra.mxu0 %v1851
    %3588 = vmatprep.subr.bf16.mxu0 0
    %3589 = vmatpush1.bf16.msra.mxu0 %v1852
    %3590 = vmatprep.subr.bf16.mxu0 0
    %3591 = vmatpush1.bf16.msra.mxu0 %v1853
    %3592 = vmatprep.subr.bf16.mxu0 0
    %3593 = vmatpush1.bf16.msra.mxu0 %v1854
    %3594 = vmatprep.subr.bf16.mxu0 0
    %3595 = vmatpush1.bf16.msra.mxu0 %v1855
    %3596 = vmatprep.subr.bf16.mxu0 0
    %3597 = vmatpush1.bf16.msra.mxu0 %v1856
    %3598 = vmatprep.subr.bf16.mxu0 0
    %3599 = vmatpush1.bf16.msra.mxu0 0
    %3600 = vmatprep.subr.bf16.mxu0 0
    %3601 = vmatpush1.bf16.msra.mxu0 0
    %3602 = vmatprep.subr.bf16.mxu0 0
    %3603 = vmatpush1.bf16.msra.mxu0 0
    %3604 = vmatprep.subr.bf16.mxu0 0
    %3605 = vmatpush1.bf16.msra.mxu0 0
    %3606 = vmatprep.subr.bf16.mxu0 0
    %3607 = vmatpush1.bf16.msra.mxu0 0
    %3608 = vmatprep.subr.bf16.mxu0 0
    %3609 = vmatpush1.bf16.msra.mxu0 0
    %3610 = vmatprep.subr.bf16.mxu0 0
    %3611 = vmatpush1.bf16.msra.mxu0 0
    %3612 = vmatprep.subr.bf16.mxu0 0
    %3613 = vmatpush1.bf16.msra.mxu0 0
    %3614 = vmatprep.mubr.bf16.mxu0 0
    %3615 = vmatmul.mubr.bf16.gmra.mrb[0].mxu0 %v3574
    %v3616 = vpop.f32.mrb[0].mxu0
    %v3617 = vadd.f32 %v1815, %v3616
    %v3618 = vpop.f32.mrb[0].mxu0
    %v3619 = vpop.f32.mrb[0].mxu0
    %v3620 = vadd.f32 %v1815, %v3619
    %v3621 = vpop.f32.mrb[0].mxu0
    %3622 = vmatprep.mubr.bf16.mxu0 0
    %3623 = vmatmul.mubr.bf16.gmra.mrb[0].mxu0 %v3575
    %v3624 = vpop.f32.mrb[0].mxu0
    %v3625 = vadd.f32 %v1815, %v3624
    %v3626 = vpop.f32.mrb[0].mxu0
    %v3627 = vpop.f32.mrb[0].mxu0
    %v3628 = vadd.f32 %v1815, %v3627
    %v3629 = vpop.f32.mrb[0].mxu0
    %3630 = vmatprep.mubr.bf16.mxu0 0
    %3631 = vmatmul.mubr.bf16.gmra.mrb[0].mxu0 %v3576
    %v3632 = vpop.f32.mrb[0].mxu0
    %v3633 = vadd.f32 %v1815, %v3632
    %v3634 = vpop.f32.mrb[0].mxu0
    %v3635 = vpop.f32.mrb[0].mxu0
    %v3636 = vadd.f32 %v1815, %v3635
    %v3637 = vpop.f32.mrb[0].mxu0
    %3638 = vmatprep.mubr.bf16.mxu0 0
    %3639 = vmatmul.mubr.bf16.gmra.mrb[0].mxu0 %v3577
    %v3640 = vpop.f32.mrb[0].mxu0
    %v3641 = vadd.f32 %v1815, %v3640
    %v3642 = vpop.f32.mrb[0].mxu0
    %v3643 = vpop.f32.mrb[0].mxu0
    %v3644 = vadd.f32 %v1815, %v3643
    %v3645 = vpop.f32.mrb[0].mxu0
    %3646 = vmatprep.mubr.bf16.mxu0 0
    %3647 = vmatmul.mubr.bf16.gmra.mrb[0].mxu0 %v3578
    %v3648 = vpop.f32.mrb[0].mxu0
    %v3649 = vadd.f32 %v1815, %v3648
    %v3650 = vpop.f32.mrb[0].mxu0
    %v3651 = vpop.f32.mrb[0].mxu0
    %v3652 = vadd.f32 %v1815, %v3651
    %v3653 = vpop.f32.mrb[0].mxu0
    %3654 = vmatprep.mubr.bf16.mxu0 0
    %3655 = vmatmul.mubr.bf16.gmra.mrb[0].mxu0 %v3579
    %v3656 = vpop.f32.mrb[0].mxu0
    %v3657 = vadd.f32 %v1815, %v3656
    %v3658 = vpop.f32.mrb[0].mxu0
    %v3659 = vpop.f32.mrb[0].mxu0
    %v3660 = vadd.f32 %v1815, %v3659
    %v3661 = vpop.f32.mrb[0].mxu0
    %3662 = vmatprep.mubr.bf16.mxu0 0
    %3663 = vmatmul.mubr.bf16.gmra.mrb[0].mxu0 %v3580
    %v3664 = vpop.f32.mrb[0].mxu0
    %v3665 = vadd.f32 %v1815, %v3664
    %v3666 = vpop.f32.mrb[0].mxu0
    %v3667 = vpop.f32.mrb[0].mxu0
    %v3668 = vadd.f32 %v1815, %v3667
    %v3669 = vpop.f32.mrb[0].mxu0
    %3670 = vmatprep.mubr.bf16.mxu0 0
    %3671 = vmatmul.mubr.bf16.gmra.mrb[0].mxu0 %v3581
    %v3672 = vpop.f32.mrb[0].mxu0
    %v3673 = vadd.f32 %v1815, %v3672
    %v3674 = vpop.f32.mrb[0].mxu0
    %v3675 = vpop.f32.mrb[0].mxu0
    %v3676 = vadd.f32 %v1815, %v3675
    %v3677 = vpop.f32.mrb[0].mxu0
    %3678 = vdwg.mxu0
    %v3679 = vtanh.pop %v3617
    %v3680 = vtanh.pop %v3620
    %v3681 = vtanh.pop %v3625
    %v3682 = vtanh.pop %v3628
    %v3683 = vtanh.pop %v3633
    %v3684 = vtanh.pop %v3636
    %v3685 = vtanh.pop %v3641
    %v3686 = vtanh.pop %v3644
    %v3687 = vtanh.pop %v3649
    %v3688 = vtanh.pop %v3652
    %v3689 = vtanh.pop %v3657
    %v3690 = vtanh.pop %v3660
    %v3691 = vtanh.pop %v3665
    %v3692 = vtanh.pop %v3668
    %v3693 = vtanh.pop %v3673
    %v3694 = vtanh.pop %v3676
    %v3695 = vmul.f32 %v3679, %v417
    %v3696 = vmul.f32 %v3680, %v419
    %v3697 = vmul.f32 %v3681, %v421
    %v3698 = vmul.f32 %v3682, %v423
    %v3699 = vmul.f32 %v3683, %v425
    %v3700 = vmul.f32 %v3684, %v427
    %v3701 = vmul.f32 %v3685, %v429
    %v3702 = vmul.f32 %v3686, %v431
    %v3703 = vmul.f32 %v3687, %v433
    %v3704 = vmul.f32 %v3688, %v435
    %v3705 = vmul.f32 %v3689, %v437
    %v3706 = vmul.f32 %v3690, %v439
    %v3707 = vmul.f32 %v3691, %v441
    %v3708 = vmul.f32 %v3692, %v443
    %v3709 = vmul.f32 %v3693, %v445
    %v3710 = vmul.f32 %v3694, %v447
    %v3711 = vpack.c.bf16 %v3696, %v3695
    %v3712 = vpack.c.bf16 %v3698, %v3697
    %v3713 = vpack.c.bf16 %v3700, %v3699
    %v3714 = vpack.c.bf16 %v3702, %v3701
    %v3715 = vpack.c.bf16 %v3704, %v3703
    %v3716 = vpack.c.bf16 %v3706, %v3705
    %v3717 = vpack.c.bf16 %v3708, %v3707
    %v3718 = vpack.c.bf16 %v3710, %v3709
    %3719 = vmatprep.subr.bf16.mxu0 0
    %3720 = vmatpush1.bf16.msra.mxu0 %v2059
    %3721 = vmatprep.subr.bf16.mxu0 0
    %3722 = vmatpush1.bf16.msra.mxu0 %v2060
    %3723 = vmatprep.subr.bf16.mxu0 0
    %3724 = vmatpush1.bf16.msra.mxu0 %v2061
    %3725 = vmatprep.subr.bf16.mxu0 0
    %3726 = vmatpush1.bf16.msra.mxu0 %v2062
    %3727 = vmatprep.subr.bf16.mxu0 0
    %3728 = vmatpush1.bf16.msra.mxu0 %v2063
    %3729 = vmatprep.subr.bf16.mxu0 0
    %3730 = vmatpush1.bf16.msra.mxu0 %v2064
    %3731 = vmatprep.subr.bf16.mxu0 0
    %3732 = vmatpush1.bf16.msra.mxu0 %v2065
    %3733 = vmatprep.subr.bf16.mxu0 0
    %3734 = vmatpush1.bf16.msra.mxu0 %v2066
    %3735 = vmatprep.subr.bf16.mxu0 0
    %3736 = vmatpush1.bf16.msra.mxu0 0
    %3737 = vmatprep.subr.bf16.mxu0 0
    %3738 = vmatpush1.bf16.msra.mxu0 0
    %3739 = vmatprep.subr.bf16.mxu0 0
    %3740 = vmatpush1.bf16.msra.mxu0 0
    %3741 = vmatprep.subr.bf16.mxu0 0
    %3742 = vmatpush1.bf16.msra.mxu0 0
    %3743 = vmatprep.subr.bf16.mxu0 0
    %3744 = vmatpush1.bf16.msra.mxu0 0
    %3745 = vmatprep.subr.bf16.mxu0 0
    %3746 = vmatpush1.bf16.msra.mxu0 0
    %3747 = vmatprep.subr.bf16.mxu0 0
    %3748 = vmatpush1.bf16.msra.mxu0 0
    %3749 = vmatprep.subr.bf16.mxu0 0
    %3750 = vmatpush1.bf16.msra.mxu0 0
    %3751 = vmatprep.mubr.bf16.mxu0 0
    %3752 = vmatmul.mubr.bf16.gmra.mrb[0].mxu0 %v3711
    %v3753 = vpop.f32.mrb[0].mxu0
    %v3754 = vadd.f32 %v2025, %v3753
    %v3755 = vpop.f32.mrb[0].mxu0
    %v3756 = vpop.f32.mrb[0].mxu0
    %v3757 = vadd.f32 %v2025, %v3756
    %v3758 = vpop.f32.mrb[0].mxu0
    %3759 = vmatprep.mubr.bf16.mxu0 0
    %3760 = vmatmul.mubr.bf16.gmra.mrb[0].mxu0 %v3712
    %v3761 = vpop.f32.mrb[0].mxu0
    %v3762 = vadd.f32 %v2025, %v3761
    %v3763 = vpop.f32.mrb[0].mxu0
    %v3764 = vpop.f32.mrb[0].mxu0
    %v3765 = vadd.f32 %v2025, %v3764
    %v3766 = vpop.f32.mrb[0].mxu0
    %3767 = vmatprep.mubr.bf16.mxu0 0
    %3768 = vmatmul.mubr.bf16.gmra.mrb[0].mxu0 %v3713
    %v3769 = vpop.f32.mrb[0].mxu0
    %v3770 = vadd.f32 %v2025, %v3769
    %v3771 = vpop.f32.mrb[0].mxu0
    %v3772 = vpop.f32.mrb[0].mxu0
    %v3773 = vadd.f32 %v2025, %v3772
    %v3774 = vpop.f32.mrb[0].mxu0
    %3775 = vmatprep.mubr.bf16.mxu0 0
    %3776 = vmatmul.mubr.bf16.gmra.mrb[0].mxu0 %v3714
    %v3777 = vpop.f32.mrb[0].mxu0
    %v3778 = vadd.f32 %v2025, %v3777
    %v3779 = vpop.f32.mrb[0].mxu0
    %v3780 = vpop.f32.mrb[0].mxu0
    %v3781 = vadd.f32 %v2025, %v3780
    %v3782 = vpop.f32.mrb[0].mxu0
    %3783 = vmatprep.mubr.bf16.mxu0 0
    %3784 = vmatmul.mubr.bf16.gmra.mrb[0].mxu0 %v3715
    %v3785 = vpop.f32.mrb[0].mxu0
    %v3786 = vadd.f32 %v2025, %v3785
    %v3787 = vpop.f32.mrb[0].mxu0
    %v3788 = vpop.f32.mrb[0].mxu0
    %v3789 = vadd.f32 %v2025, %v3788
    %v3790 = vpop.f32.mrb[0].mxu0
    %3791 = vmatprep.mubr.bf16.mxu0 0
    %3792 = vmatmul.mubr.bf16.gmra.mrb[0].mxu0 %v3716
    %v3793 = vpop.f32.mrb[0].mxu0
    %v3794 = vadd.f32 %v2025, %v3793
    %v3795 = vpop.f32.mrb[0].mxu0
    %v3796 = vpop.f32.mrb[0].mxu0
    %v3797 = vadd.f32 %v2025, %v3796
    %v3798 = vpop.f32.mrb[0].mxu0
    %3799 = vmatprep.mubr.bf16.mxu0 0
    %3800 = vmatmul.mubr.bf16.gmra.mrb[0].mxu0 %v3717
    %v3801 = vpop.f32.mrb[0].mxu0
    %v3802 = vadd.f32 %v2025, %v3801
    %v3803 = vpop.f32.mrb[0].mxu0
    %v3804 = vpop.f32.mrb[0].mxu0
    %v3805 = vadd.f32 %v2025, %v3804
    %v3806 = vpop.f32.mrb[0].mxu0
    %3807 = vmatprep.mubr.bf16.mxu0 0
    %3808 = vmatmul.mubr.bf16.gmra.mrb[0].mxu0 %v3718
    %v3809 = vpop.f32.mrb[0].mxu0
    %v3810 = vadd.f32 %v2025, %v3809
    %v3811 = vpop.f32.mrb[0].mxu0
    %v3812 = vpop.f32.mrb[0].mxu0
    %v3813 = vadd.f32 %v2025, %v3812
    %v3814 = vpop.f32.mrb[0].mxu0
    %3815 = vdwg.mxu0
    %v3816 = vtanh.pop %v3754
    %v3817 = vtanh.pop %v3757
    %v3818 = vtanh.pop %v3762
    %v3819 = vtanh.pop %v3765
    %v3820 = vtanh.pop %v3770
    %v3821 = vtanh.pop %v3773
    %v3822 = vtanh.pop %v3778
    %v3823 = vtanh.pop %v3781
    %v3824 = vtanh.pop %v3786
    %v3825 = vtanh.pop %v3789
    %v3826 = vtanh.pop %v3794
    %v3827 = vtanh.pop %v3797
    %v3828 = vtanh.pop %v3802
    %v3829 = vtanh.pop %v3805
    %v3830 = vtanh.pop %v3810
    %v3831 = vtanh.pop %v3813
    %3832 = vst [vmem:[#allocation15] sm:$0xff] %v3816
    %3833 = vst [vmem:[#allocation15 + $0x8] sm:$0xff] %v3817
    %3834 = vst [vmem:[#allocation15 + $0x10] sm:$0xff] %v3818
    %3835 = vst [vmem:[#allocation15 + $0x18] sm:$0xff] %v3819
    %3836 = vst [vmem:[#allocation15 + $0x20] sm:$0xff] %v3820
    %3837 = vst [vmem:[#allocation15 + $0x28] sm:$0xff] %v3821
    %3838 = vst [vmem:[#allocation15 + $0x30] sm:$0xff] %v3822
    %3839 = vst [vmem:[#allocation15 + $0x38] sm:$0xff] %v3823
    %3840 = vst [vmem:[#allocation15 + $0x40] sm:$0xff] %v3824
    %3841 = vst [vmem:[#allocation15 + $0x48] sm:$0xff] %v3825
    %3842 = vst [vmem:[#allocation15 + $0x50] sm:$0xff] %v3826
    %3843 = vst [vmem:[#allocation15 + $0x58] sm:$0xff] %v3827
    %3844 = vst [vmem:[#allocation15 + $0x60] sm:$0xff] %v3828
    %3845 = vst [vmem:[#allocation15 + $0x68] sm:$0xff] %v3829
    %3846 = vst [vmem:[#allocation15 + $0x70] sm:$0xff] %v3830
    %3847 = vst [vmem:[#allocation15 + $0x78] sm:$0xff] %v3831
    %v3848 = vpack.c.bf16 %v3817, %v3816
    %v3849 = vpack.c.bf16 %v3819, %v3818
    %v3850 = vpack.c.bf16 %v3821, %v3820
    %v3851 = vpack.c.bf16 %v3823, %v3822
    %v3852 = vpack.c.bf16 %v3825, %v3824
    %v3853 = vpack.c.bf16 %v3827, %v3826
    %v3854 = vpack.c.bf16 %v3829, %v3828
    %v3855 = vpack.c.bf16 %v3831, %v3830
    %v3856 = vld [vmem:[#allocation11] sm:$0xf]
    %v3857 = vld [vmem:[#allocation11 + $0x4] sm:$0xf]
    %v3858 = vld [vmem:[#allocation11 + $0x8] sm:$0xf]
    %v3859 = vld [vmem:[#allocation11 + $0xc] sm:$0xf]
    %v3860 = vld [vmem:[#allocation11 + $0x10] sm:$0xf]
    %v3861 = vld [vmem:[#allocation11 + $0x14] sm:$0xf]
    %v3862 = vld [vmem:[#allocation11 + $0x18] sm:$0xf]
    %v3863 = vld [vmem:[#allocation11 + $0x1c] sm:$0xf]
    %v3864 = vld [vmem:[#allocation11 + $0x20] sm:$0xf]
    %v3865 = vld [vmem:[#allocation11 + $0x24] sm:$0xf]
    %v3866 = vld [vmem:[#allocation11 + $0x28] sm:$0xf]
    %v3867 = vld [vmem:[#allocation11 + $0x2c] sm:$0xf]
    %v3868 = vld [vmem:[#allocation11 + $0x30] sm:$0xf]
    %v3869 = vld [vmem:[#allocation11 + $0x34] sm:$0xf]
    %v3870 = vld [vmem:[#allocation11 + $0x38] sm:$0xf]
    %v3871 = vld [vmem:[#allocation11 + $0x3c] sm:$0xf]
    %v3872 = vld [vmem:[%s8] sm:$0x1]
    %v3874 = vlaneseq
    %v3875 = vshrl.u32 %v3874, 7
    %v3876 = vsub.s32 0, %v3875
    %v3877 = vrot.slane %v3872, %v3876
    %v3895 = vunpack.c.l.b16 %v3856
    %v3896 = vunpack.c.l.b16 %v3857
    %v3897 = vunpack.c.l.b16 %v3858
    %v3898 = vunpack.c.l.b16 %v3859
    %v3899 = vunpack.c.l.b16 %v3860
    %v3900 = vunpack.c.l.b16 %v3861
    %v3901 = vunpack.c.l.b16 %v3862
    %v3902 = vunpack.c.l.b16 %v3863
    %v3903 = vunpack.c.l.b16 %v3864
    %v3904 = vunpack.c.l.b16 %v3865
    %v3905 = vunpack.c.l.b16 %v3866
    %v3906 = vunpack.c.l.b16 %v3867
    %v3907 = vunpack.c.l.b16 %v3868
    %v3908 = vunpack.c.l.b16 %v3869
    %v3909 = vunpack.c.l.b16 %v3870
    %v3910 = vunpack.c.l.b16 %v3871
    %v3911 = vpack.c.b16 %v3896, %v3895
    %v3912 = vpack.c.b16 %v3898, %v3897
    %v3913 = vpack.c.b16 %v3900, %v3899
    %v3914 = vpack.c.b16 %v3902, %v3901
    %v3915 = vpack.c.b16 %v3904, %v3903
    %v3916 = vpack.c.b16 %v3906, %v3905
    %v3917 = vpack.c.b16 %v3908, %v3907
    %v3918 = vpack.c.b16 %v3910, %v3909
    %3927 = vmatprep.subr.bf16.mxu0 0
    %3928 = vmatpush1.bf16.msra.mxu0 %v3911
    %3929 = vmatprep.subr.bf16.mxu0 0
    %3930 = vmatpush1.bf16.msra.mxu0 %v3912
    %3931 = vmatprep.subr.bf16.mxu0 0
    %3932 = vmatpush1.bf16.msra.mxu0 %v3913
    %3933 = vmatprep.subr.bf16.mxu0 0
    %3934 = vmatpush1.bf16.msra.mxu0 %v3914
    %3935 = vmatprep.subr.bf16.mxu0 0
    %3936 = vmatpush1.bf16.msra.mxu0 %v3915
    %3937 = vmatprep.subr.bf16.mxu0 0
    %3938 = vmatpush1.bf16.msra.mxu0 %v3916
    %3939 = vmatprep.subr.bf16.mxu0 0
    %3940 = vmatpush1.bf16.msra.mxu0 %v3917
    %3941 = vmatprep.subr.bf16.mxu0 0
    %3942 = vmatpush1.bf16.msra.mxu0 %v3918
    %3943 = vmatprep.subr.bf16.mxu0 0
    %3944 = vmatpush1.bf16.msra.mxu0 0
    %3945 = vmatprep.subr.bf16.mxu0 0
    %3946 = vmatpush1.bf16.msra.mxu0 0
    %3947 = vmatprep.subr.bf16.mxu0 0
    %3948 = vmatpush1.bf16.msra.mxu0 0
    %3949 = vmatprep.subr.bf16.mxu0 0
    %3950 = vmatpush1.bf16.msra.mxu0 0
    %3951 = vmatprep.subr.bf16.mxu0 0
    %3952 = vmatpush1.bf16.msra.mxu0 0
    %3953 = vmatprep.subr.bf16.mxu0 0
    %3954 = vmatpush1.bf16.msra.mxu0 0
    %3955 = vmatprep.subr.bf16.mxu0 0
    %3956 = vmatpush1.bf16.msra.mxu0 0
    %3957 = vmatprep.subr.bf16.mxu0 0
    %3958 = vmatpush1.bf16.msra.mxu0 0
    %3959 = vmatprep.mubr.bf16.mxu0 0
    %3960 = vmatmul.mubr.bf16.gmra.mrb[0].mxu0 %v3848
    %v3961 = vpop.f32.mrb[0].mxu0
    %v3962 = vadd.f32 %v3877, %v3961
    %v3963 = vpop.f32.mrb[0].mxu0
    %v3964 = vpop.f32.mrb[0].mxu0
    %v3965 = vadd.f32 %v3877, %v3964
    %v3966 = vpop.f32.mrb[0].mxu0
    %3967 = vmatprep.mubr.bf16.mxu0 0
    %3968 = vmatmul.mubr.bf16.gmra.mrb[0].mxu0 %v3849
    %v3969 = vpop.f32.mrb[0].mxu0
    %v3970 = vadd.f32 %v3877, %v3969
    %v3971 = vpop.f32.mrb[0].mxu0
    %v3972 = vpop.f32.mrb[0].mxu0
    %v3973 = vadd.f32 %v3877, %v3972
    %v3974 = vpop.f32.mrb[0].mxu0
    %3975 = vmatprep.mubr.bf16.mxu0 0
    %3976 = vmatmul.mubr.bf16.gmra.mrb[0].mxu0 %v3850
    %v3977 = vpop.f32.mrb[0].mxu0
    %v3978 = vadd.f32 %v3877, %v3977
    %v3979 = vpop.f32.mrb[0].mxu0
    %v3980 = vpop.f32.mrb[0].mxu0
    %v3981 = vadd.f32 %v3877, %v3980
    %v3982 = vpop.f32.mrb[0].mxu0
    %3983 = vmatprep.mubr.bf16.mxu0 0
    %3984 = vmatmul.mubr.bf16.gmra.mrb[0].mxu0 %v3851
    %v3985 = vpop.f32.mrb[0].mxu0
    %v3986 = vadd.f32 %v3877, %v3985
    %v3987 = vpop.f32.mrb[0].mxu0
    %v3988 = vpop.f32.mrb[0].mxu0
    %v3989 = vadd.f32 %v3877, %v3988
    %v3990 = vpop.f32.mrb[0].mxu0
    %3991 = vmatprep.mubr.bf16.mxu0 0
    %3992 = vmatmul.mubr.bf16.gmra.mrb[0].mxu0 %v3852
    %v3993 = vpop.f32.mrb[0].mxu0
    %v3994 = vadd.f32 %v3877, %v3993
    %v3995 = vpop.f32.mrb[0].mxu0
    %v3996 = vpop.f32.mrb[0].mxu0
    %v3997 = vadd.f32 %v3877, %v3996
    %v3998 = vpop.f32.mrb[0].mxu0
    %3999 = vmatprep.mubr.bf16.mxu0 0
    %4000 = vmatmul.mubr.bf16.gmra.mrb[0].mxu0 %v3853
    %v4001 = vpop.f32.mrb[0].mxu0
    %v4002 = vadd.f32 %v3877, %v4001
    %v4003 = vpop.f32.mrb[0].mxu0
    %v4004 = vpop.f32.mrb[0].mxu0
    %v4005 = vadd.f32 %v3877, %v4004
    %v4006 = vpop.f32.mrb[0].mxu0
    %4007 = vmatprep.mubr.bf16.mxu0 0
    %4008 = vmatmul.mubr.bf16.gmra.mrb[0].mxu0 %v3854
    %v4009 = vpop.f32.mrb[0].mxu0
    %v4010 = vadd.f32 %v3877, %v4009
    %v4011 = vpop.f32.mrb[0].mxu0
    %v4012 = vpop.f32.mrb[0].mxu0
    %v4013 = vadd.f32 %v3877, %v4012
    %v4014 = vpop.f32.mrb[0].mxu0
    %4015 = vmatprep.mubr.bf16.mxu0 0
    %4016 = vmatmul.mubr.bf16.gmra.mrb[0].mxu0 %v3855
    %v4017 = vpop.f32.mrb[0].mxu0
    %v4018 = vadd.f32 %v3877, %v4017
    %v4019 = vpop.f32.mrb[0].mxu0
    %v4020 = vpop.f32.mrb[0].mxu0
    %v4021 = vadd.f32 %v3877, %v4020
    %v4022 = vpop.f32.mrb[0].mxu0
    %4023 = vdwg.mxu0
    %4024 = vst [vmem:[#allocation17] sm:$0xff] %v3962
    %4025 = vst [vmem:[#allocation17 + $0x8] sm:$0xff] %v3965
    %4026 = vst [vmem:[#allocation17 + $0x10] sm:$0xff] %v3970
    %4027 = vst [vmem:[#allocation17 + $0x18] sm:$0xff] %v3973
    %4028 = vst [vmem:[#allocation17 + $0x20] sm:$0xff] %v3978
    %4029 = vst [vmem:[#allocation17 + $0x28] sm:$0xff] %v3981
    %4030 = vst [vmem:[#allocation17 + $0x30] sm:$0xff] %v3986
    %4031 = vst [vmem:[#allocation17 + $0x38] sm:$0xff] %v3989
    %4032 = vst [vmem:[#allocation17 + $0x40] sm:$0xff] %v3994
    %4033 = vst [vmem:[#allocation17 + $0x48] sm:$0xff] %v3997
    %4034 = vst [vmem:[#allocation17 + $0x50] sm:$0xff] %v4002
    %4035 = vst [vmem:[#allocation17 + $0x58] sm:$0xff] %v4005
    %4036 = vst [vmem:[#allocation17 + $0x60] sm:$0xff] %v4010
    %4037 = vst [vmem:[#allocation17 + $0x68] sm:$0xff] %v4013
    %4038 = vst [vmem:[#allocation17 + $0x70] sm:$0xff] %v4018
    %4039 = vst [vmem:[#allocation17 + $0x78] sm:$0xff] %v4021
    %v4040 = vld [vmem:[#allocation13] sm:$0xf]
    %v4041 = vld [vmem:[#allocation13 + $0x4] sm:$0xf]
    %v4042 = vld [vmem:[#allocation13 + $0x8] sm:$0xf]
    %v4043 = vld [vmem:[#allocation13 + $0xc] sm:$0xf]
    %v4044 = vld [vmem:[#allocation13 + $0x10] sm:$0xf]
    %v4045 = vld [vmem:[#allocation13 + $0x14] sm:$0xf]
    %v4046 = vld [vmem:[#allocation13 + $0x18] sm:$0xf]
    %v4047 = vld [vmem:[#allocation13 + $0x1c] sm:$0xf]
    %v4048 = vld [vmem:[#allocation13 + $0x20] sm:$0xf]
    %v4049 = vld [vmem:[#allocation13 + $0x24] sm:$0xf]
    %v4050 = vld [vmem:[#allocation13 + $0x28] sm:$0xf]
    %v4051 = vld [vmem:[#allocation13 + $0x2c] sm:$0xf]
    %v4052 = vld [vmem:[#allocation13 + $0x30] sm:$0xf]
    %v4053 = vld [vmem:[#allocation13 + $0x34] sm:$0xf]
    %v4054 = vld [vmem:[#allocation13 + $0x38] sm:$0xf]
    %v4055 = vld [vmem:[#allocation13 + $0x3c] sm:$0xf]
    %v4056 = vld [vmem:[%s10] sm:$0x1]
    %v4058 = vlaneseq
    %v4059 = vshrl.u32 %v4058, 7
    %v4060 = vsub.s32 0, %v4059
    %v4061 = vrot.slane %v4056, %v4060
    %v4079 = vunpack.c.l.b16 %v4040
    %v4080 = vunpack.c.l.b16 %v4041
    %v4081 = vunpack.c.l.b16 %v4042
    %v4082 = vunpack.c.l.b16 %v4043
    %v4083 = vunpack.c.l.b16 %v4044
    %v4084 = vunpack.c.l.b16 %v4045
    %v4085 = vunpack.c.l.b16 %v4046
    %v4086 = vunpack.c.l.b16 %v4047
    %v4087 = vunpack.c.l.b16 %v4048
    %v4088 = vunpack.c.l.b16 %v4049
    %v4089 = vunpack.c.l.b16 %v4050
    %v4090 = vunpack.c.l.b16 %v4051
    %v4091 = vunpack.c.l.b16 %v4052
    %v4092 = vunpack.c.l.b16 %v4053
    %v4093 = vunpack.c.l.b16 %v4054
    %v4094 = vunpack.c.l.b16 %v4055
    %v4095 = vpack.c.b16 %v4080, %v4079
    %v4096 = vpack.c.b16 %v4082, %v4081
    %v4097 = vpack.c.b16 %v4084, %v4083
    %v4098 = vpack.c.b16 %v4086, %v4085
    %v4099 = vpack.c.b16 %v4088, %v4087
    %v4100 = vpack.c.b16 %v4090, %v4089
    %v4101 = vpack.c.b16 %v4092, %v4091
    %v4102 = vpack.c.b16 %v4094, %v4093
    %4111 = vmatprep.subr.bf16.mxu0 0
    %4112 = vmatpush1.bf16.msra.mxu0 %v4095
    %4113 = vmatprep.subr.bf16.mxu0 0
    %4114 = vmatpush1.bf16.msra.mxu0 %v4096
    %4115 = vmatprep.subr.bf16.mxu0 0
    %4116 = vmatpush1.bf16.msra.mxu0 %v4097
    %4117 = vmatprep.subr.bf16.mxu0 0
    %4118 = vmatpush1.bf16.msra.mxu0 %v4098
    %4119 = vmatprep.subr.bf16.mxu0 0
    %4120 = vmatpush1.bf16.msra.mxu0 %v4099
    %4121 = vmatprep.subr.bf16.mxu0 0
    %4122 = vmatpush1.bf16.msra.mxu0 %v4100
    %4123 = vmatprep.subr.bf16.mxu0 0
    %4124 = vmatpush1.bf16.msra.mxu0 %v4101
    %4125 = vmatprep.subr.bf16.mxu0 0
    %4126 = vmatpush1.bf16.msra.mxu0 %v4102
    %4127 = vmatprep.subr.bf16.mxu0 0
    %4128 = vmatpush1.bf16.msra.mxu0 0
    %4129 = vmatprep.subr.bf16.mxu0 0
    %4130 = vmatpush1.bf16.msra.mxu0 0
    %4131 = vmatprep.subr.bf16.mxu0 0
    %4132 = vmatpush1.bf16.msra.mxu0 0
    %4133 = vmatprep.subr.bf16.mxu0 0
    %4134 = vmatpush1.bf16.msra.mxu0 0
    %4135 = vmatprep.subr.bf16.mxu0 0
    %4136 = vmatpush1.bf16.msra.mxu0 0
    %4137 = vmatprep.subr.bf16.mxu0 0
    %4138 = vmatpush1.bf16.msra.mxu0 0
    %4139 = vmatprep.subr.bf16.mxu0 0
    %4140 = vmatpush1.bf16.msra.mxu0 0
    %4141 = vmatprep.subr.bf16.mxu0 0
    %4142 = vmatpush1.bf16.msra.mxu0 0
    %4143 = vmatprep.mubr.bf16.mxu0 0
    %4144 = vmatmul.mubr.bf16.gmra.mrb[0].mxu0 %v3848
    %v4145 = vpop.f32.mrb[0].mxu0
    %v4146 = vadd.f32 %v4061, %v4145
    %v4147 = vpop.f32.mrb[0].mxu0
    %v4148 = vpop.f32.mrb[0].mxu0
    %v4149 = vadd.f32 %v4061, %v4148
    %v4150 = vpop.f32.mrb[0].mxu0
    %4151 = vmatprep.mubr.bf16.mxu0 0
    %4152 = vmatmul.mubr.bf16.gmra.mrb[0].mxu0 %v3849
    %v4153 = vpop.f32.mrb[0].mxu0
    %v4154 = vadd.f32 %v4061, %v4153
    %v4155 = vpop.f32.mrb[0].mxu0
    %v4156 = vpop.f32.mrb[0].mxu0
    %v4157 = vadd.f32 %v4061, %v4156
    %v4158 = vpop.f32.mrb[0].mxu0
    %4159 = vmatprep.mubr.bf16.mxu0 0
    %4160 = vmatmul.mubr.bf16.gmra.mrb[0].mxu0 %v3850
    %v4161 = vpop.f32.mrb[0].mxu0
    %v4162 = vadd.f32 %v4061, %v4161
    %v4163 = vpop.f32.mrb[0].mxu0
    %v4164 = vpop.f32.mrb[0].mxu0
    %v4165 = vadd.f32 %v4061, %v4164
    %v4166 = vpop.f32.mrb[0].mxu0
    %4167 = vmatprep.mubr.bf16.mxu0 0
    %4168 = vmatmul.mubr.bf16.gmra.mrb[0].mxu0 %v3851
    %v4169 = vpop.f32.mrb[0].mxu0
    %v4170 = vadd.f32 %v4061, %v4169
    %v4171 = vpop.f32.mrb[0].mxu0
    %v4172 = vpop.f32.mrb[0].mxu0
    %v4173 = vadd.f32 %v4061, %v4172
    %v4174 = vpop.f32.mrb[0].mxu0
    %4175 = vmatprep.mubr.bf16.mxu0 0
    %4176 = vmatmul.mubr.bf16.gmra.mrb[0].mxu0 %v3852
    %v4177 = vpop.f32.mrb[0].mxu0
    %v4178 = vadd.f32 %v4061, %v4177
    %v4179 = vpop.f32.mrb[0].mxu0
    %v4180 = vpop.f32.mrb[0].mxu0
    %v4181 = vadd.f32 %v4061, %v4180
    %v4182 = vpop.f32.mrb[0].mxu0
    %4183 = vmatprep.mubr.bf16.mxu0 0
    %4184 = vmatmul.mubr.bf16.gmra.mrb[0].mxu0 %v3853
    %v4185 = vpop.f32.mrb[0].mxu0
    %v4186 = vadd.f32 %v4061, %v4185
    %v4187 = vpop.f32.mrb[0].mxu0
    %v4188 = vpop.f32.mrb[0].mxu0
    %v4189 = vadd.f32 %v4061, %v4188
    %v4190 = vpop.f32.mrb[0].mxu0
    %4191 = vmatprep.mubr.bf16.mxu0 0
    %4192 = vmatmul.mubr.bf16.gmra.mrb[0].mxu0 %v3854
    %v4193 = vpop.f32.mrb[0].mxu0
    %v4194 = vadd.f32 %v4061, %v4193
    %v4195 = vpop.f32.mrb[0].mxu0
    %v4196 = vpop.f32.mrb[0].mxu0
    %v4197 = vadd.f32 %v4061, %v4196
    %v4198 = vpop.f32.mrb[0].mxu0
    %4199 = vmatprep.mubr.bf16.mxu0 0
    %4200 = vmatmul.mubr.bf16.gmra.mrb[0].mxu0 %v3855
    %v4201 = vpop.f32.mrb[0].mxu0
    %v4202 = vadd.f32 %v4061, %v4201
    %v4203 = vpop.f32.mrb[0].mxu0
    %v4204 = vpop.f32.mrb[0].mxu0
    %v4205 = vadd.f32 %v4061, %v4204
    %v4206 = vpop.f32.mrb[0].mxu0
    %4207 = vdwg.mxu0
    %4208 = vst [vmem:[#allocation18] sm:$0xff] %v4146
    %4209 = vst [vmem:[#allocation18 + $0x8] sm:$0xff] %v4149
    %4210 = vst [vmem:[#allocation18 + $0x10] sm:$0xff] %v4154
    %4211 = vst [vmem:[#allocation18 + $0x18] sm:$0xff] %v4157
    %4212 = vst [vmem:[#allocation18 + $0x20] sm:$0xff] %v4162
    %4213 = vst [vmem:[#allocation18 + $0x28] sm:$0xff] %v4165
    %4214 = vst [vmem:[#allocation18 + $0x30] sm:$0xff] %v4170
    %4215 = vst [vmem:[#allocation18 + $0x38] sm:$0xff] %v4173
    %4216 = vst [vmem:[#allocation18 + $0x40] sm:$0xff] %v4178
    %4217 = vst [vmem:[#allocation18 + $0x48] sm:$0xff] %v4181
    %4218 = vst [vmem:[#allocation18 + $0x50] sm:$0xff] %v4186
    %4219 = vst [vmem:[#allocation18 + $0x58] sm:$0xff] %v4189
    %4220 = vst [vmem:[#allocation18 + $0x60] sm:$0xff] %v4194
    %4221 = vst [vmem:[#allocation18 + $0x68] sm:$0xff] %v4197
    %4222 = vst [vmem:[#allocation18 + $0x70] sm:$0xff] %v4202
    %4223 = vst [vmem:[#allocation18 + $0x78] sm:$0xff] %v4205
    // Predicated region
    $region74: #{tpu_custom_call.1} parent=1 // pred_check
      _
    $region75: #{tpu_custom_call.1} parent=1 // pred_check_branch
      %4225 = sbr.rel (0) target = $region77
    $region76: #{tpu_custom_call.1} parent=1 // pred_region
      %s4227 = ssub.s32 2048, 2048
      %4228 = vsyncadd [#allocation4], %s4227
      %s4229 = sshll.u32 [#allocation14], 4
      %s4230 = int_to_ptr.vmem [resolvable:$true] %s4229
      %4235 = dma.vmem_to_hbm [thread:$0]  %s4230, 2048, %s11, [#allocation4], 128, 128, 8
    $region77: #{tpu_custom_call.1} parent=1 // pred_fallthru
      _
    // Predicated region
    $region78: #{tpu_custom_call.1} parent=1 // pred_check
      _
    $region79: #{tpu_custom_call.1} parent=1 // pred_check_branch
      %4237 = sbr.rel (0) target = $region81
    $region80: #{tpu_custom_call.1} parent=1 // pred_region
      %s4239 = ssub.s32 2048, 2048
      %4240 = vsyncadd [#allocation16], %s4239
      %s4241 = sshll.u32 [#allocation15], 4
      %s4242 = int_to_ptr.vmem [resolvable:$true] %s4241
      %4247 = dma.vmem_to_hbm [thread:$0]  %s4242, 2048, %s12, [#allocation16], 128, 128, 8
    $region81: #{tpu_custom_call.1} parent=1 // pred_fallthru
      _
    // Predicated region
    $region82: #{tpu_custom_call.1} parent=1 // pred_check
      _
    $region83: #{tpu_custom_call.1} parent=1 // pred_check_branch
      %4249 = sbr.rel (0) target = $region85
    $region84: #{tpu_custom_call.1} parent=1 // pred_region
      %s4251 = ssub.s32 2048, 2048
      %4252 = vsyncadd [#allocation16], %s4251
      %s4253 = sshll.u32 [#allocation17], 4
      %s4254 = int_to_ptr.vmem [resolvable:$true] %s4253
      %4259 = dma.vmem_to_hbm [thread:$0]  %s4254, 2048, %s13, [#allocation16], 128, 128, 8
    $region85: #{tpu_custom_call.1} parent=1 // pred_fallthru
      _
    // Predicated region
    $region86: #{tpu_custom_call.1} parent=1 // pred_check
      _
    $region87: #{tpu_custom_call.1} parent=1 // pred_check_branch
      %4261 = sbr.rel (0) target = $region89
    $region88: #{tpu_custom_call.1} parent=1 // pred_region
      %s4263 = ssub.s32 2048, 2048
      %4264 = vsyncadd [#allocation19], %s4263
      %s4265 = sshll.u32 [#allocation18], 4
      %s4266 = int_to_ptr.vmem [resolvable:$true] %s4265
      %4271 = dma.vmem_to_hbm [thread:$0]  %s4266, 2048, %s14, [#allocation19], 128, 128, 8
    $region89: #{tpu_custom_call.1} parent=1 // pred_fallthru
      _
    // Predicated region
    $region90: #{tpu_custom_call.1} parent=1 // pred_check
      _
    $region91: #{tpu_custom_call.1} parent=1 // pred_check_branch
      %4273 = sbr.rel (0) target = $region93
    $region92: #{tpu_custom_call.1} parent=1 // pred_region
      %4274 = dma.done [#allocation4], 2048
    $region93: #{tpu_custom_call.1} parent=1 // pred_fallthru
      _
    // Predicated region
    $region94: #{tpu_custom_call.1} parent=1 // pred_check
      _
    $region95: #{tpu_custom_call.1} parent=1 // pred_check_branch
      %4276 = sbr.rel (0) target = $region97
    $region96: #{tpu_custom_call.1} parent=1 // pred_region
      %4277 = dma.done [#allocation16], 2048
    $region97: #{tpu_custom_call.1} parent=1 // pred_fallthru
      _
    // Predicated region
    $region98: #{tpu_custom_call.1} parent=1 // pred_check
      _
    $region99: #{tpu_custom_call.1} parent=1 // pred_check_branch
      %4279 = sbr.rel (0) target = $region101
    $region100: #{tpu_custom_call.1} parent=1 // pred_region
      %4280 = dma.done [#allocation16], 2048
    $region101: #{tpu_custom_call.1} parent=1 // pred_fallthru
      _
    // Predicated region
    $region102: #{tpu_custom_call.1} parent=1 // pred_check
      _
    $region103: #{tpu_custom_call.1} parent=1 // pred_check_branch
      %4282 = sbr.rel (0) target = $region105
    $region104: #{tpu_custom_call.1} parent=1 // pred_region
      %4283 = dma.done [#allocation19], 2048
    $region105: #{tpu_custom_call.1} parent=1 // pred_fallthru
      _
    %4284 = vsyncpa [#allocation3], 1
    %4285 = vsyncpa [#allocation6], 1
    %4286 = vsyncpa [#allocation9], 1
    %4287 = vsyncpa [#allocation12], 1
    %4288 = vsyncpa [#allocation4], 1
    %4289 = vsyncpa [#allocation16], 1
    %4290 = vsyncpa [#allocation19], 1

</llo_original>
